<compile_context>
chip_gen: v7x
topology: tpu7x:2x2x1
jax: 0.10.0
libtpu: 0.0.40
codegen_flags: <defaults>
</compile_context>

<pallas_src>
import functools
import math

import jax
import jax.numpy as jnp
from jax import lax
from jax.experimental import pallas as pl
from jax.experimental.pallas import tpu as pltpu

LN_EPS = 1e-5                       # PyTorch nn.LayerNorm default
VMEM_LIMIT = 32 * 1024 * 1024       # explicit budget, safe on v5e/v6e/v7x


# ----------------------------------------------------------------------------
# Positional-encoding table (deterministic __init__ buffer of the module).
# ----------------------------------------------------------------------------
def make_positional_encoding(d_model: int, max_len: int = 512) -> jnp.ndarray:
    position = jnp.arange(max_len, dtype=jnp.float32)[:, None]            # (L, 1)
    div_term = jnp.exp(
        jnp.arange(0, d_model, 2, dtype=jnp.float32)
        * (-math.log(10000.0) / d_model)
    )
    angles = position * div_term                                          # (L, D/2)
    pe = jnp.zeros((max_len, d_model), dtype=jnp.float32)
    pe = pe.at[:, 0::2].set(jnp.sin(angles))
    pe = pe.at[:, 1::2].set(jnp.cos(angles)[:, : d_model // 2])           # odd-D safe
    return pe


def _pick_row_tile(m: int, preferred: int = 128) -> int:
    """Row tile that divides m, is a multiple of 8, and (if possible) gives >=2
    grid steps so both v7x TensorCores get work."""
    assert m % 8 == 0, "row count must be a multiple of 8"
    t = min(preferred, m)
    while m % t:
        t -= 8
    if m // t == 1 and m >= 16 and (m // 2) % 8 == 0:
        t = m // 2
    return t


# ----------------------------------------------------------------------------
# Kernel 1: fused embedding gather + positional-encoding add.
#   Token ids are scalar-prefetched (flat 1-D SMEM array).  The embedding
#   table is VMEM-resident (64 KiB at these shapes) and the gather is an exact
#   one-hot MXU matmul -> no HBM row DMAs, PE add rides for free.
# ----------------------------------------------------------------------------
def _embed_pe_kernel(ids_ref, emb_ref, pe_ref, o_ref, *, seq_len, vocab):
    b = pl.program_id(0)
    base = b * seq_len
    iota_v = lax.broadcasted_iota(jnp.int32, (1, vocab), 1)
    rows = [
        (iota_v == ids_ref[base + s]).astype(jnp.float32) for s in range(seq_len)
    ]
    one_hot = jnp.concatenate(rows, axis=0)                         # (S, V) exact 0/1
    x = jnp.dot(
        one_hot, emb_ref[...],
        precision=lax.Precision.HIGHEST,                            # exact row gather
        preferred_element_type=jnp.float32,
    )                                                               # (S, D)
    o_ref[...] = (x + pe_ref[...]).astype(o_ref.dtype)


def embed_with_positional_encoding(token_ids, emb_table, pe):
    # TODO(synk): for large vocabularies the table will not fit VMEM; switch
    # back to an HBM DMA gather (memory_space=pl.ANY) in that regime.
    B, S = token_ids.shape
    V, D = emb_table.shape
    assert S % 8 == 0 and D % 128 == 0
    pe_slice = pe[:S]                                               # (S, D) f32
    ids = token_ids.reshape(-1).astype(jnp.int32)                   # flat 1-D SMEM

    kernel = functools.partial(_embed_pe_kernel, seq_len=S, vocab=V)
    return pl.pallas_call(
        kernel,
        out_shape=jax.ShapeDtypeStruct((B * S, D), emb_table.dtype),
        grid_spec=pltpu.PrefetchScalarGridSpec(
            num_scalar_prefetch=1,                                  # ids -> SMEM
            grid=(B,),
            in_specs=[
                pl.BlockSpec((V, D), lambda b, ids: (0, 0)),        # resident table
                pl.BlockSpec((S, D), lambda b, ids: (0, 0)),        # resident pe
            ],
            out_specs=pl.BlockSpec((S, D), lambda b, ids: (b, 0)),
        ),
        compiler_params=pltpu.CompilerParams(
            dimension_semantics=("parallel",), vmem_limit_bytes=VMEM_LIMIT
        ),
    )(ids, emb_table, pe_slice)


# ----------------------------------------------------------------------------
# Kernel 2: fully fused attention block, one grid step per batch element:
#   qkv = x @ Wqkv + b ; per-head softmax(q k^T / sqrt(dh)) v ; concat heads ;
#   out-proj ; residual add ; LayerNorm.  Everything between the lane-dense
#   (S, D) input and output blocks stays in VMEM/vregs.
# ----------------------------------------------------------------------------
def _attn_block_kernel(x_ref, wqkv_ref, bqkv_ref, wout_ref, bout_ref,
                       g_ref, beta_ref, o_ref, *, n_heads, eps):
    S, D = x_ref.shape
    dh = D // n_heads
    scale = 1.0 / math.sqrt(dh)

    x = x_ref[...]                                                  # (S, D) f32
    qkv = jnp.dot(
        x.astype(jnp.bfloat16), wqkv_ref[...],
        preferred_element_type=jnp.float32,
    ) + bqkv_ref[...]                                               # (S, 3D) f32

    heads = []
    for h in range(n_heads):                                        # static unroll
        q = (qkv[:, h * dh:(h + 1) * dh] * scale).astype(jnp.bfloat16)
        k = qkv[:, D + h * dh:D + (h + 1) * dh].astype(jnp.bfloat16)
        v = qkv[:, 2 * D + h * dh:2 * D + (h + 1) * dh].astype(jnp.bfloat16)
        # TODO(synk): attn_mask not implemented (module forward uses mask=None);
        # a mask would be added to `s` before the softmax.
        s = lax.dot_general(
            q, k, (((1,), (1,)), ((), ())), preferred_element_type=jnp.float32
        )                                                           # (S, S)
        m = jnp.max(s, axis=-1, keepdims=True)
        p = jnp.exp(s - m)
        p = p * pl.reciprocal(jnp.sum(p, axis=-1, keepdims=True))   # exact recip
        heads.append(
            jnp.dot(p.astype(jnp.bfloat16), v, preferred_element_type=jnp.float32)
        )
    attn = jnp.concatenate(heads, axis=-1)                          # (S, D) f32
    attn = jnp.dot(
        attn.astype(jnp.bfloat16), wout_ref[...],
        preferred_element_type=jnp.float32,
    ) + bout_ref[...]

    # residual + LayerNorm (fused epilogue)
    z = x + attn
    mean = jnp.mean(z, axis=-1, keepdims=True)
    zc = z - mean
    var = jnp.mean(zc * zc, axis=-1, keepdims=True)
    o_ref[...] = (
        zc * lax.rsqrt(var + eps) * g_ref[...] + beta_ref[...]
    ).astype(o_ref.dtype)


def attention_block(x, layer, *, batch, seq, n_heads):
    M, D = x.shape
    assert M == batch * seq and D % n_heads == 0
    wqkv = layer["w_qkv"].astype(jnp.bfloat16)
    wout = layer["w_out"].astype(jnp.bfloat16)

    row = pl.BlockSpec((seq, D), lambda b: (b, 0))
    def full(shape):
        return pl.BlockSpec(shape, lambda b: (0,) * len(shape))

    kernel = functools.partial(_attn_block_kernel, n_heads=n_heads, eps=LN_EPS)
    return pl.pallas_call(
        kernel,
        out_shape=jax.ShapeDtypeStruct((M, D), x.dtype),
        grid=(batch,),
        in_specs=[
            row,
            full((D, 3 * D)), full((1, 3 * D)),
            full((D, D)), full((1, D)),
            full((1, D)), full((1, D)),
        ],
        out_specs=row,
        compiler_params=pltpu.CompilerParams(
            dimension_semantics=("parallel",), vmem_limit_bytes=VMEM_LIMIT
        ),
    )(
        x, wqkv, layer["b_qkv"].reshape(1, -1),
        wout, layer["b_out"].reshape(1, -1),
        layer["ln1_g"].reshape(1, -1), layer["ln1_b"].reshape(1, -1),
    )


# ----------------------------------------------------------------------------
# Kernel 3: fully fused FFN block: relu(x@W1+b1)@W2+b2, residual, LayerNorm.
# The (tm, 4D) intermediate never leaves VMEM.
# ----------------------------------------------------------------------------
def _ffn_block_kernel(x_ref, w1_ref, b1_ref, w2_ref, b2_ref,
                      g_ref, beta_ref, o_ref, *, eps):
    x = x_ref[...]                                                  # (tm, D) f32
    h = jnp.dot(
        x.astype(jnp.bfloat16), w1_ref[...], preferred_element_type=jnp.float32
    ) + b1_ref[...]
    h = jnp.maximum(h, 0.0)                                         # (tm, 4D) VMEM only
    f = jnp.dot(
        h.astype(jnp.bfloat16), w2_ref[...], preferred_element_type=jnp.float32
    ) + b2_ref[...]

    z = x + f
    mean = jnp.mean(z, axis=-1, keepdims=True)
    zc = z - mean
    var = jnp.mean(zc * zc, axis=-1, keepdims=True)
    o_ref[...] = (
        zc * lax.rsqrt(var + eps) * g_ref[...] + beta_ref[...]
    ).astype(o_ref.dtype)


def ffn_block(x, layer):
    M, D = x.shape
    H = layer["w_ffn1"].shape[1]
    tm = _pick_row_tile(M)
    w1 = layer["w_ffn1"].astype(jnp.bfloat16)
    w2 = layer["w_ffn2"].astype(jnp.bfloat16)

    row = pl.BlockSpec((tm, D), lambda i: (i, 0))
    def full(shape):
        return pl.BlockSpec(shape, lambda i: (0,) * len(shape))

    return pl.pallas_call(
        functools.partial(_ffn_block_kernel, eps=LN_EPS),
        out_shape=jax.ShapeDtypeStruct((M, D), x.dtype),
        grid=(M // tm,),
        in_specs=[
            row,
            full((D, H)), full((1, H)),
            full((H, D)), full((1, D)),
            full((1, D)), full((1, D)),
        ],
        out_specs=row,
        compiler_params=pltpu.CompilerParams(
            dimension_semantics=("parallel",), vmem_limit_bytes=VMEM_LIMIT
        ),
    )(
        x, w1, layer["b_ffn1"].reshape(1, -1),
        w2, layer["b_ffn2"].reshape(1, -1),
        layer["ln2_g"].reshape(1, -1), layer["ln2_b"].reshape(1, -1),
    )


# ----------------------------------------------------------------------------
# Kernel 4: K-tiled linear + bias (final vocab projection).  bf16 operands,
# f32 accumulation in VMEM scratch, bias added in the k==last epilogue.
# ----------------------------------------------------------------------------
def _linear_kernel(x_ref, w_ref, b_ref, o_ref, acc_ref):
    @pl.when(pl.program_id(2) == 0)
    def _init():
        acc_ref[...] = jnp.zeros_like(acc_ref)

    acc_ref[...] += jnp.dot(
        x_ref[...].astype(jnp.bfloat16), w_ref[...],
        preferred_element_type=jnp.float32,
    )

    @pl.when(pl.program_id(2) == pl.num_programs(2) - 1)
    def _finalize():
        o_ref[...] = (acc_ref[...] + b_ref[...]).astype(o_ref.dtype)


def linear(x, w, b, *, tn=256, tk=512):
    M, K = x.shape
    Kw, N = w.shape
    assert K == Kw and b.shape == (N,)
    tm = _pick_row_tile(M)
    tn, tk = min(tn, N), min(tk, K)
    assert N % tn == 0 and K % tk == 0
    w_bf16 = w.astype(jnp.bfloat16)
    return pl.pallas_call(
        _linear_kernel,
        out_shape=jax.ShapeDtypeStruct((M, N), x.dtype),
        grid=(M // tm, N // tn, K // tk),
        in_specs=[
            pl.BlockSpec((tm, tk), lambda i, j, k: (i, k)),
            pl.BlockSpec((tk, tn), lambda i, j, k: (k, j)),
            pl.BlockSpec((1, tn), lambda i, j, k: (0, j)),
        ],
        out_specs=pl.BlockSpec((tm, tn), lambda i, j, k: (i, j)),
        scratch_shapes=[pltpu.VMEM((tm, tn), jnp.float32)],
        compiler_params=pltpu.CompilerParams(
            dimension_semantics=("parallel", "parallel", "arbitrary"),
            vmem_limit_bytes=VMEM_LIMIT,
        ),
    )(x, w_bf16, b.reshape(1, N))


# ----------------------------------------------------------------------------
# Full SimpleLLM forward.
# ----------------------------------------------------------------------------
def simple_llm_forward(params, token_ids, *, n_heads):
    B, S = token_ids.shape
    emb = params["embedding"]
    _, D = emb.shape

    x = embed_with_positional_encoding(token_ids, emb, params["pe"])  # (B*S, D)
    for layer in params["layers"]:
        x = attention_block(x, layer, batch=B, seq=S, n_heads=n_heads)
        x = ffn_block(x, layer)
    # TODO(synk): attention dropout / training-mode behaviour omitted (eval only).
    logits = linear(x, params["fc_w"], params["fc_b"])                # (B*S, V)
    return logits.reshape(B, S, params["fc_b"].shape[0])


# ----------------------------------------------------------------------------
# Deterministic parameters (weights stored pre-transposed as (in, out)).
# ----------------------------------------------------------------------------
def init_params(key, vocab_size, d_model, n_heads, n_layers, max_len=512):
    del n_heads
    keys = iter(jax.random.split(key, 3 + 8 * n_layers))

    def w(shape, fan_in):
        return jax.random.normal(next(keys), shape, jnp.float32) / math.sqrt(fan_in)

    def b(shape):
        return 0.02 * jax.random.normal(next(keys), shape, jnp.float32)

    params = {
        "embedding": jax.random.normal(next(keys), (vocab_size, d_model), jnp.float32),
        "pe": make_positional_encoding(d_model, max_len),
        "layers": [],
    }
    for _ in range(n_layers):
        params["layers"].append({
            "w_qkv": w((d_model, 3 * d_model), d_model),
            "b_qkv": b((3 * d_model,)),
            "w_out": w((d_model, d_model), d_model),
            "b_out": b((d_model,)),
            "ln1_g": jnp.ones((d_model,), jnp.float32),
            "ln1_b": jnp.zeros((d_model,), jnp.float32),
            "w_ffn1": w((d_model, 4 * d_model), d_model),
            "b_ffn1": b((4 * d_model,)),
            "w_ffn2": w((4 * d_model, d_model), 4 * d_model),
            "b_ffn2": b((d_model,)),
            "ln2_g": jnp.ones((d_model,), jnp.float32),
            "ln2_b": jnp.zeros((d_model,), jnp.float32),
        })
    params["fc_w"] = w((d_model, vocab_size), d_model)
    params["fc_b"] = b((vocab_size,))
    return params


# ----------------------------------------------------------------------------
# Pure-JAX reference: same math as the PyTorch forward, using the SAME
# mixed-precision policy as the kernels (bf16 matmul operands, f32 accumulate,
# f32 softmax / LayerNorm / residuals) so the comparison isolates kernel
# correctness rather than the (intentional) bf16 quantisation.
# ----------------------------------------------------------------------------
def _mm(a, b):
    return jnp.dot(a.astype(jnp.bfloat16), b.astype(jnp.bfloat16),
                   preferred_element_type=jnp.float32)


def _layer_norm_ref(x, g, b, eps=LN_EPS):
    mean = jnp.mean(x, axis=-1, keepdims=True)
    var = jnp.mean((x - mean) ** 2, axis=-1, keepdims=True)
    return (x - mean) * lax.rsqrt(var + eps) * g + b


def reference_forward(params, token_ids, n_heads):
    emb = params["embedding"]
    B, S = token_ids.shape
    D = emb.shape[1]
    dh = D // n_heads
    x = emb[token_ids] + params["pe"][:S][None]
    for layer in params["layers"]:
        qkv = _mm(x.reshape(B * S, D), layer["w_qkv"]).reshape(B, S, 3 * D)
        qkv = qkv + layer["b_qkv"]
        q, k, v = jnp.split(qkv, 3, axis=-1)

        def split_heads(t):
            return t.reshape(B, S, n_heads, dh).transpose(0, 2, 1, 3)

        qh, kh, vh = map(split_heads, (q, k, v))
        qh = qh / math.sqrt(dh)
        scores = jnp.einsum(
            "bhqd,bhkd->bhqk", qh.astype(jnp.bfloat16), kh.astype(jnp.bfloat16),
            preferred_element_type=jnp.float32)
        probs = jax.nn.softmax(scores, axis=-1)
        attn = jnp.einsum(
            "bhqk,bhkd->bhqd", probs.astype(jnp.bfloat16), vh.astype(jnp.bfloat16),
            preferred_element_type=jnp.float32)
        attn = attn.transpose(0, 2, 1, 3).reshape(B, S, D)
        attn = _mm(attn.reshape(B * S, D), layer["w_out"]).reshape(B, S, D)
        attn = attn + layer["b_out"]
        x = _layer_norm_ref(x + attn, layer["ln1_g"], layer["ln1_b"])

        h = _mm(x.reshape(B * S, D), layer["w_ffn1"]).reshape(B, S, -1)
        h = jnp.maximum(h + layer["b_ffn1"], 0.0)
        f = _mm(h.reshape(B * S, -1), layer["w_ffn2"]).reshape(B, S, D)
        f = f + layer["b_ffn2"]
        x = _layer_norm_ref(x + f, layer["ln2_g"], layer["ln2_b"])
    logits = _mm(x.reshape(B * S, D), params["fc_w"]).reshape(B, S, -1)
    return logits + params["fc_b"]


if __name__ == "__main__":
    # SimpleLLM defaults: d_model=128, n_heads=2, n_layers=2; vocab=128 keeps
    # the final projection lane-dense.  Small demo batch/sequence.
    VOCAB, D_MODEL, N_HEADS, N_LAYERS = 128, 128, 2, 2
    B, S = 2, 8

    key = jax.random.PRNGKey(0)
    pkey, ikey = jax.random.split(key)
    params = init_params(pkey, VOCAB, D_MODEL, N_HEADS, N_LAYERS)
    token_ids = jax.random.randint(ikey, (B, S), 0, VOCAB, dtype=jnp.int32)

    fwd = jax.jit(functools.partial(simple_llm_forward, n_heads=N_HEADS))
    logits = jax.block_until_ready(fwd(params, token_ids))

    ref = jax.block_until_ready(reference_forward(params, token_ids, N_HEADS))
    assert logits.shape == (B, S, VOCAB)
    max_diff = jnp.max(jnp.abs(logits - ref))
    assert jnp.allclose(logits, ref, atol=2e-2, rtol=2e-2), (
        f"mismatch vs reference, max abs diff = {max_diff}"
    )
    print("KERNEL_OK")
</pallas_src>

<mosaic_0001>
module attributes {stable_mosaic.version = 11 : i64} {
  func.func @_embed_pe_kernel(%arg0: i32, %arg1: memref<16xi32, #tpu.memory_space<smem>>, %arg2: memref<128x128xf32, #tpu.memory_space<vmem>>, %arg3: memref<8x128xf32, #tpu.memory_space<vmem>>, %arg4: memref<8x128xf32, #tpu.memory_space<vmem>>) attributes {dimension_semantics = [#tpu.dimension_semantics<parallel>], iteration_bounds = array<i64: 2>, scalar_prefetch = 1 : i64, scratch_operands = 0 : i64, tpu.core_type = #tpu.core_type<tc>, window_params = [{pipeline_mode = #tpu.pipeline_mode<synchronous>, transform_indices = @transform_0, window_bounds = array<i64: 128, 128>}, {pipeline_mode = #tpu.pipeline_mode<synchronous>, transform_indices = @transform_1, window_bounds = array<i64: 8, 128>}, {transform_indices = @transform_2, window_bounds = array<i64: 8, 128>}]} {
    %c8_i32 = arith.constant 8 : i32
    %0 = arith.muli %arg0, %c8_i32 : i32
    %1 = tpu.iota {dimensions = array<i32: 1>} : vector<1x128xi32>
    %c0_i32 = arith.constant 0 : i32
    %2 = arith.addi %0, %c0_i32 : i32
    %3 = arith.index_cast %2 : i32 to index
    %4 = memref.load %arg1[%3] : memref<16xi32, #tpu.memory_space<smem>>
    %5 = vector.broadcast %4 : i32 to vector<1x128xi32>
    %6 = arith.cmpi eq, %1, %5 : vector<1x128xi32>
    %7 = arith.extui %6 : vector<1x128xi1> to vector<1x128xi32>
    %8 = arith.sitofp %7 : vector<1x128xi32> to vector<1x128xf32>
    %c1_i32 = arith.constant 1 : i32
    %9 = arith.addi %0, %c1_i32 : i32
    %10 = arith.index_cast %9 : i32 to index
    %11 = memref.load %arg1[%10] : memref<16xi32, #tpu.memory_space<smem>>
    %12 = vector.broadcast %11 : i32 to vector<1x128xi32>
    %13 = arith.cmpi eq, %1, %12 : vector<1x128xi32>
    %14 = arith.extui %13 : vector<1x128xi1> to vector<1x128xi32>
    %15 = arith.sitofp %14 : vector<1x128xi32> to vector<1x128xf32>
    %c2_i32 = arith.constant 2 : i32
    %16 = arith.addi %0, %c2_i32 : i32
    %17 = arith.index_cast %16 : i32 to index
    %18 = memref.load %arg1[%17] : memref<16xi32, #tpu.memory_space<smem>>
    %19 = vector.broadcast %18 : i32 to vector<1x128xi32>
    %20 = arith.cmpi eq, %1, %19 : vector<1x128xi32>
    %21 = arith.extui %20 : vector<1x128xi1> to vector<1x128xi32>
    %22 = arith.sitofp %21 : vector<1x128xi32> to vector<1x128xf32>
    %c3_i32 = arith.constant 3 : i32
    %23 = arith.addi %0, %c3_i32 : i32
    %24 = arith.index_cast %23 : i32 to index
    %25 = memref.load %arg1[%24] : memref<16xi32, #tpu.memory_space<smem>>
    %26 = vector.broadcast %25 : i32 to vector<1x128xi32>
    %27 = arith.cmpi eq, %1, %26 : vector<1x128xi32>
    %28 = arith.extui %27 : vector<1x128xi1> to vector<1x128xi32>
    %29 = arith.sitofp %28 : vector<1x128xi32> to vector<1x128xf32>
    %c4_i32 = arith.constant 4 : i32
    %30 = arith.addi %0, %c4_i32 : i32
    %31 = arith.index_cast %30 : i32 to index
    %32 = memref.load %arg1[%31] : memref<16xi32, #tpu.memory_space<smem>>
    %33 = vector.broadcast %32 : i32 to vector<1x128xi32>
    %34 = arith.cmpi eq, %1, %33 : vector<1x128xi32>
    %35 = arith.extui %34 : vector<1x128xi1> to vector<1x128xi32>
    %36 = arith.sitofp %35 : vector<1x128xi32> to vector<1x128xf32>
    %c5_i32 = arith.constant 5 : i32
    %37 = arith.addi %0, %c5_i32 : i32
    %38 = arith.index_cast %37 : i32 to index
    %39 = memref.load %arg1[%38] : memref<16xi32, #tpu.memory_space<smem>>
    %40 = vector.broadcast %39 : i32 to vector<1x128xi32>
    %41 = arith.cmpi eq, %1, %40 : vector<1x128xi32>
    %42 = arith.extui %41 : vector<1x128xi1> to vector<1x128xi32>
    %43 = arith.sitofp %42 : vector<1x128xi32> to vector<1x128xf32>
    %c6_i32 = arith.constant 6 : i32
    %44 = arith.addi %0, %c6_i32 : i32
    %45 = arith.index_cast %44 : i32 to index
    %46 = memref.load %arg1[%45] : memref<16xi32, #tpu.memory_space<smem>>
    %47 = vector.broadcast %46 : i32 to vector<1x128xi32>
    %48 = arith.cmpi eq, %1, %47 : vector<1x128xi32>
    %49 = arith.extui %48 : vector<1x128xi1> to vector<1x128xi32>
    %50 = arith.sitofp %49 : vector<1x128xi32> to vector<1x128xf32>
    %c7_i32 = arith.constant 7 : i32
    %51 = arith.addi %0, %c7_i32 : i32
    %52 = arith.index_cast %51 : i32 to index
    %53 = memref.load %arg1[%52] : memref<16xi32, #tpu.memory_space<smem>>
    %54 = vector.broadcast %53 : i32 to vector<1x128xi32>
    %55 = arith.cmpi eq, %1, %54 : vector<1x128xi32>
    %56 = arith.extui %55 : vector<1x128xi1> to vector<1x128xi32>
    %57 = arith.sitofp %56 : vector<1x128xi32> to vector<1x128xf32>
    %58 = tpu.concatenate %8, %15, %22, %29, %36, %43, %50, %57 in 0 : vector<1x128xf32>, vector<1x128xf32>, vector<1x128xf32>, vector<1x128xf32>, vector<1x128xf32>, vector<1x128xf32>, vector<1x128xf32>, vector<1x128xf32> -> vector<8x128xf32>
    %c0 = arith.constant 0 : index
    %c0_0 = arith.constant 0 : index
    %59 = vector.load %arg2[%c0, %c0_0] : memref<128x128xf32, #tpu.memory_space<vmem>>, vector<128x128xf32>
    %cst = arith.constant dense<0.000000e+00> : vector<8x128xf32>
    %60 = tpu.matmul %58, %59, %cst {dimension_numbers = #tpu.dot_dimension_numbers<[1], [0], [0], [1], [0, 0, 1, 1], [], []>, precision = #tpu.contract_precision<fp32>} : vector<8x128xf32>, vector<128x128xf32>, vector<8x128xf32> -> vector<8x128xf32>
    %c0_1 = arith.constant 0 : index
    %c0_2 = arith.constant 0 : index
    %61 = vector.load %arg3[%c0_1, %c0_2] : memref<8x128xf32, #tpu.memory_space<vmem>>, vector<8x128xf32>
    %62 = arith.addf %60, %61 : vector<8x128xf32>
    %c0_3 = arith.constant 0 : index
    %c0_4 = arith.constant 0 : index
    %63 = vector.load %arg4[%c0_3, %c0_4] : memref<8x128xf32, #tpu.memory_space<vmem>>, vector<8x128xf32>
    tpu.vector_store %arg4[%c0_3, %c0_4], %62 {strides = array<i32>} : memref<8x128xf32, #tpu.memory_space<vmem>>, vector<8x128xf32>,
    return
  }
  func.func @transform_0(%arg0: i32, %arg1: memref<16xi32, #tpu.memory_space<smem>>) -> (i32, i32) {
    %c0_i32 = arith.constant 0 : i32
    %c0_i32_0 = arith.constant 0 : i32
    %c0_i32_1 = arith.constant 0 : i32
    return %c0_i32, %c0_i32_0 : i32, i32
  }
  func.func @transform_1(%arg0: i32, %arg1: memref<16xi32, #tpu.memory_space<smem>>) -> (i32, i32) {
    %c0_i32 = arith.constant 0 : i32
    %c0_i32_0 = arith.constant 0 : i32
    %c0_i32_1 = arith.constant 0 : i32
    return %c0_i32, %c0_i32_0 : i32, i32
  }
  func.func @transform_2(%arg0: i32, %arg1: memref<16xi32, #tpu.memory_space<smem>>) -> (i32, i32) {
    %c0_i32 = arith.constant 0 : i32
    %c0_i32_0 = arith.constant 0 : i32
    return %arg0, %c0_i32 : i32, i32
  }
}

module attributes {stable_mosaic.version = 11 : i64} {
  func.func @_ffn_block_kernel(%arg0: i32, %arg1: memref<8x128xf32, #tpu.memory_space<vmem>>, %arg2: memref<128x512xbf16, #tpu.memory_space<vmem>>, %arg3: memref<1x512xf32, #tpu.memory_space<vmem>>, %arg4: memref<512x128xbf16, #tpu.memory_space<vmem>>, %arg5: memref<1x128xf32, #tpu.memory_space<vmem>>, %arg6: memref<1x128xf32, #tpu.memory_space<vmem>>, %arg7: memref<1x128xf32, #tpu.memory_space<vmem>>, %arg8: memref<8x128xf32, #tpu.memory_space<vmem>>) attributes {dimension_semantics = [#tpu.dimension_semantics<parallel>], iteration_bounds = array<i64: 2>, scalar_prefetch = 0 : i64, scratch_operands = 0 : i64, tpu.core_type = #tpu.core_type<tc>, window_params = [{transform_indices = @transform_0, window_bounds = array<i64: 8, 128>}, {pipeline_mode = #tpu.pipeline_mode<synchronous>, transform_indices = @transform_1, window_bounds = array<i64: 128, 512>}, {pipeline_mode = #tpu.pipeline_mode<synchronous>, transform_indices = @transform_2, window_bounds = array<i64: 1, 512>}, {pipeline_mode = #tpu.pipeline_mode<synchronous>, transform_indices = @transform_3, window_bounds = array<i64: 512, 128>}, {pipeline_mode = #tpu.pipeline_mode<synchronous>, transform_indices = @transform_4, window_bounds = array<i64: 1, 128>}, {pipeline_mode = #tpu.pipeline_mode<synchronous>, transform_indices = @transform_5, window_bounds = array<i64: 1, 128>}, {pipeline_mode = #tpu.pipeline_mode<synchronous>, transform_indices = @transform_6, window_bounds = array<i64: 1, 128>}, {transform_indices = @transform_7, window_bounds = array<i64: 8, 128>}]} {
    %c0 = arith.constant 0 : index
    %c0_0 = arith.constant 0 : index
    %0 = vector.load %arg1[%c0, %c0_0] : memref<8x128xf32, #tpu.memory_space<vmem>>, vector<8x128xf32>
    %1 = arith.truncf %0 : vector<8x128xf32> to vector<8x128xbf16>
    %c0_1 = arith.constant 0 : index
    %c0_2 = arith.constant 0 : index
    %2 = vector.load %arg2[%c0_1, %c0_2] : memref<128x512xbf16, #tpu.memory_space<vmem>>, vector<128x512xbf16>
    %cst = arith.constant dense<0.000000e+00> : vector<8x512xf32>
    %3 = tpu.matmul %1, %2, %cst {dimension_numbers = #tpu.dot_dimension_numbers<[1], [0], [0], [1], [0, 0, 1, 1], [], []>} : vector<8x128xbf16>, vector<128x512xbf16>, vector<8x512xf32> -> vector<8x512xf32>
    %c0_3 = arith.constant 0 : index
    %c0_4 = arith.constant 0 : index
    %4 = vector.load %arg3[%c0_3, %c0_4] : memref<1x512xf32, #tpu.memory_space<vmem>>, vector<1x512xf32>
    %5 = vector.broadcast %4 : vector<1x512xf32> to vector<8x512xf32>
    %6 = arith.addf %3, %5 : vector<8x512xf32>
    %cst_5 = arith.constant 0.000000e+00 : f32
    %7 = vector.broadcast %cst_5 : f32 to vector<8x512xf32>
    %8 = arith.maximumf %6, %7 : vector<8x512xf32>
    %9 = arith.truncf %8 : vector<8x512xf32> to vector<8x512xbf16>
    %c0_6 = arith.constant 0 : index
    %c0_7 = arith.constant 0 : index
    %10 = vector.load %arg4[%c0_6, %c0_7] : memref<512x128xbf16, #tpu.memory_space<vmem>>, vector<512x128xbf16>
    %cst_8 = arith.constant dense<0.000000e+00> : vector<8x128xf32>
    %11 = tpu.matmul %9, %10, %cst_8 {dimension_numbers = #tpu.dot_dimension_numbers<[1], [0], [0], [1], [0, 0, 1, 1], [], []>} : vector<8x512xbf16>, vector<512x128xbf16>, vector<8x128xf32> -> vector<8x128xf32>
    %c0_9 = arith.constant 0 : index
    %c0_10 = arith.constant 0 : index
    %12 = vector.load %arg5[%c0_9, %c0_10] : memref<1x128xf32, #tpu.memory_space<vmem>>, vector<1x128xf32>
    %13 = vector.broadcast %12 : vector<1x128xf32> to vector<8x128xf32>
    %14 = arith.addf %11, %13 : vector<8x128xf32>
    %15 = arith.addf %0, %14 : vector<8x128xf32>
    %cst_11 = arith.constant dense<0.000000e+00> : vector<8xf32>
    %16 = vector.multi_reduction <add>, %15, %cst_11 [1] : vector<8x128xf32> to vector<8xf32>
    %17 = vector.shape_cast %16 : vector<8xf32> to vector<8x1xf32>
    %cst_12 = arith.constant 1.280000e+02 : f32
    %18 = vector.broadcast %cst_12 : f32 to vector<8x1xf32>
    %19 = arith.divf %17, %18 : vector<8x1xf32>
    %20 = vector.broadcast %19 : vector<8x1xf32> to vector<8x128xf32>
    %21 = arith.subf %15, %20 : vector<8x128xf32>
    %22 = arith.mulf %21, %21 : vector<8x128xf32>
    %cst_13 = arith.constant dense<0.000000e+00> : vector<8xf32>
    %23 = vector.multi_reduction <add>, %22, %cst_13 [1] : vector<8x128xf32> to vector<8xf32>
    %24 = vector.shape_cast %23 : vector<8xf32> to vector<8x1xf32>
    %cst_14 = arith.constant 1.280000e+02 : f32
    %25 = vector.broadcast %cst_14 : f32 to vector<8x1xf32>
    %26 = arith.divf %24, %25 : vector<8x1xf32>
    %cst_15 = arith.constant 9.99999974E-6 : f32
    %27 = vector.broadcast %cst_15 : f32 to vector<8x1xf32>
    %28 = arith.addf %26, %27 : vector<8x1xf32>
    %29 = math.rsqrt %28 : vector<8x1xf32>
    %30 = vector.broadcast %29 : vector<8x1xf32> to vector<8x128xf32>
    %31 = arith.mulf %21, %30 : vector<8x128xf32>
    %c0_16 = arith.constant 0 : index
    %c0_17 = arith.constant 0 : index
    %32 = vector.load %arg6[%c0_16, %c0_17] : memref<1x128xf32, #tpu.memory_space<vmem>>, vector<1x128xf32>
    %33 = vector.broadcast %32 : vector<1x128xf32> to vector<8x128xf32>
    %34 = arith.mulf %31, %33 : vector<8x128xf32>
    %c0_18 = arith.constant 0 : index
    %c0_19 = arith.constant 0 : index
    %35 = vector.load %arg7[%c0_18, %c0_19] : memref<1x128xf32, #tpu.memory_space<vmem>>, vector<1x128xf32>
    %36 = vector.broadcast %35 : vector<1x128xf32> to vector<8x128xf32>
    %37 = arith.addf %34, %36 : vector<8x128xf32>
    %c0_20 = arith.constant 0 : index
    %c0_21 = arith.constant 0 : index
    %38 = vector.load %arg8[%c0_20, %c0_21] : memref<8x128xf32, #tpu.memory_space<vmem>>, vector<8x128xf32>
    tpu.vector_store %arg8[%c0_20, %c0_21], %37 {strides = array<i32>} : memref<8x128xf32, #tpu.memory_space<vmem>>, vector<8x128xf32>,
    return
  }
  func.func @transform_0(%arg0: i32) -> (i32, i32) {
    %c0_i32 = arith.constant 0 : i32
    %c0_i32_0 = arith.constant 0 : i32
    return %arg0, %c0_i32 : i32, i32
  }
  func.func @transform_1(%arg0: i32) -> (i32, i32) {
    %c0_i32 = arith.constant 0 : i32
    %c0_i32_0 = arith.constant 0 : i32
    %c0_i32_1 = arith.constant 0 : i32
    return %c0_i32, %c0_i32_0 : i32, i32
  }
  func.func @transform_2(%arg0: i32) -> (i32, i32) {
    %c0_i32 = arith.constant 0 : i32
    %c0_i32_0 = arith.constant 0 : i32
    %c0_i32_1 = arith.constant 0 : i32
    return %c0_i32, %c0_i32_0 : i32, i32
  }
  func.func @transform_3(%arg0: i32) -> (i32, i32) {
    %c0_i32 = arith.constant 0 : i32
    %c0_i32_0 = arith.constant 0 : i32
    %c0_i32_1 = arith.constant 0 : i32
    return %c0_i32, %c0_i32_0 : i32, i32
  }
  func.func @transform_4(%arg0: i32) -> (i32, i32) {
    %c0_i32 = arith.constant 0 : i32
    %c0_i32_0 = arith.constant 0 : i32
    %c0_i32_1 = arith.constant 0 : i32
    return %c0_i32, %c0_i32_0 : i32, i32
  }
  func.func @transform_5(%arg0: i32) -> (i32, i32) {
    %c0_i32 = arith.constant 0 : i32
    %c0_i32_0 = arith.constant 0 : i32
    %c0_i32_1 = arith.constant 0 : i32
    return %c0_i32, %c0_i32_0 : i32, i32
  }
  func.func @transform_6(%arg0: i32) -> (i32, i32) {
    %c0_i32 = arith.constant 0 : i32
    %c0_i32_0 = arith.constant 0 : i32
    %c0_i32_1 = arith.constant 0 : i32
    return %c0_i32, %c0_i32_0 : i32, i32
  }
  func.func @transform_7(%arg0: i32) -> (i32, i32) {
    %c0_i32 = arith.constant 0 : i32
    %c0_i32_0 = arith.constant 0 : i32
    return %arg0, %c0_i32 : i32, i32
  }
}

module attributes {stable_mosaic.version = 11 : i64} {
  func.func @_attn_block_kernel(%arg0: i32, %arg1: memref<8x128xf32, #tpu.memory_space<vmem>>, %arg2: memref<128x384xbf16, #tpu.memory_space<vmem>>, %arg3: memref<1x384xf32, #tpu.memory_space<vmem>>, %arg4: memref<128x128xbf16, #tpu.memory_space<vmem>>, %arg5: memref<1x128xf32, #tpu.memory_space<vmem>>, %arg6: memref<1x128xf32, #tpu.memory_space<vmem>>, %arg7: memref<1x128xf32, #tpu.memory_space<vmem>>, %arg8: memref<8x128xf32, #tpu.memory_space<vmem>>) attributes {dimension_semantics = [#tpu.dimension_semantics<parallel>], iteration_bounds = array<i64: 2>, scalar_prefetch = 0 : i64, scratch_operands = 0 : i64, tpu.core_type = #tpu.core_type<tc>, window_params = [{transform_indices = @transform_0, window_bounds = array<i64: 8, 128>}, {pipeline_mode = #tpu.pipeline_mode<synchronous>, transform_indices = @transform_1, window_bounds = array<i64: 128, 384>}, {pipeline_mode = #tpu.pipeline_mode<synchronous>, transform_indices = @transform_2, window_bounds = array<i64: 1, 384>}, {pipeline_mode = #tpu.pipeline_mode<synchronous>, transform_indices = @transform_3, window_bounds = array<i64: 128, 128>}, {pipeline_mode = #tpu.pipeline_mode<synchronous>, transform_indices = @transform_4, window_bounds = array<i64: 1, 128>}, {pipeline_mode = #tpu.pipeline_mode<synchronous>, transform_indices = @transform_5, window_bounds = array<i64: 1, 128>}, {pipeline_mode = #tpu.pipeline_mode<synchronous>, transform_indices = @transform_6, window_bounds = array<i64: 1, 128>}, {transform_indices = @transform_7, window_bounds = array<i64: 8, 128>}]} {
    %c0 = arith.constant 0 : index
    %c0_0 = arith.constant 0 : index
    %0 = vector.load %arg1[%c0, %c0_0] : memref<8x128xf32, #tpu.memory_space<vmem>>, vector<8x128xf32>
    %1 = arith.truncf %0 : vector<8x128xf32> to vector<8x128xbf16>
    %c0_1 = arith.constant 0 : index
    %c0_2 = arith.constant 0 : index
    %2 = vector.load %arg2[%c0_1, %c0_2] : memref<128x384xbf16, #tpu.memory_space<vmem>>, vector<128x384xbf16>
    %cst = arith.constant dense<0.000000e+00> : vector<8x384xf32>
    %3 = tpu.matmul %1, %2, %cst {dimension_numbers = #tpu.dot_dimension_numbers<[1], [0], [0], [1], [0, 0, 1, 1], [], []>} : vector<8x128xbf16>, vector<128x384xbf16>, vector<8x384xf32> -> vector<8x384xf32>
    %c0_3 = arith.constant 0 : index
    %c0_4 = arith.constant 0 : index
    %4 = vector.load %arg3[%c0_3, %c0_4] : memref<1x384xf32, #tpu.memory_space<vmem>>, vector<1x384xf32>
    %5 = vector.broadcast %4 : vector<1x384xf32> to vector<8x384xf32>
    %6 = arith.addf %3, %5 : vector<8x384xf32>
    %7 = vector.extract_strided_slice %6 {offsets = [0, 0], sizes = [8, 64], strides = [1, 1]} : vector<8x384xf32> to vector<8x64xf32>
    %cst_5 = arith.constant 1.250000e-01 : f32
    %8 = vector.broadcast %cst_5 : f32 to vector<8x64xf32>
    %9 = arith.mulf %7, %8 : vector<8x64xf32>
    %10 = arith.truncf %9 : vector<8x64xf32> to vector<8x64xbf16>
    %11 = vector.extract_strided_slice %6 {offsets = [0, 128], sizes = [8, 64], strides = [1, 1]} : vector<8x384xf32> to vector<8x64xf32>
    %12 = arith.truncf %11 : vector<8x64xf32> to vector<8x64xbf16>
    %13 = vector.extract_strided_slice %6 {offsets = [0, 256], sizes = [8, 64], strides = [1, 1]} : vector<8x384xf32> to vector<8x64xf32>
    %14 = arith.truncf %13 : vector<8x64xf32> to vector<8x64xbf16>
    %cst_6 = arith.constant dense<0.000000e+00> : vector<8x8xf32>
    %15 = tpu.matmul %10, %12, %cst_6 {dimension_numbers = #tpu.dot_dimension_numbers<[1], [1], [0], [0], [0, 0, 1, 0], [], []>} : vector<8x64xbf16>, vector<8x64xbf16>, vector<8x8xf32> -> vector<8x8xf32>
    %cst_7 = arith.constant dense<0xFF800000> : vector<8xf32>
    %16 = vector.multi_reduction <maximumf>, %15, %cst_7 [1] : vector<8x8xf32> to vector<8xf32>
    %17 = vector.shape_cast %16 : vector<8xf32> to vector<8x1xf32>
    %18 = vector.broadcast %17 : vector<8x1xf32> to vector<8x8xf32>
    %19 = arith.subf %15, %18 : vector<8x8xf32>
    %20 = math.exp %19 : vector<8x8xf32>
    %cst_8 = arith.constant dense<0.000000e+00> : vector<8xf32>
    %21 = vector.multi_reduction <add>, %20, %cst_8 [1] : vector<8x8xf32> to vector<8xf32>
    %22 = vector.shape_cast %21 : vector<8xf32> to vector<8x1xf32>
    %23 = tpu.reciprocal %22 : vector<8x1xf32> -> vector<8x1xf32>
    %24 = vector.broadcast %23 : vector<8x1xf32> to vector<8x8xf32>
    %25 = arith.mulf %20, %24 : vector<8x8xf32>
    %26 = arith.truncf %25 : vector<8x8xf32> to vector<8x8xbf16>
    %cst_9 = arith.constant dense<0.000000e+00> : vector<8x64xf32>
    %27 = tpu.matmul %26, %14, %cst_9 {dimension_numbers = #tpu.dot_dimension_numbers<[1], [0], [0], [1], [0, 0, 1, 1], [], []>} : vector<8x8xbf16>, vector<8x64xbf16>, vector<8x64xf32> -> vector<8x64xf32>
    %28 = vector.extract_strided_slice %6 {offsets = [0, 64], sizes = [8, 64], strides = [1, 1]} : vector<8x384xf32> to vector<8x64xf32>
    %cst_10 = arith.constant 1.250000e-01 : f32
    %29 = vector.broadcast %cst_10 : f32 to vector<8x64xf32>
    %30 = arith.mulf %28, %29 : vector<8x64xf32>
    %31 = arith.truncf %30 : vector<8x64xf32> to vector<8x64xbf16>
    %32 = vector.extract_strided_slice %6 {offsets = [0, 192], sizes = [8, 64], strides = [1, 1]} : vector<8x384xf32> to vector<8x64xf32>
    %33 = arith.truncf %32 : vector<8x64xf32> to vector<8x64xbf16>
    %34 = vector.extract_strided_slice %6 {offsets = [0, 320], sizes = [8, 64], strides = [1, 1]} : vector<8x384xf32> to vector<8x64xf32>
    %35 = arith.truncf %34 : vector<8x64xf32> to vector<8x64xbf16>
    %cst_11 = arith.constant dense<0.000000e+00> : vector<8x8xf32>
    %36 = tpu.matmul %31, %33, %cst_11 {dimension_numbers = #tpu.dot_dimension_numbers<[1], [1], [0], [0], [0, 0, 1, 0], [], []>} : vector<8x64xbf16>, vector<8x64xbf16>, vector<8x8xf32> -> vector<8x8xf32>
    %cst_12 = arith.constant dense<0xFF800000> : vector<8xf32>
    %37 = vector.multi_reduction <maximumf>, %36, %cst_12 [1] : vector<8x8xf32> to vector<8xf32>
    %38 = vector.shape_cast %37 : vector<8xf32> to vector<8x1xf32>
    %39 = vector.broadcast %38 : vector<8x1xf32> to vector<8x8xf32>
    %40 = arith.subf %36, %39 : vector<8x8xf32>
    %41 = math.exp %40 : vector<8x8xf32>
    %cst_13 = arith.constant dense<0.000000e+00> : vector<8xf32>
    %42 = vector.multi_reduction <add>, %41, %cst_13 [1] : vector<8x8xf32> to vector<8xf32>
    %43 = vector.shape_cast %42 : vector<8xf32> to vector<8x1xf32>
    %44 = tpu.reciprocal %43 : vector<8x1xf32> -> vector<8x1xf32>
    %45 = vector.broadcast %44 : vector<8x1xf32> to vector<8x8xf32>
    %46 = arith.mulf %41, %45 : vector<8x8xf32>
    %47 = arith.truncf %46 : vector<8x8xf32> to vector<8x8xbf16>
    %cst_14 = arith.constant dense<0.000000e+00> : vector<8x64xf32>
    %48 = tpu.matmul %47, %35, %cst_14 {dimension_numbers = #tpu.dot_dimension_numbers<[1], [0], [0], [1], [0, 0, 1, 1], [], []>} : vector<8x8xbf16>, vector<8x64xbf16>, vector<8x64xf32> -> vector<8x64xf32>
    %49 = tpu.concatenate %27, %48 in 1 : vector<8x64xf32>, vector<8x64xf32> -> vector<8x128xf32>
    %50 = arith.truncf %49 : vector<8x128xf32> to vector<8x128xbf16>
    %c0_15 = arith.constant 0 : index
    %c0_16 = arith.constant 0 : index
    %51 = vector.load %arg4[%c0_15, %c0_16] : memref<128x128xbf16, #tpu.memory_space<vmem>>, vector<128x128xbf16>
    %cst_17 = arith.constant dense<0.000000e+00> : vector<8x128xf32>
    %52 = tpu.matmul %50, %51, %cst_17 {dimension_numbers = #tpu.dot_dimension_numbers<[1], [0], [0], [1], [0, 0, 1, 1], [], []>} : vector<8x128xbf16>, vector<128x128xbf16>, vector<8x128xf32> -> vector<8x128xf32>
    %c0_18 = arith.constant 0 : index
    %c0_19 = arith.constant 0 : index
    %53 = vector.load %arg5[%c0_18, %c0_19] : memref<1x128xf32, #tpu.memory_space<vmem>>, vector<1x128xf32>
    %54 = vector.broadcast %53 : vector<1x128xf32> to vector<8x128xf32>
    %55 = arith.addf %52, %54 : vector<8x128xf32>
    %56 = arith.addf %0, %55 : vector<8x128xf32>
    %cst_20 = arith.constant dense<0.000000e+00> : vector<8xf32>
    %57 = vector.multi_reduction <add>, %56, %cst_20 [1] : vector<8x128xf32> to vector<8xf32>
    %58 = vector.shape_cast %57 : vector<8xf32> to vector<8x1xf32>
    %cst_21 = arith.constant 1.280000e+02 : f32
    %59 = vector.broadcast %cst_21 : f32 to vector<8x1xf32>
    %60 = arith.divf %58, %59 : vector<8x1xf32>
    %61 = vector.broadcast %60 : vector<8x1xf32> to vector<8x128xf32>
    %62 = arith.subf %56, %61 : vector<8x128xf32>
    %63 = arith.mulf %62, %62 : vector<8x128xf32>
    %cst_22 = arith.constant dense<0.000000e+00> : vector<8xf32>
    %64 = vector.multi_reduction <add>, %63, %cst_22 [1] : vector<8x128xf32> to vector<8xf32>
    %65 = vector.shape_cast %64 : vector<8xf32> to vector<8x1xf32>
    %cst_23 = arith.constant 1.280000e+02 : f32
    %66 = vector.broadcast %cst_23 : f32 to vector<8x1xf32>
    %67 = arith.divf %65, %66 : vector<8x1xf32>
    %cst_24 = arith.constant 9.99999974E-6 : f32
    %68 = vector.broadcast %cst_24 : f32 to vector<8x1xf32>
    %69 = arith.addf %67, %68 : vector<8x1xf32>
    %70 = math.rsqrt %69 : vector<8x1xf32>
    %71 = vector.broadcast %70 : vector<8x1xf32> to vector<8x128xf32>
    %72 = arith.mulf %62, %71 : vector<8x128xf32>
    %c0_25 = arith.constant 0 : index
    %c0_26 = arith.constant 0 : index
    %73 = vector.load %arg6[%c0_25, %c0_26] : memref<1x128xf32, #tpu.memory_space<vmem>>, vector<1x128xf32>
    %74 = vector.broadcast %73 : vector<1x128xf32> to vector<8x128xf32>
    %75 = arith.mulf %72, %74 : vector<8x128xf32>
    %c0_27 = arith.constant 0 : index
    %c0_28 = arith.constant 0 : index
    %76 = vector.load %arg7[%c0_27, %c0_28] : memref<1x128xf32, #tpu.memory_space<vmem>>, vector<1x128xf32>
    %77 = vector.broadcast %76 : vector<1x128xf32> to vector<8x128xf32>
    %78 = arith.addf %75, %77 : vector<8x128xf32>
    %c0_29 = arith.constant 0 : index
    %c0_30 = arith.constant 0 : index
    %79 = vector.load %arg8[%c0_29, %c0_30] : memref<8x128xf32, #tpu.memory_space<vmem>>, vector<8x128xf32>
    tpu.vector_store %arg8[%c0_29, %c0_30], %78 {strides = array<i32>} : memref<8x128xf32, #tpu.memory_space<vmem>>, vector<8x128xf32>,
    return
  }
  func.func @transform_0(%arg0: i32) -> (i32, i32) {
    %c0_i32 = arith.constant 0 : i32
    %c0_i32_0 = arith.constant 0 : i32
    return %arg0, %c0_i32 : i32, i32
  }
  func.func @transform_1(%arg0: i32) -> (i32, i32) {
    %c0_i32 = arith.constant 0 : i32
    %c0_i32_0 = arith.constant 0 : i32
    %c0_i32_1 = arith.constant 0 : i32
    return %c0_i32, %c0_i32_0 : i32, i32
  }
  func.func @transform_2(%arg0: i32) -> (i32, i32) {
    %c0_i32 = arith.constant 0 : i32
    %c0_i32_0 = arith.constant 0 : i32
    %c0_i32_1 = arith.constant 0 : i32
    return %c0_i32, %c0_i32_0 : i32, i32
  }
  func.func @transform_3(%arg0: i32) -> (i32, i32) {
    %c0_i32 = arith.constant 0 : i32
    %c0_i32_0 = arith.constant 0 : i32
    %c0_i32_1 = arith.constant 0 : i32
    return %c0_i32, %c0_i32_0 : i32, i32
  }
  func.func @transform_4(%arg0: i32) -> (i32, i32) {
    %c0_i32 = arith.constant 0 : i32
    %c0_i32_0 = arith.constant 0 : i32
    %c0_i32_1 = arith.constant 0 : i32
    return %c0_i32, %c0_i32_0 : i32, i32
  }
  func.func @transform_5(%arg0: i32) -> (i32, i32) {
    %c0_i32 = arith.constant 0 : i32
    %c0_i32_0 = arith.constant 0 : i32
    %c0_i32_1 = arith.constant 0 : i32
    return %c0_i32, %c0_i32_0 : i32, i32
  }
  func.func @transform_6(%arg0: i32) -> (i32, i32) {
    %c0_i32 = arith.constant 0 : i32
    %c0_i32_0 = arith.constant 0 : i32
    %c0_i32_1 = arith.constant 0 : i32
    return %c0_i32, %c0_i32_0 : i32, i32
  }
  func.func @transform_7(%arg0: i32) -> (i32, i32) {
    %c0_i32 = arith.constant 0 : i32
    %c0_i32_0 = arith.constant 0 : i32
    return %arg0, %c0_i32 : i32, i32
  }
}

module attributes {stable_mosaic.version = 11 : i64} {
  func.func @_linear_kernel(%arg0: i32, %arg1: i32, %arg2: i32, %arg3: memref<8x128xf32, #tpu.memory_space<vmem>>, %arg4: memref<128x128xbf16, #tpu.memory_space<vmem>>, %arg5: memref<1x128xf32, #tpu.memory_space<vmem>>, %arg6: memref<8x128xf32, #tpu.memory_space<vmem>>, %arg7: memref<8x128xf32, #tpu.memory_space<vmem>>) attributes {dimension_semantics = [#tpu.dimension_semantics<parallel>, #tpu.dimension_semantics<parallel>, #tpu.dimension_semantics<arbitrary>], iteration_bounds = array<i64: 2, 1, 1>, scalar_prefetch = 0 : i64, scratch_operands = 1 : i64, tpu.core_type = #tpu.core_type<tc>, window_params = [{transform_indices = @transform_0, window_bounds = array<i64: 8, 128>}, {transform_indices = @transform_1, window_bounds = array<i64: 128, 128>}, {transform_indices = @transform_2, window_bounds = array<i64: 1, 128>}, {transform_indices = @transform_3, window_bounds = array<i64: 8, 128>}]} {
    %c0_i32 = arith.constant 0 : i32
    %0 = arith.cmpi eq, %arg2, %c0_i32 : i32
    %1 = arith.extui %0 : i1 to i32
    %c0_i32_0 = arith.constant 0 : i32
    %2 = arith.cmpi ne, %1, %c0_i32_0 : i32
    scf.if %2 {
      %cst_10 = arith.constant 0.000000e+00 : f32
      %13 = vector.broadcast %cst_10 : f32 to vector<8x128xf32>
      %c0_11 = arith.constant 0 : index
      %c0_12 = arith.constant 0 : index
      %14 = vector.load %arg7[%c0_11, %c0_12] : memref<8x128xf32, #tpu.memory_space<vmem>>, vector<8x128xf32>
      tpu.vector_store %arg7[%c0_11, %c0_12], %13 {strides = array<i32>} : memref<8x128xf32, #tpu.memory_space<vmem>>, vector<8x128xf32>,
    } else {
    }
    %c0 = arith.constant 0 : index
    %c0_1 = arith.constant 0 : index
    %3 = vector.load %arg7[%c0, %c0_1] : memref<8x128xf32, #tpu.memory_space<vmem>>, vector<8x128xf32>
    %c0_2 = arith.constant 0 : index
    %c0_3 = arith.constant 0 : index
    %4 = vector.load %arg3[%c0_2, %c0_3] : memref<8x128xf32, #tpu.memory_space<vmem>>, vector<8x128xf32>
    %5 = arith.truncf %4 : vector<8x128xf32> to vector<8x128xbf16>
    %c0_4 = arith.constant 0 : index
    %c0_5 = arith.constant 0 : index
    %6 = vector.load %arg4[%c0_4, %c0_5] : memref<128x128xbf16, #tpu.memory_space<vmem>>, vector<128x128xbf16>
    %cst = arith.constant dense<0.000000e+00> : vector<8x128xf32>
    %7 = tpu.matmul %5, %6, %cst {dimension_numbers = #tpu.dot_dimension_numbers<[1], [0], [0], [1], [0, 0, 1, 1], [], []>} : vector<8x128xbf16>, vector<128x128xbf16>, vector<8x128xf32> -> vector<8x128xf32>
    %8 = arith.addf %3, %7 : vector<8x128xf32>
    %c0_6 = arith.constant 0 : index
    %c0_7 = arith.constant 0 : index
    %9 = vector.load %arg7[%c0_6, %c0_7] : memref<8x128xf32, #tpu.memory_space<vmem>>, vector<8x128xf32>
    tpu.vector_store %arg7[%c0_6, %c0_7], %8 {strides = array<i32>} : memref<8x128xf32, #tpu.memory_space<vmem>>, vector<8x128xf32>,
    %c0_i32_8 = arith.constant 0 : i32
    %10 = arith.cmpi eq, %arg2, %c0_i32_8 : i32
    %11 = arith.extui %10 : i1 to i32
    %c0_i32_9 = arith.constant 0 : i32
    %12 = arith.cmpi ne, %11, %c0_i32_9 : i32
    scf.if %12 {
      %c0_10 = arith.constant 0 : index
      %c0_11 = arith.constant 0 : index
      %13 = vector.load %arg7[%c0_10, %c0_11] : memref<8x128xf32, #tpu.memory_space<vmem>>, vector<8x128xf32>
      %c0_12 = arith.constant 0 : index
      %c0_13 = arith.constant 0 : index
      %14 = vector.load %arg5[%c0_12, %c0_13] : memref<1x128xf32, #tpu.memory_space<vmem>>, vector<1x128xf32>
      %15 = vector.broadcast %14 : vector<1x128xf32> to vector<8x128xf32>
      %16 = arith.addf %13, %15 : vector<8x128xf32>
      %c0_14 = arith.constant 0 : index
      %c0_15 = arith.constant 0 : index
      %17 = vector.load %arg6[%c0_14, %c0_15] : memref<8x128xf32, #tpu.memory_space<vmem>>, vector<8x128xf32>
      tpu.vector_store %arg6[%c0_14, %c0_15], %16 {strides = array<i32>} : memref<8x128xf32, #tpu.memory_space<vmem>>, vector<8x128xf32>,
    } else {
    }
    return
  }
  func.func @transform_0(%arg0: i32, %arg1: i32, %arg2: i32) -> (i32, i32) {
    %c0_i32 = arith.constant 0 : i32
    return %arg0, %arg2 : i32, i32
  }
  func.func @transform_1(%arg0: i32, %arg1: i32, %arg2: i32) -> (i32, i32) {
    %c0_i32 = arith.constant 0 : i32
    return %arg2, %arg1 : i32, i32
  }
  func.func @transform_2(%arg0: i32, %arg1: i32, %arg2: i32) -> (i32, i32) {
    %c0_i32 = arith.constant 0 : i32
    %c0_i32_0 = arith.constant 0 : i32
    return %c0_i32, %arg1 : i32, i32
  }
  func.func @transform_3(%arg0: i32, %arg1: i32, %arg2: i32) -> (i32, i32) {
    %c0_i32 = arith.constant 0 : i32
    return %arg0, %arg1 : i32, i32
  }
}

</mosaic_0001>

<llo_original>
// kernel: simple_llm_forward.6
$region0: #{simple_llm_forward.6}
  #allocation0 [shape = 'u32[]', space=smem, size = 0x4, offset = 0x4, fixed_abs, tag = 'smem constant byte address 0x4 - core index']
  #allocation1 [shape = 'u32[144,128]{1,0:T(1,128)}', space=vmem, size = 0x12000, scoped, tag = 'internal scratch']
  #allocation2 [shape = 's32[1]{0}', space=sflag, size = 0x4, scoped, tag = 'scoped memory for simple_llm_forward.6']
  #allocation3 [shape = 'u8[512]{0}', space=smem, size = 0x200, scoped, tag = 'prefetched SMEM operand 0']
  %s0 = inlined_call_operand.vmem [shape: s32[16], index: 0, kind: input, shape index: {}]
  %s1 = inlined_call_operand.vmem [shape: f32[128,128], index: 1, kind: input, shape index: {}]
  %s2 = inlined_call_operand.vmem [shape: f32[8,128], index: 2, kind: input, shape index: {}]
  %s3 = inlined_call_operand.vmem [shape: f32[16,128], index: 3, kind: output, shape index: {}]
  %s4 = sld [smem:[#allocation0]]
  $region41: #{simple_llm_forward.6} parent=0
    _
  %s6 = ssub.s32 1, %s4
  %s7 = scalar_select 0, %s6, %s4
  %s8 = sshll.u32 %s0, 4
  %s9 = int_to_ptr.vmem [resolvable:$true] %s8
  %11 = dma.vmem_to_smem %s9, 16, [#allocation3], [#allocation2]
  %12 = dma.done [#allocation2], 16
  %13 = sfence
  loop: start=0, step=1, limit=4
  $region2: #{simple_llm_forward.6} parent=0 // loop_pre_header
    _
  $region3: #{simple_llm_forward.6} parent=0 // loop_header
    %s15 = sphi 0, %s19
    %p16 = scmp.ge.s32.totalorder %s15, 4
    %s23 = sphi 0, %s23
    %s25 = sphi 0, %s23
    %s26 = sphi 0, %s25
    %s40 = sphi 0, %s26
    %s44 = sphi 0, %s44
    %s46 = sphi 0, %s44
    %s47 = sphi 0, %s46
    %s61 = sphi 0, %s47
    %s67 = sphi 0, %s69
    %s70 = sphi 0, %s67
    %s71 = sphi 0, %s70
    %s87 = sphi 0, %s71
  $region4: #{simple_llm_forward.6} parent=0 // loop_header_branch
    %18 = sbr.rel (%p16) target = $region8
  $region5: #{simple_llm_forward.6} parent=0 // loop_body
    %s20 = ssub.s32 %s15, 1
    %s21 = ssub.s32 %s15, 2
    %s22 = sadd.s32 %s15, 1
    %s24 = sadd.s32 %s23, 1
    %p27 = scmp.eq.s32.totalorder %s15, 1
    %p28 = scmp.ne.s32.totalorder %s23, %s25
    %p29 = scmp.eq.s32.totalorder %s15, 0
    %p30 = por %p28, %p29
    %p31 = scmp.ne.s32.totalorder %s23, %s25
    %p32 = scmp.eq.s32.totalorder %s20, 1
    %p33 = por %p31, %p32
    %p34 = scmp.ne.s32.totalorder %s25, %s26
    %p35 = scmp.eq.s32.totalorder %s20, 0
    %p36 = por %p34, %p35
    %p37 = scmp.ne.s32.totalorder %s25, %s26
    %p38 = scmp.eq.s32.totalorder %s21, 1
    %p39 = por %p37, %p38
    %p41 = scmp.ne.s32.totalorder %s26, %s40
    %p42 = scmp.eq.s32.totalorder %s21, 0
    %p43 = por %p41, %p42
    %s45 = sadd.s32 %s44, 1
    %p48 = scmp.eq.s32.totalorder %s15, 1
    %p49 = scmp.ne.s32.totalorder %s44, %s46
    %p50 = scmp.eq.s32.totalorder %s15, 0
    %p51 = por %p49, %p50
    %p52 = scmp.ne.s32.totalorder %s44, %s46
    %p53 = scmp.eq.s32.totalorder %s20, 1
    %p54 = por %p52, %p53
    %p55 = scmp.ne.s32.totalorder %s46, %s47
    %p56 = scmp.eq.s32.totalorder %s20, 0
    %p57 = por %p55, %p56
    %p58 = scmp.ne.s32.totalorder %s46, %s47
    %p59 = scmp.eq.s32.totalorder %s21, 1
    %p60 = por %p58, %p59
    %p62 = scmp.ne.s32.totalorder %s47, %s61
    %p63 = scmp.eq.s32.totalorder %s21, 0
    %p64 = por %p62, %p63
    %s65 = ssub.s32 %s15, %s22
    %p66 = scmp.eq.s32.totalorder %s65, 0
    %s68 = sadd.s32 %s67, 1
    %s69 = scalar_select %p66, %s67, %s68
    %p72 = pneg %p66
    %p73 = scmp.eq.s32.totalorder %s15, 1
    %p74 = por %p72, %p73
    %p75 = scmp.ne.s32.totalorder %s67, %s70
    %p76 = scmp.eq.s32.totalorder %s15, 0
    %p77 = por %p75, %p76
    %p78 = scmp.ne.s32.totalorder %s67, %s70
    %p79 = scmp.eq.s32.totalorder %s20, 1
    %p80 = por %p78, %p79
    %p81 = scmp.ne.s32.totalorder %s70, %s71
    %p82 = scmp.eq.s32.totalorder %s20, 0
    %p83 = por %p81, %p82
    %p84 = scmp.ne.s32.totalorder %s70, %s71
    %p85 = scmp.eq.s32.totalorder %s21, 1
    %p86 = por %p84, %p85
    %p88 = scmp.ne.s32.totalorder %s71, %s87
    %p89 = scmp.eq.s32.totalorder %s21, 0
    %p90 = por %p88, %p89
    %p91 = scmp.le.s32.totalorder 1, %s15
    %p92 = scmp.lt.s32.totalorder %s15, 3
    %p93 = pnand %p91, %p92
    %p94 = pneg %p93
    // Predicated region
    $region9: #{simple_llm_forward.6} parent=5 // pred_check
      _
    $region10: #{simple_llm_forward.6} parent=5 // pred_check_branch
      %96 = sbr.rel (%p93) target = $region12
    $region11: #{simple_llm_forward.6} parent=5 // pred_region
      %s97 = ssub.s32 %s15, 1
      // Predicated region
      $region13: #{simple_llm_forward.6} parent=11 // pred_check
        %p98 = pneg %p36
      $region14: #{simple_llm_forward.6} parent=11 // pred_check_branch
        %100 = sbr.rel (%p98) target = $region16
      $region15: #{simple_llm_forward.6} parent=11 // pred_region
        _
      $region16: #{simple_llm_forward.6} parent=11 // pred_fallthru
        _
      // Predicated region
      $region17: #{simple_llm_forward.6} parent=11 // pred_check
        %p101 = pneg %p57
      $region18: #{simple_llm_forward.6} parent=11 // pred_check_branch
        %103 = sbr.rel (%p101) target = $region20
      $region19: #{simple_llm_forward.6} parent=11 // pred_region
        _
      $region20: #{simple_llm_forward.6} parent=11 // pred_fallthru
        _
    $region12: #{simple_llm_forward.6} parent=5 // pred_fallthru
      _
    %p104 = scmp.lt.s32.totalorder %s15, 2
    // Predicated region
    $region21: #{simple_llm_forward.6} parent=5 // pred_check
      %p105 = pneg %p104
    $region22: #{simple_llm_forward.6} parent=5 // pred_check_branch
      %107 = sbr.rel (%p105) target = $region24
    $region23: #{simple_llm_forward.6} parent=5 // pred_region
      _
    $region24: #{simple_llm_forward.6} parent=5 // pred_fallthru
      _
    %p108 = scmp.le.s32.totalorder 1, %s15
    %p109 = scmp.lt.s32.totalorder %s15, 3
    %p110 = pnand %p108, %p109
    %p111 = pneg %p110
    // Predicated region
    $region25: #{simple_llm_forward.6} parent=5 // pred_check
      _
    $region26: #{simple_llm_forward.6} parent=5 // pred_check_branch
      %113 = sbr.rel (%p110) target = $region28
    $region27: #{simple_llm_forward.6} parent=5 // pred_region
      %s114 = ssub.s32 %s15, 1
      %p115 = pneg %p36
      %p116 = pneg %p33
      %p117 = pneg %p57
      %p118 = pneg %p54
      %p119 = pneg %p83
      %p120 = pneg %p80
      %p121 = scmp.lt.s32.totalorder %s20, 1
      %s122 = scalar_select %p121, %s20, 1
      %s123 = smul.addr %s122, 8
      %s124 = scalar_lea.vmem %s3, %s123
      %p125 = scmp.lt.s32.totalorder %s20, 1
      %s126 = scalar_select %p125, %s20, 1
      %s127 = smul.addr %s126, 8
      %s128 = scalar_lea.vmem %s3, %s127
      %s129 = smul.u32 %s20, 8
      %v130 = vlaneseq
      %v131 = vand.u32 %v130, 127
      %s132 = sld [smem:[#allocation3 + %s129]]
      %v133 = vstv %s132
      %vm134 = vcmp.eq.s32.totalorder %v131, %v133
      %v135 = vsel %vm134, 1, 0
      %v136 = vcvt.s32.f32 %v135
      %s137 = sadd.s32 %s129, 1
      %s138 = sld [smem:[#allocation3 + %s137]]
      %v139 = vstv %s138
      %vm140 = vcmp.eq.s32.totalorder %v131, %v139
      %v141 = vsel %vm140, 1, 0
      %v142 = vcvt.s32.f32 %v141
      %s143 = sadd.s32 %s129, 2
      %s144 = sld [smem:[#allocation3 + %s143]]
      %v145 = vstv %s144
      %vm146 = vcmp.eq.s32.totalorder %v131, %v145
      %v147 = vsel %vm146, 1, 0
      %v148 = vcvt.s32.f32 %v147
      %s149 = sadd.s32 %s129, 3
      %s150 = sld [smem:[#allocation3 + %s149]]
      %v151 = vstv %s150
      %vm152 = vcmp.eq.s32.totalorder %v131, %v151
      %v153 = vsel %vm152, 1, 0
      %v154 = vcvt.s32.f32 %v153
      %s155 = sadd.s32 %s129, 4
      %s156 = sld [smem:[#allocation3 + %s155]]
      %v157 = vstv %s156
      %vm158 = vcmp.eq.s32.totalorder %v131, %v157
      %v159 = vsel %vm158, 1, 0
      %v160 = vcvt.s32.f32 %v159
      %s161 = sadd.s32 %s129, 5
      %s162 = sld [smem:[#allocation3 + %s161]]
      %v163 = vstv %s162
      %vm164 = vcmp.eq.s32.totalorder %v131, %v163
      %v165 = vsel %vm164, 1, 0
      %v166 = vcvt.s32.f32 %v165
      %s167 = sadd.s32 %s129, 6
      %s168 = sld [smem:[#allocation3 + %s167]]
      %v169 = vstv %s168
      %vm170 = vcmp.eq.s32.totalorder %v131, %v169
      %v171 = vsel %vm170, 1, 0
      %v172 = vcvt.s32.f32 %v171
      %s173 = sadd.s32 %s129, 7
      %s174 = sld [smem:[#allocation3 + %s173]]
      %v175 = vstv %s174
      %vm176 = vcmp.eq.s32.totalorder %v131, %v175
      %v177 = vsel %vm176, 1, 0
      %v178 = vcvt.s32.f32 %v177
      %vm179 = vcmask 1040384
      %v180 = vsel %vm179, %v136, %v142
      %vm181 = vcmask 1041408
      %v182 = vsel %vm181, %v180, %v148
      %vm183 = vcmask 1042432
      %v184 = vsel %vm183, %v182, %v154
      %vm185 = vcmask 1043456
      %v186 = vsel %vm185, %v184, %v160
      %vm187 = vcmask 1044480
      %v188 = vsel %vm187, %v186, %v166
      %vm189 = vcmask 1045504
      %v190 = vsel %vm189, %v188, %v172
      %vm191 = vcmask 1046528
      %v192 = vsel %vm191, %v190, %v178
      %v193 = vld [vmem:[%s1] sm:$0xff]
      %v194 = vld [vmem:[%s1 + $0x8] sm:$0xff]
      %v195 = vld [vmem:[%s1 + $0x10] sm:$0xff]
      %v196 = vld [vmem:[%s1 + $0x18] sm:$0xff]
      %v197 = vld [vmem:[%s1 + $0x20] sm:$0xff]
      %v198 = vld [vmem:[%s1 + $0x28] sm:$0xff]
      %v199 = vld [vmem:[%s1 + $0x30] sm:$0xff]
      %v200 = vld [vmem:[%s1 + $0x38] sm:$0xff]
      %v201 = vld [vmem:[%s1 + $0x40] sm:$0xff]
      %v202 = vld [vmem:[%s1 + $0x48] sm:$0xff]
      %v203 = vld [vmem:[%s1 + $0x50] sm:$0xff]
      %v204 = vld [vmem:[%s1 + $0x58] sm:$0xff]
      %v205 = vld [vmem:[%s1 + $0x60] sm:$0xff]
      %v206 = vld [vmem:[%s1 + $0x68] sm:$0xff]
      %v207 = vld [vmem:[%s1 + $0x70] sm:$0xff]
      %v208 = vld [vmem:[%s1 + $0x78] sm:$0xff]
      %v209 = vld [vmem:[%s2] sm:$0xff]
      %210 = vmatprep.subr.mxu0 0.0
      %v211 = vand.u32 %v193, 4294901760
      %212 = vmatpush1.msra.mxu0 %v211
      %213 = vmatprep.subr.mxu0 0.0
      %v214 = vand.u32 %v194, 4294901760
      %215 = vmatpush1.msra.mxu0 %v214
      %216 = vmatprep.subr.mxu0 0.0
      %v217 = vand.u32 %v195, 4294901760
      %218 = vmatpush1.msra.mxu0 %v217
      %219 = vmatprep.subr.mxu0 0.0
      %v220 = vand.u32 %v196, 4294901760
      %221 = vmatpush1.msra.mxu0 %v220
      %222 = vmatprep.subr.mxu0 0.0
      %v223 = vand.u32 %v197, 4294901760
      %224 = vmatpush1.msra.mxu0 %v223
      %225 = vmatprep.subr.mxu0 0.0
      %v226 = vand.u32 %v198, 4294901760
      %227 = vmatpush1.msra.mxu0 %v226
      %228 = vmatprep.subr.mxu0 0.0
      %v229 = vand.u32 %v199, 4294901760
      %230 = vmatpush1.msra.mxu0 %v229
      %231 = vmatprep.subr.mxu0 0.0
      %v232 = vand.u32 %v200, 4294901760
      %233 = vmatpush1.msra.mxu0 %v232
      %234 = vmatprep.subr.mxu0 0.0
      %v235 = vand.u32 %v201, 4294901760
      %236 = vmatpush1.msra.mxu0 %v235
      %237 = vmatprep.subr.mxu0 0.0
      %v238 = vand.u32 %v202, 4294901760
      %239 = vmatpush1.msra.mxu0 %v238
      %240 = vmatprep.subr.mxu0 0.0
      %v241 = vand.u32 %v203, 4294901760
      %242 = vmatpush1.msra.mxu0 %v241
      %243 = vmatprep.subr.mxu0 0.0
      %v244 = vand.u32 %v204, 4294901760
      %245 = vmatpush1.msra.mxu0 %v244
      %246 = vmatprep.subr.mxu0 0.0
      %v247 = vand.u32 %v205, 4294901760
      %248 = vmatpush1.msra.mxu0 %v247
      %249 = vmatprep.subr.mxu0 0.0
      %v250 = vand.u32 %v206, 4294901760
      %251 = vmatpush1.msra.mxu0 %v250
      %252 = vmatprep.subr.mxu0 0.0
      %v253 = vand.u32 %v207, 4294901760
      %254 = vmatpush1.msra.mxu0 %v253
      %255 = vmatprep.subr.mxu0 0.0
      %v256 = vand.u32 %v208, 4294901760
      %257 = vmatpush1.msra.mxu0 %v256
      %258 = vmatprep.subr.mxu0 0.0
      %259 = vmatpush1.msra.mxu0 0.0
      %260 = vmatprep.subr.mxu0 0.0
      %261 = vmatpush1.msra.mxu0 0.0
      %262 = vmatprep.subr.mxu0 0.0
      %263 = vmatpush1.msra.mxu0 0.0
      %264 = vmatprep.subr.mxu0 0.0
      %265 = vmatpush1.msra.mxu0 0.0
      %266 = vmatprep.subr.mxu0 0.0
      %267 = vmatpush1.msra.mxu0 0.0
      %268 = vmatprep.subr.mxu0 0.0
      %269 = vmatpush1.msra.mxu0 0.0
      %270 = vmatprep.subr.mxu0 0.0
      %271 = vmatpush1.msra.mxu0 0.0
      %272 = vmatprep.subr.mxu0 0.0
      %273 = vmatpush1.msra.mxu0 0.0
      %274 = vmatprep.subr.mxu0 0.0
      %275 = vmatpush1.msra.mxu0 0.0
      %276 = vmatprep.subr.mxu0 0.0
      %277 = vmatpush1.msra.mxu0 0.0
      %278 = vmatprep.subr.mxu0 0.0
      %279 = vmatpush1.msra.mxu0 0.0
      %280 = vmatprep.subr.mxu0 0.0
      %281 = vmatpush1.msra.mxu0 0.0
      %282 = vmatprep.subr.mxu0 0.0
      %283 = vmatpush1.msra.mxu0 0.0
      %284 = vmatprep.subr.mxu0 0.0
      %285 = vmatpush1.msra.mxu0 0.0
      %286 = vmatprep.subr.mxu0 0.0
      %287 = vmatpush1.msra.mxu0 0.0
      %288 = vmatprep.subr.mxu0 0.0
      %289 = vmatpush1.msra.mxu0 0.0
      %290 = vmatprep.mubr.f32.mxu0 0.0
      %v291 = vand.u32 %v192, 4294901760
      %v292 = vsub.f32 %v192, %v291
      %v293 = vand.u32 %v292, 4294901760
      %v294 = vsub.f32 %v292, %v293
      %v295 = vand.u32 %v294, 4294901760
      %296 = vmatmul.mubr.f32.gmra.mrb[0].mxu0 %v295
      %v297 = vpop.f32.mrb[0].mxu0
      %v298 = vadd.f32 %v209, %v297
      %v299 = vpop.f32.mrb[0].mxu0
      %300 = vdwg.mxu0
      %301 = vmatprep.subr.mxu0 0.0
      %v302 = vand.u32 %v193, 4294901760
      %v303 = vsub.f32 %v193, %v302
      %v304 = vand.u32 %v303, 4294901760
      %v305 = vsub.f32 %v303, %v304
      %v306 = vand.u32 %v305, 4294901760
      %307 = vmatpush1.msra.mxu0 %v306
      %308 = vmatprep.subr.mxu0 0.0
      %v309 = vand.u32 %v194, 4294901760
      %v310 = vsub.f32 %v194, %v309
      %v311 = vand.u32 %v310, 4294901760
      %v312 = vsub.f32 %v310, %v311
      %v313 = vand.u32 %v312, 4294901760
      %314 = vmatpush1.msra.mxu0 %v313
      %315 = vmatprep.subr.mxu0 0.0
      %v316 = vand.u32 %v195, 4294901760
      %v317 = vsub.f32 %v195, %v316
      %v318 = vand.u32 %v317, 4294901760
      %v319 = vsub.f32 %v317, %v318
      %v320 = vand.u32 %v319, 4294901760
      %321 = vmatpush1.msra.mxu0 %v320
      %322 = vmatprep.subr.mxu0 0.0
      %v323 = vand.u32 %v196, 4294901760
      %v324 = vsub.f32 %v196, %v323
      %v325 = vand.u32 %v324, 4294901760
      %v326 = vsub.f32 %v324, %v325
      %v327 = vand.u32 %v326, 4294901760
      %328 = vmatpush1.msra.mxu0 %v327
      %329 = vmatprep.subr.mxu0 0.0
      %v330 = vand.u32 %v197, 4294901760
      %v331 = vsub.f32 %v197, %v330
      %v332 = vand.u32 %v331, 4294901760
      %v333 = vsub.f32 %v331, %v332
      %v334 = vand.u32 %v333, 4294901760
      %335 = vmatpush1.msra.mxu0 %v334
      %336 = vmatprep.subr.mxu0 0.0
      %v337 = vand.u32 %v198, 4294901760
      %v338 = vsub.f32 %v198, %v337
      %v339 = vand.u32 %v338, 4294901760
      %v340 = vsub.f32 %v338, %v339
      %v341 = vand.u32 %v340, 4294901760
      %342 = vmatpush1.msra.mxu0 %v341
      %343 = vmatprep.subr.mxu0 0.0
      %v344 = vand.u32 %v199, 4294901760
      %v345 = vsub.f32 %v199, %v344
      %v346 = vand.u32 %v345, 4294901760
      %v347 = vsub.f32 %v345, %v346
      %v348 = vand.u32 %v347, 4294901760
      %349 = vmatpush1.msra.mxu0 %v348
      %350 = vmatprep.subr.mxu0 0.0
      %v351 = vand.u32 %v200, 4294901760
      %v352 = vsub.f32 %v200, %v351
      %v353 = vand.u32 %v352, 4294901760
      %v354 = vsub.f32 %v352, %v353
      %v355 = vand.u32 %v354, 4294901760
      %356 = vmatpush1.msra.mxu0 %v355
      %357 = vmatprep.subr.mxu0 0.0
      %v358 = vand.u32 %v201, 4294901760
      %v359 = vsub.f32 %v201, %v358
      %v360 = vand.u32 %v359, 4294901760
      %v361 = vsub.f32 %v359, %v360
      %v362 = vand.u32 %v361, 4294901760
      %363 = vmatpush1.msra.mxu0 %v362
      %364 = vmatprep.subr.mxu0 0.0
      %v365 = vand.u32 %v202, 4294901760
      %v366 = vsub.f32 %v202, %v365
      %v367 = vand.u32 %v366, 4294901760
      %v368 = vsub.f32 %v366, %v367
      %v369 = vand.u32 %v368, 4294901760
      %370 = vmatpush1.msra.mxu0 %v369
      %371 = vmatprep.subr.mxu0 0.0
      %v372 = vand.u32 %v203, 4294901760
      %v373 = vsub.f32 %v203, %v372
      %v374 = vand.u32 %v373, 4294901760
      %v375 = vsub.f32 %v373, %v374
      %v376 = vand.u32 %v375, 4294901760
      %377 = vmatpush1.msra.mxu0 %v376
      %378 = vmatprep.subr.mxu0 0.0
      %v379 = vand.u32 %v204, 4294901760
      %v380 = vsub.f32 %v204, %v379
      %v381 = vand.u32 %v380, 4294901760
      %v382 = vsub.f32 %v380, %v381
      %v383 = vand.u32 %v382, 4294901760
      %384 = vmatpush1.msra.mxu0 %v383
      %385 = vmatprep.subr.mxu0 0.0
      %v386 = vand.u32 %v205, 4294901760
      %v387 = vsub.f32 %v205, %v386
      %v388 = vand.u32 %v387, 4294901760
      %v389 = vsub.f32 %v387, %v388
      %v390 = vand.u32 %v389, 4294901760
      %391 = vmatpush1.msra.mxu0 %v390
      %392 = vmatprep.subr.mxu0 0.0
      %v393 = vand.u32 %v206, 4294901760
      %v394 = vsub.f32 %v206, %v393
      %v395 = vand.u32 %v394, 4294901760
      %v396 = vsub.f32 %v394, %v395
      %v397 = vand.u32 %v396, 4294901760
      %398 = vmatpush1.msra.mxu0 %v397
      %399 = vmatprep.subr.mxu0 0.0
      %v400 = vand.u32 %v207, 4294901760
      %v401 = vsub.f32 %v207, %v400
      %v402 = vand.u32 %v401, 4294901760
      %v403 = vsub.f32 %v401, %v402
      %v404 = vand.u32 %v403, 4294901760
      %405 = vmatpush1.msra.mxu0 %v404
      %406 = vmatprep.subr.mxu0 0.0
      %v407 = vand.u32 %v208, 4294901760
      %v408 = vsub.f32 %v208, %v407
      %v409 = vand.u32 %v408, 4294901760
      %v410 = vsub.f32 %v408, %v409
      %v411 = vand.u32 %v410, 4294901760
      %412 = vmatpush1.msra.mxu0 %v411
      %413 = vmatprep.subr.mxu0 0.0
      %414 = vmatpush1.msra.mxu0 0.0
      %415 = vmatprep.subr.mxu0 0.0
      %416 = vmatpush1.msra.mxu0 0.0
      %417 = vmatprep.subr.mxu0 0.0
      %418 = vmatpush1.msra.mxu0 0.0
      %419 = vmatprep.subr.mxu0 0.0
      %420 = vmatpush1.msra.mxu0 0.0
      %421 = vmatprep.subr.mxu0 0.0
      %422 = vmatpush1.msra.mxu0 0.0
      %423 = vmatprep.subr.mxu0 0.0
      %424 = vmatpush1.msra.mxu0 0.0
      %425 = vmatprep.subr.mxu0 0.0
      %426 = vmatpush1.msra.mxu0 0.0
      %427 = vmatprep.subr.mxu0 0.0
      %428 = vmatpush1.msra.mxu0 0.0
      %429 = vmatprep.subr.mxu0 0.0
      %430 = vmatpush1.msra.mxu0 0.0
      %431 = vmatprep.subr.mxu0 0.0
      %432 = vmatpush1.msra.mxu0 0.0
      %433 = vmatprep.subr.mxu0 0.0
      %434 = vmatpush1.msra.mxu0 0.0
      %435 = vmatprep.subr.mxu0 0.0
      %436 = vmatpush1.msra.mxu0 0.0
      %437 = vmatprep.subr.mxu0 0.0
      %438 = vmatpush1.msra.mxu0 0.0
      %439 = vmatprep.subr.mxu0 0.0
      %440 = vmatpush1.msra.mxu0 0.0
      %441 = vmatprep.subr.mxu0 0.0
      %442 = vmatpush1.msra.mxu0 0.0
      %443 = vmatprep.subr.mxu0 0.0
      %444 = vmatpush1.msra.mxu0 0.0
      %445 = vmatprep.mubr.f32.mxu0 0.0
      %v446 = vand.u32 %v192, 4294901760
      %447 = vmatmul.mubr.f32.gmra.mrb[0].mxu0 %v446
      %v448 = vpop.f32.mrb[0].mxu0
      %v449 = vadd.f32 %v298, %v448
      %v450 = vpop.f32.mrb[0].mxu0
      %451 = vdwg.mxu0
      %452 = vmatprep.subr.mxu0 0.0
      %v453 = vand.u32 %v193, 4294901760
      %v454 = vsub.f32 %v193, %v453
      %455 = vmatpush1.msra.mxu0 %v454
      %456 = vmatprep.subr.mxu0 0.0
      %v457 = vand.u32 %v194, 4294901760
      %v458 = vsub.f32 %v194, %v457
      %459 = vmatpush1.msra.mxu0 %v458
      %460 = vmatprep.subr.mxu0 0.0
      %v461 = vand.u32 %v195, 4294901760
      %v462 = vsub.f32 %v195, %v461
      %463 = vmatpush1.msra.mxu0 %v462
      %464 = vmatprep.subr.mxu0 0.0
      %v465 = vand.u32 %v196, 4294901760
      %v466 = vsub.f32 %v196, %v465
      %467 = vmatpush1.msra.mxu0 %v466
      %468 = vmatprep.subr.mxu0 0.0
      %v469 = vand.u32 %v197, 4294901760
      %v470 = vsub.f32 %v197, %v469
      %471 = vmatpush1.msra.mxu0 %v470
      %472 = vmatprep.subr.mxu0 0.0
      %v473 = vand.u32 %v198, 4294901760
      %v474 = vsub.f32 %v198, %v473
      %475 = vmatpush1.msra.mxu0 %v474
      %476 = vmatprep.subr.mxu0 0.0
      %v477 = vand.u32 %v199, 4294901760
      %v478 = vsub.f32 %v199, %v477
      %479 = vmatpush1.msra.mxu0 %v478
      %480 = vmatprep.subr.mxu0 0.0
      %v481 = vand.u32 %v200, 4294901760
      %v482 = vsub.f32 %v200, %v481
      %483 = vmatpush1.msra.mxu0 %v482
      %484 = vmatprep.subr.mxu0 0.0
      %v485 = vand.u32 %v201, 4294901760
      %v486 = vsub.f32 %v201, %v485
      %487 = vmatpush1.msra.mxu0 %v486
      %488 = vmatprep.subr.mxu0 0.0
      %v489 = vand.u32 %v202, 4294901760
      %v490 = vsub.f32 %v202, %v489
      %491 = vmatpush1.msra.mxu0 %v490
      %492 = vmatprep.subr.mxu0 0.0
      %v493 = vand.u32 %v203, 4294901760
      %v494 = vsub.f32 %v203, %v493
      %495 = vmatpush1.msra.mxu0 %v494
      %496 = vmatprep.subr.mxu0 0.0
      %v497 = vand.u32 %v204, 4294901760
      %v498 = vsub.f32 %v204, %v497
      %499 = vmatpush1.msra.mxu0 %v498
      %500 = vmatprep.subr.mxu0 0.0
      %v501 = vand.u32 %v205, 4294901760
      %v502 = vsub.f32 %v205, %v501
      %503 = vmatpush1.msra.mxu0 %v502
      %504 = vmatprep.subr.mxu0 0.0
      %v505 = vand.u32 %v206, 4294901760
      %v506 = vsub.f32 %v206, %v505
      %507 = vmatpush1.msra.mxu0 %v506
      %508 = vmatprep.subr.mxu0 0.0
      %v509 = vand.u32 %v207, 4294901760
      %v510 = vsub.f32 %v207, %v509
      %511 = vmatpush1.msra.mxu0 %v510
      %512 = vmatprep.subr.mxu0 0.0
      %v513 = vand.u32 %v208, 4294901760
      %v514 = vsub.f32 %v208, %v513
      %515 = vmatpush1.msra.mxu0 %v514
      %516 = vmatprep.subr.mxu0 0.0
      %517 = vmatpush1.msra.mxu0 0.0
      %518 = vmatprep.subr.mxu0 0.0
      %519 = vmatpush1.msra.mxu0 0.0
      %520 = vmatprep.subr.mxu0 0.0
      %521 = vmatpush1.msra.mxu0 0.0
      %522 = vmatprep.subr.mxu0 0.0
      %523 = vmatpush1.msra.mxu0 0.0
      %524 = vmatprep.subr.mxu0 0.0
      %525 = vmatpush1.msra.mxu0 0.0
      %526 = vmatprep.subr.mxu0 0.0
      %527 = vmatpush1.msra.mxu0 0.0
      %528 = vmatprep.subr.mxu0 0.0
      %529 = vmatpush1.msra.mxu0 0.0
      %530 = vmatprep.subr.mxu0 0.0
      %531 = vmatpush1.msra.mxu0 0.0
      %532 = vmatprep.subr.mxu0 0.0
      %533 = vmatpush1.msra.mxu0 0.0
      %534 = vmatprep.subr.mxu0 0.0
      %535 = vmatpush1.msra.mxu0 0.0
      %536 = vmatprep.subr.mxu0 0.0
      %537 = vmatpush1.msra.mxu0 0.0
      %538 = vmatprep.subr.mxu0 0.0
      %539 = vmatpush1.msra.mxu0 0.0
      %540 = vmatprep.subr.mxu0 0.0
      %541 = vmatpush1.msra.mxu0 0.0
      %542 = vmatprep.subr.mxu0 0.0
      %543 = vmatpush1.msra.mxu0 0.0
      %544 = vmatprep.subr.mxu0 0.0
      %545 = vmatpush1.msra.mxu0 0.0
      %546 = vmatprep.subr.mxu0 0.0
      %547 = vmatpush1.msra.mxu0 0.0
      %548 = vmatprep.mubr.f32.mxu0 0.0
      %v549 = vand.u32 %v192, 4294901760
      %v550 = vsub.f32 %v192, %v549
      %551 = vmatmul.mubr.f32.gmra.mrb[0].mxu0 %v550
      %v552 = vpop.f32.mrb[0].mxu0
      %v553 = vadd.f32 %v449, %v552
      %v554 = vpop.f32.mrb[0].mxu0
      %555 = vdwg.mxu0
      %556 = vmatprep.subr.mxu0 0.0
      %v557 = vand.u32 %v193, 4294901760
      %558 = vmatpush1.msra.mxu0 %v557
      %559 = vmatprep.subr.mxu0 0.0
      %v560 = vand.u32 %v194, 4294901760
      %561 = vmatpush1.msra.mxu0 %v560
      %562 = vmatprep.subr.mxu0 0.0
      %v563 = vand.u32 %v195, 4294901760
      %564 = vmatpush1.msra.mxu0 %v563
      %565 = vmatprep.subr.mxu0 0.0
      %v566 = vand.u32 %v196, 4294901760
      %567 = vmatpush1.msra.mxu0 %v566
      %568 = vmatprep.subr.mxu0 0.0
      %v569 = vand.u32 %v197, 4294901760
      %570 = vmatpush1.msra.mxu0 %v569
      %571 = vmatprep.subr.mxu0 0.0
      %v572 = vand.u32 %v198, 4294901760
      %573 = vmatpush1.msra.mxu0 %v572
      %574 = vmatprep.subr.mxu0 0.0
      %v575 = vand.u32 %v199, 4294901760
      %576 = vmatpush1.msra.mxu0 %v575
      %577 = vmatprep.subr.mxu0 0.0
      %v578 = vand.u32 %v200, 4294901760
      %579 = vmatpush1.msra.mxu0 %v578
      %580 = vmatprep.subr.mxu0 0.0
      %v581 = vand.u32 %v201, 4294901760
      %582 = vmatpush1.msra.mxu0 %v581
      %583 = vmatprep.subr.mxu0 0.0
      %v584 = vand.u32 %v202, 4294901760
      %585 = vmatpush1.msra.mxu0 %v584
      %586 = vmatprep.subr.mxu0 0.0
      %v587 = vand.u32 %v203, 4294901760
      %588 = vmatpush1.msra.mxu0 %v587
      %589 = vmatprep.subr.mxu0 0.0
      %v590 = vand.u32 %v204, 4294901760
      %591 = vmatpush1.msra.mxu0 %v590
      %592 = vmatprep.subr.mxu0 0.0
      %v593 = vand.u32 %v205, 4294901760
      %594 = vmatpush1.msra.mxu0 %v593
      %595 = vmatprep.subr.mxu0 0.0
      %v596 = vand.u32 %v206, 4294901760
      %597 = vmatpush1.msra.mxu0 %v596
      %598 = vmatprep.subr.mxu0 0.0
      %v599 = vand.u32 %v207, 4294901760
      %600 = vmatpush1.msra.mxu0 %v599
      %601 = vmatprep.subr.mxu0 0.0
      %v602 = vand.u32 %v208, 4294901760
      %603 = vmatpush1.msra.mxu0 %v602
      %604 = vmatprep.subr.mxu0 0.0
      %605 = vmatpush1.msra.mxu0 0.0
      %606 = vmatprep.subr.mxu0 0.0
      %607 = vmatpush1.msra.mxu0 0.0
      %608 = vmatprep.subr.mxu0 0.0
      %609 = vmatpush1.msra.mxu0 0.0
      %610 = vmatprep.subr.mxu0 0.0
      %611 = vmatpush1.msra.mxu0 0.0
      %612 = vmatprep.subr.mxu0 0.0
      %613 = vmatpush1.msra.mxu0 0.0
      %614 = vmatprep.subr.mxu0 0.0
      %615 = vmatpush1.msra.mxu0 0.0
      %616 = vmatprep.subr.mxu0 0.0
      %617 = vmatpush1.msra.mxu0 0.0
      %618 = vmatprep.subr.mxu0 0.0
      %619 = vmatpush1.msra.mxu0 0.0
      %620 = vmatprep.subr.mxu0 0.0
      %621 = vmatpush1.msra.mxu0 0.0
      %622 = vmatprep.subr.mxu0 0.0
      %623 = vmatpush1.msra.mxu0 0.0
      %624 = vmatprep.subr.mxu0 0.0
      %625 = vmatpush1.msra.mxu0 0.0
      %626 = vmatprep.subr.mxu0 0.0
      %627 = vmatpush1.msra.mxu0 0.0
      %628 = vmatprep.subr.mxu0 0.0
      %629 = vmatpush1.msra.mxu0 0.0
      %630 = vmatprep.subr.mxu0 0.0
      %631 = vmatpush1.msra.mxu0 0.0
      %632 = vmatprep.subr.mxu0 0.0
      %633 = vmatpush1.msra.mxu0 0.0
      %634 = vmatprep.subr.mxu0 0.0
      %635 = vmatpush1.msra.mxu0 0.0
      %636 = vmatprep.mubr.f32.mxu0 0.0
      %v637 = vand.u32 %v192, 4294901760
      %v638 = vsub.f32 %v192, %v637
      %v639 = vand.u32 %v638, 4294901760
      %640 = vmatmul.mubr.f32.gmra.mrb[0].mxu0 %v639
      %v641 = vpop.f32.mrb[0].mxu0
      %v642 = vadd.f32 %v553, %v641
      %v643 = vpop.f32.mrb[0].mxu0
      %644 = vdwg.mxu0
      %645 = vmatprep.subr.mxu0 0.0
      %v646 = vand.u32 %v193, 4294901760
      %v647 = vsub.f32 %v193, %v646
      %v648 = vand.u32 %v647, 4294901760
      %649 = vmatpush1.msra.mxu0 %v648
      %650 = vmatprep.subr.mxu0 0.0
      %v651 = vand.u32 %v194, 4294901760
      %v652 = vsub.f32 %v194, %v651
      %v653 = vand.u32 %v652, 4294901760
      %654 = vmatpush1.msra.mxu0 %v653
      %655 = vmatprep.subr.mxu0 0.0
      %v656 = vand.u32 %v195, 4294901760
      %v657 = vsub.f32 %v195, %v656
      %v658 = vand.u32 %v657, 4294901760
      %659 = vmatpush1.msra.mxu0 %v658
      %660 = vmatprep.subr.mxu0 0.0
      %v661 = vand.u32 %v196, 4294901760
      %v662 = vsub.f32 %v196, %v661
      %v663 = vand.u32 %v662, 4294901760
      %664 = vmatpush1.msra.mxu0 %v663
      %665 = vmatprep.subr.mxu0 0.0
      %v666 = vand.u32 %v197, 4294901760
      %v667 = vsub.f32 %v197, %v666
      %v668 = vand.u32 %v667, 4294901760
      %669 = vmatpush1.msra.mxu0 %v668
      %670 = vmatprep.subr.mxu0 0.0
      %v671 = vand.u32 %v198, 4294901760
      %v672 = vsub.f32 %v198, %v671
      %v673 = vand.u32 %v672, 4294901760
      %674 = vmatpush1.msra.mxu0 %v673
      %675 = vmatprep.subr.mxu0 0.0
      %v676 = vand.u32 %v199, 4294901760
      %v677 = vsub.f32 %v199, %v676
      %v678 = vand.u32 %v677, 4294901760
      %679 = vmatpush1.msra.mxu0 %v678
      %680 = vmatprep.subr.mxu0 0.0
      %v681 = vand.u32 %v200, 4294901760
      %v682 = vsub.f32 %v200, %v681
      %v683 = vand.u32 %v682, 4294901760
      %684 = vmatpush1.msra.mxu0 %v683
      %685 = vmatprep.subr.mxu0 0.0
      %v686 = vand.u32 %v201, 4294901760
      %v687 = vsub.f32 %v201, %v686
      %v688 = vand.u32 %v687, 4294901760
      %689 = vmatpush1.msra.mxu0 %v688
      %690 = vmatprep.subr.mxu0 0.0
      %v691 = vand.u32 %v202, 4294901760
      %v692 = vsub.f32 %v202, %v691
      %v693 = vand.u32 %v692, 4294901760
      %694 = vmatpush1.msra.mxu0 %v693
      %695 = vmatprep.subr.mxu0 0.0
      %v696 = vand.u32 %v203, 4294901760
      %v697 = vsub.f32 %v203, %v696
      %v698 = vand.u32 %v697, 4294901760
      %699 = vmatpush1.msra.mxu0 %v698
      %700 = vmatprep.subr.mxu0 0.0
      %v701 = vand.u32 %v204, 4294901760
      %v702 = vsub.f32 %v204, %v701
      %v703 = vand.u32 %v702, 4294901760
      %704 = vmatpush1.msra.mxu0 %v703
      %705 = vmatprep.subr.mxu0 0.0
      %v706 = vand.u32 %v205, 4294901760
      %v707 = vsub.f32 %v205, %v706
      %v708 = vand.u32 %v707, 4294901760
      %709 = vmatpush1.msra.mxu0 %v708
      %710 = vmatprep.subr.mxu0 0.0
      %v711 = vand.u32 %v206, 4294901760
      %v712 = vsub.f32 %v206, %v711
      %v713 = vand.u32 %v712, 4294901760
      %714 = vmatpush1.msra.mxu0 %v713
      %715 = vmatprep.subr.mxu0 0.0
      %v716 = vand.u32 %v207, 4294901760
      %v717 = vsub.f32 %v207, %v716
      %v718 = vand.u32 %v717, 4294901760
      %719 = vmatpush1.msra.mxu0 %v718
      %720 = vmatprep.subr.mxu0 0.0
      %v721 = vand.u32 %v208, 4294901760
      %v722 = vsub.f32 %v208, %v721
      %v723 = vand.u32 %v722, 4294901760
      %724 = vmatpush1.msra.mxu0 %v723
      %725 = vmatprep.subr.mxu0 0.0
      %726 = vmatpush1.msra.mxu0 0.0
      %727 = vmatprep.subr.mxu0 0.0
      %728 = vmatpush1.msra.mxu0 0.0
      %729 = vmatprep.subr.mxu0 0.0
      %730 = vmatpush1.msra.mxu0 0.0
      %731 = vmatprep.subr.mxu0 0.0
      %732 = vmatpush1.msra.mxu0 0.0
      %733 = vmatprep.subr.mxu0 0.0
      %734 = vmatpush1.msra.mxu0 0.0
      %735 = vmatprep.subr.mxu0 0.0
      %736 = vmatpush1.msra.mxu0 0.0
      %737 = vmatprep.subr.mxu0 0.0
      %738 = vmatpush1.msra.mxu0 0.0
      %739 = vmatprep.subr.mxu0 0.0
      %740 = vmatpush1.msra.mxu0 0.0
      %741 = vmatprep.subr.mxu0 0.0
      %742 = vmatpush1.msra.mxu0 0.0
      %743 = vmatprep.subr.mxu0 0.0
      %744 = vmatpush1.msra.mxu0 0.0
      %745 = vmatprep.subr.mxu0 0.0
      %746 = vmatpush1.msra.mxu0 0.0
      %747 = vmatprep.subr.mxu0 0.0
      %748 = vmatpush1.msra.mxu0 0.0
      %749 = vmatprep.subr.mxu0 0.0
      %750 = vmatpush1.msra.mxu0 0.0
      %751 = vmatprep.subr.mxu0 0.0
      %752 = vmatpush1.msra.mxu0 0.0
      %753 = vmatprep.subr.mxu0 0.0
      %754 = vmatpush1.msra.mxu0 0.0
      %755 = vmatprep.subr.mxu0 0.0
      %756 = vmatpush1.msra.mxu0 0.0
      %757 = vmatprep.mubr.f32.mxu0 0.0
      %v758 = vand.u32 %v192, 4294901760
      %759 = vmatmul.mubr.f32.gmra.mrb[0].mxu0 %v758
      %v760 = vpop.f32.mrb[0].mxu0
      %v761 = vadd.f32 %v642, %v760
      %v762 = vpop.f32.mrb[0].mxu0
      %763 = vdwg.mxu0
      %764 = vmatprep.subr.mxu0 0.0
      %v765 = vand.u32 %v193, 4294901760
      %766 = vmatpush1.msra.mxu0 %v765
      %767 = vmatprep.subr.mxu0 0.0
      %v768 = vand.u32 %v194, 4294901760
      %769 = vmatpush1.msra.mxu0 %v768
      %770 = vmatprep.subr.mxu0 0.0
      %v771 = vand.u32 %v195, 4294901760
      %772 = vmatpush1.msra.mxu0 %v771
      %773 = vmatprep.subr.mxu0 0.0
      %v774 = vand.u32 %v196, 4294901760
      %775 = vmatpush1.msra.mxu0 %v774
      %776 = vmatprep.subr.mxu0 0.0
      %v777 = vand.u32 %v197, 4294901760
      %778 = vmatpush1.msra.mxu0 %v777
      %779 = vmatprep.subr.mxu0 0.0
      %v780 = vand.u32 %v198, 4294901760
      %781 = vmatpush1.msra.mxu0 %v780
      %782 = vmatprep.subr.mxu0 0.0
      %v783 = vand.u32 %v199, 4294901760
      %784 = vmatpush1.msra.mxu0 %v783
      %785 = vmatprep.subr.mxu0 0.0
      %v786 = vand.u32 %v200, 4294901760
      %787 = vmatpush1.msra.mxu0 %v786
      %788 = vmatprep.subr.mxu0 0.0
      %v789 = vand.u32 %v201, 4294901760
      %790 = vmatpush1.msra.mxu0 %v789
      %791 = vmatprep.subr.mxu0 0.0
      %v792 = vand.u32 %v202, 4294901760
      %793 = vmatpush1.msra.mxu0 %v792
      %794 = vmatprep.subr.mxu0 0.0
      %v795 = vand.u32 %v203, 4294901760
      %796 = vmatpush1.msra.mxu0 %v795
      %797 = vmatprep.subr.mxu0 0.0
      %v798 = vand.u32 %v204, 4294901760
      %799 = vmatpush1.msra.mxu0 %v798
      %800 = vmatprep.subr.mxu0 0.0
      %v801 = vand.u32 %v205, 4294901760
      %802 = vmatpush1.msra.mxu0 %v801
      %803 = vmatprep.subr.mxu0 0.0
      %v804 = vand.u32 %v206, 4294901760
      %805 = vmatpush1.msra.mxu0 %v804
      %806 = vmatprep.subr.mxu0 0.0
      %v807 = vand.u32 %v207, 4294901760
      %808 = vmatpush1.msra.mxu0 %v807
      %809 = vmatprep.subr.mxu0 0.0
      %v810 = vand.u32 %v208, 4294901760
      %811 = vmatpush1.msra.mxu0 %v810
      %812 = vmatprep.subr.mxu0 0.0
      %813 = vmatpush1.msra.mxu0 0.0
      %814 = vmatprep.subr.mxu0 0.0
      %815 = vmatpush1.msra.mxu0 0.0
      %816 = vmatprep.subr.mxu0 0.0
      %817 = vmatpush1.msra.mxu0 0.0
      %818 = vmatprep.subr.mxu0 0.0
      %819 = vmatpush1.msra.mxu0 0.0
      %820 = vmatprep.subr.mxu0 0.0
      %821 = vmatpush1.msra.mxu0 0.0
      %822 = vmatprep.subr.mxu0 0.0
      %823 = vmatpush1.msra.mxu0 0.0
      %824 = vmatprep.subr.mxu0 0.0
      %825 = vmatpush1.msra.mxu0 0.0
      %826 = vmatprep.subr.mxu0 0.0
      %827 = vmatpush1.msra.mxu0 0.0
      %828 = vmatprep.subr.mxu0 0.0
      %829 = vmatpush1.msra.mxu0 0.0
      %830 = vmatprep.subr.mxu0 0.0
      %831 = vmatpush1.msra.mxu0 0.0
      %832 = vmatprep.subr.mxu0 0.0
      %833 = vmatpush1.msra.mxu0 0.0
      %834 = vmatprep.subr.mxu0 0.0
      %835 = vmatpush1.msra.mxu0 0.0
      %836 = vmatprep.subr.mxu0 0.0
      %837 = vmatpush1.msra.mxu0 0.0
      %838 = vmatprep.subr.mxu0 0.0
      %839 = vmatpush1.msra.mxu0 0.0
      %840 = vmatprep.subr.mxu0 0.0
      %841 = vmatpush1.msra.mxu0 0.0
      %842 = vmatprep.subr.mxu0 0.0
      %843 = vmatpush1.msra.mxu0 0.0
      %844 = vmatprep.mubr.f32.mxu0 0.0
      %v845 = vand.u32 %v192, 4294901760
      %846 = vmatmul.mubr.f32.gmra.mrb[0].mxu0 %v845
      %v847 = vpop.f32.mrb[0].mxu0
      %v848 = vadd.f32 %v761, %v847
      %v849 = vpop.f32.mrb[0].mxu0
      %850 = vdwg.mxu0
      %851 = vst [vmem:[%s128] sm:$0xff] %v848
      %p852 = scmp.lt.s32.totalorder %s20, 1
      %s853 = scalar_select %p852, %s20, 1
      %s854 = smul.addr %s853, 8
      %s855 = scalar_lea.vmem %s3, %s854
      // Predicated region
      $region29: #{simple_llm_forward.6} parent=27 // pred_check
        %p856 = pneg %p80
      $region30: #{simple_llm_forward.6} parent=27 // pred_check_branch
        %858 = sbr.rel (%p856) target = $region32
      $region31: #{simple_llm_forward.6} parent=27 // pred_region
        _
      $region32: #{simple_llm_forward.6} parent=27 // pred_fallthru
        _
    $region28: #{simple_llm_forward.6} parent=5 // pred_fallthru
      _
    %p859 = scmp.le.s32.totalorder 2, %s15
    // Predicated region
    $region33: #{simple_llm_forward.6} parent=5 // pred_check
      %p860 = pneg %p859
    $region34: #{simple_llm_forward.6} parent=5 // pred_check_branch
      %862 = sbr.rel (%p860) target = $region36
    $region35: #{simple_llm_forward.6} parent=5 // pred_region
      %s863 = ssub.s32 %s15, 2
      // Predicated region
      $region37: #{simple_llm_forward.6} parent=35 // pred_check
        %p864 = pneg %p86
      $region38: #{simple_llm_forward.6} parent=35 // pred_check_branch
        %866 = sbr.rel (%p864) target = $region40
      $region39: #{simple_llm_forward.6} parent=35 // pred_region
        %p867 = scmp.lt.s32.totalorder %s21, 1
        %s868 = scalar_select %p867, %s21, 1
        %s869 = smul.addr %s868, 8
        %s870 = scalar_lea.vmem %s3, %s869
      $region40: #{simple_llm_forward.6} parent=35 // pred_fallthru
        _
    $region36: #{simple_llm_forward.6} parent=5 // pred_fallthru
      _
  $region6: #{simple_llm_forward.6} parent=0 // loop_footer
    %s19 = sadd.s32 1, %s15
  $region7: #{simple_llm_forward.6} parent=0 // loop_footer_branch
    %14 = sbr.rel target = $region3
  $region8: #{simple_llm_forward.6} parent=0 // loop_exit
    _

// kernel: simple_llm_forward.11
$region0: #{simple_llm_forward.11}
  #allocation0 [shape = 'u32[]', space=smem, size = 0x4, offset = 0x4, fixed_abs, tag = 'smem constant byte address 0x4 - core index']
  #allocation1 [shape = 'u32[144,128]{1,0:T(1,128)}', space=vmem, size = 0x12000, scoped, tag = 'internal scratch']
  #allocation2 [shape = 'f32[8,128]{1,0:T(8,128)}', space=vmem, size = 0x1000, scoped, tag = 'scratch operand']
  %s0 = inlined_call_operand.vmem [shape: f32[16,128], index: 0, kind: input, shape index: {}]
  %s1 = inlined_call_operand.vmem [shape: bf16[128,128], index: 1, kind: input, shape index: {}]
  %s2 = inlined_call_operand.vmem [shape: f32[1,128], index: 2, kind: input, shape index: {}]
  %s3 = inlined_call_operand.hbm [shape: f32[16,128], index: 3, kind: output, shape index: {}]
  %s4 = sld [smem:[#allocation0]]
  $region53: #{simple_llm_forward.11} parent=0
    _
  %s6 = ssub.s32 1, %s4
  %s7 = scalar_select 0, %s6, %s4
  $region1: #{simple_llm_forward.11} parent=0
    #allocation3 [shape = 'u8[8192]{0}', space=vmem, size = 0x2000, scoped, tag = 'output window, operand 0']
    #allocation4 [shape = 's32[2]{0}', space=sflag, size = 0x8, scoped, tag = 'scoped memory for simple_llm_forward.11']
    %8 = vsyncpa [#allocation4], 0
    %s9 = scalar_lea.sflag [#allocation4], 1
    %10 = vsyncpa %s9, 0
    loop: start=0, step=1, limit=4
    $region2: #{simple_llm_forward.11} parent=1 // loop_pre_header
      _
    $region3: #{simple_llm_forward.11} parent=1 // loop_header
      %s12 = sphi 0, %s16
      %p13 = scmp.ge.s32.totalorder %s12, 4
      %s19 = sphi 0, %s38
      %s20 = sphi 0, %s34
      %s21 = sphi 0, %s30
      %s22 = sphi 0, %s19
      %s23 = sphi 0, %s20
      %s24 = sphi 0, %s21
      %s25 = sphi 0, %s22
      %s26 = sphi 0, %s23
      %s27 = sphi 0, %s24
      %s43 = sphi 0, %s45
      %s46 = sphi 0, %s43
      %s47 = sphi 0, %s46
      %s63 = sphi 0, %s47
      %s71 = sphi 0, %s73
      %s74 = sphi 0, %s71
      %s75 = sphi 0, %s74
      %s91 = sphi 0, %s75
      %s97 = sphi 0, %s99
      %s100 = sphi 0, %s97
      %s101 = sphi 0, %s100
      %s117 = sphi 0, %s101
      %s125 = sphi 0, %s127
      %s128 = sphi 0, %s125
      %s129 = sphi 0, %s128
      %s145 = sphi 0, %s129
    $region4: #{simple_llm_forward.11} parent=1 // loop_header_branch
      %15 = sbr.rel (%p13) target = $region8
    $region5: #{simple_llm_forward.11} parent=1 // loop_body
      %s17 = ssub.s32 %s12, 1
      %s18 = ssub.s32 %s12, 2
      %s28 = sadd.s32 1, %s21
      %p29 = scmp.ge.s32.totalorder %s28, 1
      %s30 = scalar_select %p29, 0, %s28
      %s31 = sadd.s32 1, %s20
      %s32 = scalar_select %p29, %s31, %s20
      %p33 = scmp.ge.s32.totalorder %s32, 1
      %s34 = scalar_select %p33, 0, %s32
      %s35 = sadd.s32 1, %s19
      %s36 = scalar_select %p33, %s35, %s19
      %p37 = scmp.ge.s32.totalorder %s36, 2
      %s38 = scalar_select %p37, 0, %s36
      %s39 = ssub.s32 %s19, %s38
      %s40 = ssub.s32 %s21, %s30
      %s41 = sor.u32 %s39, %s40
      %p42 = scmp.eq.s32.totalorder %s41, 0
      %s44 = sadd.s32 %s43, 1
      %s45 = scalar_select %p42, %s43, %s44
      %p48 = pneg %p42
      %p49 = scmp.eq.s32.totalorder %s12, 1
      %p50 = por %p48, %p49
      %p51 = scmp.ne.s32.totalorder %s43, %s46
      %p52 = scmp.eq.s32.totalorder %s12, 0
      %p53 = por %p51, %p52
      %p54 = scmp.ne.s32.totalorder %s43, %s46
      %p55 = scmp.eq.s32.totalorder %s17, 1
      %p56 = por %p54, %p55
      %p57 = scmp.ne.s32.totalorder %s46, %s47
      %p58 = scmp.eq.s32.totalorder %s17, 0
      %p59 = por %p57, %p58
      %p60 = scmp.ne.s32.totalorder %s46, %s47
      %p61 = scmp.eq.s32.totalorder %s18, 1
      %p62 = por %p60, %p61
      %p64 = scmp.ne.s32.totalorder %s47, %s63
      %p65 = scmp.eq.s32.totalorder %s18, 0
      %p66 = por %p64, %p65
      %s67 = ssub.s32 %s21, %s30
      %s68 = ssub.s32 %s20, %s34
      %s69 = sor.u32 %s67, %s68
      %p70 = scmp.eq.s32.totalorder %s69, 0
      %s72 = sadd.s32 %s71, 1
      %s73 = scalar_select %p70, %s71, %s72
      %p76 = pneg %p70
      %p77 = scmp.eq.s32.totalorder %s12, 1
      %p78 = por %p76, %p77
      %p79 = scmp.ne.s32.totalorder %s71, %s74
      %p80 = scmp.eq.s32.totalorder %s12, 0
      %p81 = por %p79, %p80
      %p82 = scmp.ne.s32.totalorder %s71, %s74
      %p83 = scmp.eq.s32.totalorder %s17, 1
      %p84 = por %p82, %p83
      %p85 = scmp.ne.s32.totalorder %s74, %s75
      %p86 = scmp.eq.s32.totalorder %s17, 0
      %p87 = por %p85, %p86
      %p88 = scmp.ne.s32.totalorder %s74, %s75
      %p89 = scmp.eq.s32.totalorder %s18, 1
      %p90 = por %p88, %p89
      %p92 = scmp.ne.s32.totalorder %s75, %s91
      %p93 = scmp.eq.s32.totalorder %s18, 0
      %p94 = por %p92, %p93
      %s95 = ssub.s32 %s20, %s34
      %p96 = scmp.eq.s32.totalorder %s95, 0
      %s98 = sadd.s32 %s97, 1
      %s99 = scalar_select %p96, %s97, %s98
      %p102 = pneg %p96
      %p103 = scmp.eq.s32.totalorder %s12, 1
      %p104 = por %p102, %p103
      %p105 = scmp.ne.s32.totalorder %s97, %s100
      %p106 = scmp.eq.s32.totalorder %s12, 0
      %p107 = por %p105, %p106
      %p108 = scmp.ne.s32.totalorder %s97, %s100
      %p109 = scmp.eq.s32.totalorder %s17, 1
      %p110 = por %p108, %p109
      %p111 = scmp.ne.s32.totalorder %s100, %s101
      %p112 = scmp.eq.s32.totalorder %s17, 0
      %p113 = por %p111, %p112
      %p114 = scmp.ne.s32.totalorder %s100, %s101
      %p115 = scmp.eq.s32.totalorder %s18, 1
      %p116 = por %p114, %p115
      %p118 = scmp.ne.s32.totalorder %s101, %s117
      %p119 = scmp.eq.s32.totalorder %s18, 0
      %p120 = por %p118, %p119
      %s121 = ssub.s32 %s19, %s38
      %s122 = ssub.s32 %s20, %s34
      %s123 = sor.u32 %s121, %s122
      %p124 = scmp.eq.s32.totalorder %s123, 0
      %s126 = sadd.s32 %s125, 1
      %s127 = scalar_select %p124, %s125, %s126
      %p130 = pneg %p124
      %p131 = scmp.eq.s32.totalorder %s12, 1
      %p132 = por %p130, %p131
      %p133 = scmp.ne.s32.totalorder %s125, %s128
      %p134 = scmp.eq.s32.totalorder %s12, 0
      %p135 = por %p133, %p134
      %p136 = scmp.ne.s32.totalorder %s125, %s128
      %p137 = scmp.eq.s32.totalorder %s17, 1
      %p138 = por %p136, %p137
      %p139 = scmp.ne.s32.totalorder %s128, %s129
      %p140 = scmp.eq.s32.totalorder %s17, 0
      %p141 = por %p139, %p140
      %p142 = scmp.ne.s32.totalorder %s128, %s129
      %p143 = scmp.eq.s32.totalorder %s18, 1
      %p144 = por %p142, %p143
      %p146 = scmp.ne.s32.totalorder %s129, %s145
      %p147 = scmp.eq.s32.totalorder %s18, 0
      %p148 = por %p146, %p147
      %p149 = scmp.le.s32.totalorder 1, %s12
      %p150 = scmp.lt.s32.totalorder %s12, 3
      %p151 = pnand %p149, %p150
      %p152 = pneg %p151
      // Predicated region
      $region9: #{simple_llm_forward.11} parent=5 // pred_check
        _
      $region10: #{simple_llm_forward.11} parent=5 // pred_check_branch
        %154 = sbr.rel (%p151) target = $region12
      $region11: #{simple_llm_forward.11} parent=5 // pred_region
        %s155 = ssub.s32 %s12, 1
        // Predicated region
        $region13: #{simple_llm_forward.11} parent=11 // pred_check
          %p156 = pneg %p87
        $region14: #{simple_llm_forward.11} parent=11 // pred_check_branch
          %158 = sbr.rel (%p156) target = $region16
        $region15: #{simple_llm_forward.11} parent=11 // pred_region
          %s159 = smul.u32 16, %s24
          %p160 = scmp.lt.s32.totalorder %s159, 15
          %s161 = scalar_select %p160, %s159, 15
          %p162 = scmp.lt.s32.totalorder %s23, 0
          %s163 = scalar_select %p162, %s23, 0
          %s164 = sadd.s32 %s163, %s161
          %s165 = smul.addr %s164, 4
          %s166 = scalar_lea.vmem %s1, %s165
          %s167 = smul.u32 16, %s24
        $region16: #{simple_llm_forward.11} parent=11 // pred_fallthru
          _
        // Predicated region
        $region17: #{simple_llm_forward.11} parent=11 // pred_check
          %p168 = pneg %p113
        $region18: #{simple_llm_forward.11} parent=11 // pred_check_branch
          %170 = sbr.rel (%p168) target = $region20
        $region19: #{simple_llm_forward.11} parent=11 // pred_region
          %p171 = scmp.lt.s32.totalorder %s23, 0
          %s172 = scalar_select %p171, %s23, 0
          %s173 = scalar_lea.vmem %s2, %s172
        $region20: #{simple_llm_forward.11} parent=11 // pred_fallthru
          _
      $region12: #{simple_llm_forward.11} parent=5 // pred_fallthru
        _
      %p174 = scmp.lt.s32.totalorder %s12, 2
      // Predicated region
      $region21: #{simple_llm_forward.11} parent=5 // pred_check
        %p175 = pneg %p174
      $region22: #{simple_llm_forward.11} parent=5 // pred_check_branch
        %177 = sbr.rel (%p175) target = $region24
      $region23: #{simple_llm_forward.11} parent=5 // pred_region
        // Predicated region
        $region25: #{simple_llm_forward.11} parent=23 // pred_check
          %p178 = pneg %p53
        $region26: #{simple_llm_forward.11} parent=23 // pred_check_branch
          %180 = sbr.rel (%p178) target = $region28
        $region27: #{simple_llm_forward.11} parent=23 // pred_region
          %p181 = scmp.lt.s32.totalorder %s19, 1
          %s182 = scalar_select %p181, %s19, 1
          %p183 = scmp.lt.s32.totalorder %s21, 0
          %s184 = scalar_select %p183, %s21, 0
          %s185 = sadd.s32 %s184, %s182
          %s186 = smul.addr %s185, 8
          %s187 = scalar_lea.vmem %s0, %s186
        $region28: #{simple_llm_forward.11} parent=23 // pred_fallthru
          _
      $region24: #{simple_llm_forward.11} parent=5 // pred_fallthru
        _
      %p188 = scmp.le.s32.totalorder 1, %s12
      %p189 = scmp.lt.s32.totalorder %s12, 3
      %p190 = pnand %p188, %p189
      %p191 = pneg %p190
      // Predicated region
      $region29: #{simple_llm_forward.11} parent=5 // pred_check
        _
      $region30: #{simple_llm_forward.11} parent=5 // pred_check_branch
        %193 = sbr.rel (%p190) target = $region32
      $region31: #{simple_llm_forward.11} parent=5 // pred_region
        %s194 = ssub.s32 %s12, 1
        %p195 = scmp.lt.s32.totalorder %s22, 1
        %s196 = scalar_select %p195, %s22, 1
        %p197 = scmp.lt.s32.totalorder %s24, 0
        %s198 = scalar_select %p197, %s24, 0
        %s199 = sadd.s32 %s198, %s196
        %s200 = smul.addr %s199, 8
        %s201 = scalar_lea.vmem %s0, %s200
        %p202 = pneg %p59
        %p203 = pneg %p56
        %s204 = smul.u32 16, %s24
        %p205 = scmp.lt.s32.totalorder %s204, 15
        %s206 = scalar_select %p205, %s204, 15
        %p207 = scmp.lt.s32.totalorder %s23, 0
        %s208 = scalar_select %p207, %s23, 0
        %s209 = sadd.s32 %s208, %s206
        %s210 = smul.addr %s209, 4
        %s211 = scalar_lea.vmem %s1, %s210
        %p212 = pneg %p87
        %p213 = pneg %p84
        %p214 = scmp.lt.s32.totalorder %s23, 0
        %s215 = scalar_select %p214, %s23, 0
        %s216 = scalar_lea.vmem %s2, %s215
        %p217 = pneg %p113
        %p218 = pneg %p110
        %p219 = pneg %p141
        %p220 = pneg %p138
        %s221 = sand.u32 %s128, 1
        %s222 = scalar_lea.sflag [#allocation4], %s221
        %s223 = sand.u32 %s128, 1
        %s224 = smul.addr %s223, 8
        %s225 = scalar_lea.vmem [#allocation3], %s224
        %p226 = scmp.lt.s32.totalorder %s22, 1
        %s227 = scalar_select %p226, %s22, 1
        %p228 = scmp.lt.s32.totalorder %s24, 0
        %s229 = scalar_select %p228, %s24, 0
        %s230 = sadd.s32 %s229, %s227
        %s231 = smul.addr %s230, 8
        %s232 = scalar_lea.vmem %s0, %s231
        %s233 = smul.u32 16, %s24
        %p234 = scmp.lt.s32.totalorder %s233, 15
        %s235 = scalar_select %p234, %s233, 15
        %p236 = scmp.lt.s32.totalorder %s23, 0
        %s237 = scalar_select %p236, %s23, 0
        %s238 = sadd.s32 %s237, %s235
        %s239 = smul.addr %s238, 4
        %s240 = scalar_lea.vmem %s1, %s239
        %s241 = smul.u32 16, %s24
        %p242 = scmp.lt.s32.totalorder %s23, 0
        %s243 = scalar_select %p242, %s23, 0
        %s244 = scalar_lea.vmem %s2, %s243
        %p246 = scmp.eq.s32.totalorder %s24, 0
        // Predicated region
        $region33: #{simple_llm_forward.11} parent=31 // pred_check
          %p247 = pneg %p246
        $region34: #{simple_llm_forward.11} parent=31 // pred_check_branch
          %249 = sbr.rel (%p247) target = $region36
        $region35: #{simple_llm_forward.11} parent=31 // pred_region
          %250 = vst [vmem:[#allocation2] sm:$0xff] 0.0
        $region36: #{simple_llm_forward.11} parent=31 // pred_fallthru
          _
        %v251 = vld [vmem:[#allocation2] sm:$0xff]
        %v252 = vld [vmem:[%s232] sm:$0xff]
        %v253 = vpack.c.bf16 %v252, %v252
        %v254 = vld [vmem:[%s240] sm:$0xf]
        %v255 = vld [vmem:[%s240 + $0x4] sm:$0xf]
        %v256 = vld [vmem:[%s240 + $0x8] sm:$0xf]
        %v257 = vld [vmem:[%s240 + $0xc] sm:$0xf]
        %v258 = vld [vmem:[%s240 + $0x10] sm:$0xf]
        %v259 = vld [vmem:[%s240 + $0x14] sm:$0xf]
        %v260 = vld [vmem:[%s240 + $0x18] sm:$0xf]
        %v261 = vld [vmem:[%s240 + $0x1c] sm:$0xf]
        %v262 = vld [vmem:[%s240 + $0x20] sm:$0xf]
        %v263 = vld [vmem:[%s240 + $0x24] sm:$0xf]
        %v264 = vld [vmem:[%s240 + $0x28] sm:$0xf]
        %v265 = vld [vmem:[%s240 + $0x2c] sm:$0xf]
        %v266 = vld [vmem:[%s240 + $0x30] sm:$0xf]
        %v267 = vld [vmem:[%s240 + $0x34] sm:$0xf]
        %v268 = vld [vmem:[%s240 + $0x38] sm:$0xf]
        %v269 = vld [vmem:[%s240 + $0x3c] sm:$0xf]
        %v286 = vunpack.c.l.b16 %v254
        %v287 = vunpack.c.l.b16 %v255
        %v288 = vunpack.c.l.b16 %v256
        %v289 = vunpack.c.l.b16 %v257
        %v290 = vunpack.c.l.b16 %v258
        %v291 = vunpack.c.l.b16 %v259
        %v292 = vunpack.c.l.b16 %v260
        %v293 = vunpack.c.l.b16 %v261
        %v294 = vunpack.c.l.b16 %v262
        %v295 = vunpack.c.l.b16 %v263
        %v296 = vunpack.c.l.b16 %v264
        %v297 = vunpack.c.l.b16 %v265
        %v298 = vunpack.c.l.b16 %v266
        %v299 = vunpack.c.l.b16 %v267
        %v300 = vunpack.c.l.b16 %v268
        %v301 = vunpack.c.l.b16 %v269
        %v302 = vpack.c.b16 %v287, %v286
        %v303 = vpack.c.b16 %v289, %v288
        %v304 = vpack.c.b16 %v291, %v290
        %v305 = vpack.c.b16 %v293, %v292
        %v306 = vpack.c.b16 %v295, %v294
        %v307 = vpack.c.b16 %v297, %v296
        %v308 = vpack.c.b16 %v299, %v298
        %v309 = vpack.c.b16 %v301, %v300
        %318 = vmatprep.subr.bf16.mxu0 0
        %319 = vmatpush1.bf16.msra.mxu0 %v302
        %320 = vmatprep.subr.bf16.mxu0 0
        %321 = vmatpush1.bf16.msra.mxu0 %v303
        %322 = vmatprep.subr.bf16.mxu0 0
        %323 = vmatpush1.bf16.msra.mxu0 %v304
        %324 = vmatprep.subr.bf16.mxu0 0
        %325 = vmatpush1.bf16.msra.mxu0 %v305
        %326 = vmatprep.subr.bf16.mxu0 0
        %327 = vmatpush1.bf16.msra.mxu0 %v306
        %328 = vmatprep.subr.bf16.mxu0 0
        %329 = vmatpush1.bf16.msra.mxu0 %v307
        %330 = vmatprep.subr.bf16.mxu0 0
        %331 = vmatpush1.bf16.msra.mxu0 %v308
        %332 = vmatprep.subr.bf16.mxu0 0
        %333 = vmatpush1.bf16.msra.mxu0 %v309
        %334 = vmatprep.subr.bf16.mxu0 0
        %335 = vmatpush1.bf16.msra.mxu0 0
        %336 = vmatprep.subr.bf16.mxu0 0
        %337 = vmatpush1.bf16.msra.mxu0 0
        %338 = vmatprep.subr.bf16.mxu0 0
        %339 = vmatpush1.bf16.msra.mxu0 0
        %340 = vmatprep.subr.bf16.mxu0 0
        %341 = vmatpush1.bf16.msra.mxu0 0
        %342 = vmatprep.subr.bf16.mxu0 0
        %343 = vmatpush1.bf16.msra.mxu0 0
        %344 = vmatprep.subr.bf16.mxu0 0
        %345 = vmatpush1.bf16.msra.mxu0 0
        %346 = vmatprep.subr.bf16.mxu0 0
        %347 = vmatpush1.bf16.msra.mxu0 0
        %348 = vmatprep.subr.bf16.mxu0 0
        %349 = vmatpush1.bf16.msra.mxu0 0
        %350 = vmatprep.mubr.bf16.mxu0 0
        %351 = vmatmul.mubr.bf16.gmra.mrb[0].mxu0 %v253
        %v352 = vpop.f32.mrb[0].mxu0
        %v353 = vadd.f32 0.0, %v352
        %v354 = vpop.f32.mrb[0].mxu0
        %v355 = vpop.f32.mrb[0].mxu0
        %v356 = vpop.f32.mrb[0].mxu0
        %357 = vdwg.mxu0
        %v358 = vadd.f32 %v251, %v353
        %359 = vst [vmem:[#allocation2] sm:$0xff] %v358
        // Predicated region
        $region37: #{simple_llm_forward.11} parent=31 // pred_check
          %p360 = pneg %p246
        $region38: #{simple_llm_forward.11} parent=31 // pred_check_branch
          %362 = sbr.rel (%p360) target = $region40
        $region39: #{simple_llm_forward.11} parent=31 // pred_region
          %v363 = vld [vmem:[#allocation2] sm:$0xff]
          %v364 = vld [vmem:[%s244] sm:$0x1]
          %v366 = vlaneseq
          %v367 = vshrl.u32 %v366, 7
          %v368 = vsub.s32 0, %v367
          %v369 = vrot.slane %v364, %v368
          %v371 = vadd.f32 %v363, %v369
          %372 = vst [vmem:[%s225] sm:$0xff] %v371
        $region40: #{simple_llm_forward.11} parent=31 // pred_fallthru
          _
        %s373 = sand.u32 %s128, 1
        %s374 = scalar_lea.sflag [#allocation4], %s373
        %s375 = sand.u32 %s128, 1
        %s376 = smul.addr %s375, 8
        %s377 = scalar_lea.vmem [#allocation3], %s376
        // Predicated region
        $region41: #{simple_llm_forward.11} parent=31 // pred_check
          %p378 = pneg %p138
        $region42: #{simple_llm_forward.11} parent=31 // pred_check_branch
          %380 = sbr.rel (%p378) target = $region44
        $region43: #{simple_llm_forward.11} parent=31 // pred_region
          %s382 = ssub.s32 128, 128
          %383 = vsyncadd %s374, %s382
          %s384 = sadd.s32 %s23, %s22
          %s385 = smul.addr %s384, 128
          %s386 = scalar_lea.hbm %s3, %s385
          %s388 = sshll.u32 %s377, 4
          %s389 = int_to_ptr.vmem [resolvable:$true] %s388
          %391 = dma.vmem_to_hbm [thread:$0]  %s389, 128, %s386, %s374
        $region44: #{simple_llm_forward.11} parent=31 // pred_fallthru
          _
      $region32: #{simple_llm_forward.11} parent=5 // pred_fallthru
        _
      %p392 = scmp.le.s32.totalorder 2, %s12
      // Predicated region
      $region45: #{simple_llm_forward.11} parent=5 // pred_check
        %p393 = pneg %p392
      $region46: #{simple_llm_forward.11} parent=5 // pred_check_branch
        %395 = sbr.rel (%p393) target = $region48
      $region47: #{simple_llm_forward.11} parent=5 // pred_region
        %s396 = ssub.s32 %s12, 2
        // Predicated region
        $region49: #{simple_llm_forward.11} parent=47 // pred_check
          %p397 = pneg %p144
        $region50: #{simple_llm_forward.11} parent=47 // pred_check_branch
          %399 = sbr.rel (%p397) target = $region52
        $region51: #{simple_llm_forward.11} parent=47 // pred_region
          %s400 = sand.u32 %s129, 1
          %s401 = scalar_lea.sflag [#allocation4], %s400
          %s402 = sand.u32 %s129, 1
          %s403 = smul.addr %s402, 8
          %s404 = scalar_lea.vmem [#allocation3], %s403
          %405 = dma.done %s401, 128
        $region52: #{simple_llm_forward.11} parent=47 // pred_fallthru
          _
      $region48: #{simple_llm_forward.11} parent=5 // pred_fallthru
        _
    $region6: #{simple_llm_forward.11} parent=1 // loop_footer
      %s16 = sadd.s32 1, %s12
    $region7: #{simple_llm_forward.11} parent=1 // loop_footer_branch
      %11 = sbr.rel target = $region3
    $region8: #{simple_llm_forward.11} parent=1 // loop_exit
      _
    %406 = vsyncpa [#allocation4], 1
    %s407 = scalar_lea.sflag [#allocation4], 1
    %408 = vsyncpa %s407, 1

// kernel: simple_llm_forward.8
$region0: #{simple_llm_forward.8}
  #allocation0 [shape = 'u32[]', space=smem, size = 0x4, offset = 0x4, fixed_abs, tag = 'smem constant byte address 0x4 - core index']
  #allocation1 [shape = 'u32[144,128]{1,0:T(1,128)}', space=vmem, size = 0x12000, scoped, tag = 'internal scratch']
  %s0 = inlined_call_operand.vmem [shape: f32[16,128], index: 0, kind: input, shape index: {}]
  %s1 = inlined_call_operand.vmem [shape: bf16[128,512], index: 1, kind: input, shape index: {}]
  %s2 = inlined_call_operand.vmem [shape: f32[1,512], index: 2, kind: input, shape index: {}]
  %s3 = inlined_call_operand.vmem [shape: bf16[512,128], index: 3, kind: input, shape index: {}]
  %s4 = inlined_call_operand.vmem [shape: f32[1,128], index: 4, kind: input, shape index: {}]
  %s5 = inlined_call_operand.vmem [shape: f32[1,128], index: 5, kind: input, shape index: {}]
  %s6 = inlined_call_operand.vmem [shape: f32[1,128], index: 6, kind: input, shape index: {}]
  %s7 = inlined_call_operand.vmem [shape: f32[16,128], index: 7, kind: output, shape index: {}]
  %s8 = sld [smem:[#allocation0]]
  $region61: #{simple_llm_forward.8} parent=0
    _
  %s10 = ssub.s32 1, %s8
  %s11 = scalar_select 0, %s10, %s8
  loop: start=0, step=1, limit=4
  $region2: #{simple_llm_forward.8} parent=0 // loop_pre_header
    _
  $region3: #{simple_llm_forward.8} parent=0 // loop_header
    %s13 = sphi 0, %s17
    %p14 = scmp.ge.s32.totalorder %s13, 4
    %s23 = sphi 0, %s25
    %s26 = sphi 0, %s23
    %s27 = sphi 0, %s26
    %s43 = sphi 0, %s27
    %s47 = sphi 0, %s47
    %s49 = sphi 0, %s47
    %s50 = sphi 0, %s49
    %s64 = sphi 0, %s50
    %s68 = sphi 0, %s68
    %s70 = sphi 0, %s68
    %s71 = sphi 0, %s70
    %s85 = sphi 0, %s71
    %s89 = sphi 0, %s89
    %s91 = sphi 0, %s89
    %s92 = sphi 0, %s91
    %s106 = sphi 0, %s92
    %s110 = sphi 0, %s110
    %s112 = sphi 0, %s110
    %s113 = sphi 0, %s112
    %s127 = sphi 0, %s113
    %s131 = sphi 0, %s131
    %s133 = sphi 0, %s131
    %s134 = sphi 0, %s133
    %s148 = sphi 0, %s134
    %s152 = sphi 0, %s152
    %s154 = sphi 0, %s152
    %s155 = sphi 0, %s154
    %s169 = sphi 0, %s155
    %s175 = sphi 0, %s177
    %s178 = sphi 0, %s175
    %s179 = sphi 0, %s178
    %s195 = sphi 0, %s179
  $region4: #{simple_llm_forward.8} parent=0 // loop_header_branch
    %16 = sbr.rel (%p14) target = $region8
  $region5: #{simple_llm_forward.8} parent=0 // loop_body
    %s18 = ssub.s32 %s13, 1
    %s19 = ssub.s32 %s13, 2
    %s20 = sadd.s32 %s13, 1
    %s21 = ssub.s32 %s13, %s20
    %p22 = scmp.eq.s32.totalorder %s21, 0
    %s24 = sadd.s32 %s23, 1
    %s25 = scalar_select %p22, %s23, %s24
    %p28 = pneg %p22
    %p29 = scmp.eq.s32.totalorder %s13, 1
    %p30 = por %p28, %p29
    %p31 = scmp.ne.s32.totalorder %s23, %s26
    %p32 = scmp.eq.s32.totalorder %s13, 0
    %p33 = por %p31, %p32
    %p34 = scmp.ne.s32.totalorder %s23, %s26
    %p35 = scmp.eq.s32.totalorder %s18, 1
    %p36 = por %p34, %p35
    %p37 = scmp.ne.s32.totalorder %s26, %s27
    %p38 = scmp.eq.s32.totalorder %s18, 0
    %p39 = por %p37, %p38
    %p40 = scmp.ne.s32.totalorder %s26, %s27
    %p41 = scmp.eq.s32.totalorder %s19, 1
    %p42 = por %p40, %p41
    %p44 = scmp.ne.s32.totalorder %s27, %s43
    %p45 = scmp.eq.s32.totalorder %s19, 0
    %p46 = por %p44, %p45
    %s48 = sadd.s32 %s47, 1
    %p51 = scmp.eq.s32.totalorder %s13, 1
    %p52 = scmp.ne.s32.totalorder %s47, %s49
    %p53 = scmp.eq.s32.totalorder %s13, 0
    %p54 = por %p52, %p53
    %p55 = scmp.ne.s32.totalorder %s47, %s49
    %p56 = scmp.eq.s32.totalorder %s18, 1
    %p57 = por %p55, %p56
    %p58 = scmp.ne.s32.totalorder %s49, %s50
    %p59 = scmp.eq.s32.totalorder %s18, 0
    %p60 = por %p58, %p59
    %p61 = scmp.ne.s32.totalorder %s49, %s50
    %p62 = scmp.eq.s32.totalorder %s19, 1
    %p63 = por %p61, %p62
    %p65 = scmp.ne.s32.totalorder %s50, %s64
    %p66 = scmp.eq.s32.totalorder %s19, 0
    %p67 = por %p65, %p66
    %s69 = sadd.s32 %s68, 1
    %p72 = scmp.eq.s32.totalorder %s13, 1
    %p73 = scmp.ne.s32.totalorder %s68, %s70
    %p74 = scmp.eq.s32.totalorder %s13, 0
    %p75 = por %p73, %p74
    %p76 = scmp.ne.s32.totalorder %s68, %s70
    %p77 = scmp.eq.s32.totalorder %s18, 1
    %p78 = por %p76, %p77
    %p79 = scmp.ne.s32.totalorder %s70, %s71
    %p80 = scmp.eq.s32.totalorder %s18, 0
    %p81 = por %p79, %p80
    %p82 = scmp.ne.s32.totalorder %s70, %s71
    %p83 = scmp.eq.s32.totalorder %s19, 1
    %p84 = por %p82, %p83
    %p86 = scmp.ne.s32.totalorder %s71, %s85
    %p87 = scmp.eq.s32.totalorder %s19, 0
    %p88 = por %p86, %p87
    %s90 = sadd.s32 %s89, 1
    %p93 = scmp.eq.s32.totalorder %s13, 1
    %p94 = scmp.ne.s32.totalorder %s89, %s91
    %p95 = scmp.eq.s32.totalorder %s13, 0
    %p96 = por %p94, %p95
    %p97 = scmp.ne.s32.totalorder %s89, %s91
    %p98 = scmp.eq.s32.totalorder %s18, 1
    %p99 = por %p97, %p98
    %p100 = scmp.ne.s32.totalorder %s91, %s92
    %p101 = scmp.eq.s32.totalorder %s18, 0
    %p102 = por %p100, %p101
    %p103 = scmp.ne.s32.totalorder %s91, %s92
    %p104 = scmp.eq.s32.totalorder %s19, 1
    %p105 = por %p103, %p104
    %p107 = scmp.ne.s32.totalorder %s92, %s106
    %p108 = scmp.eq.s32.totalorder %s19, 0
    %p109 = por %p107, %p108
    %s111 = sadd.s32 %s110, 1
    %p114 = scmp.eq.s32.totalorder %s13, 1
    %p115 = scmp.ne.s32.totalorder %s110, %s112
    %p116 = scmp.eq.s32.totalorder %s13, 0
    %p117 = por %p115, %p116
    %p118 = scmp.ne.s32.totalorder %s110, %s112
    %p119 = scmp.eq.s32.totalorder %s18, 1
    %p120 = por %p118, %p119
    %p121 = scmp.ne.s32.totalorder %s112, %s113
    %p122 = scmp.eq.s32.totalorder %s18, 0
    %p123 = por %p121, %p122
    %p124 = scmp.ne.s32.totalorder %s112, %s113
    %p125 = scmp.eq.s32.totalorder %s19, 1
    %p126 = por %p124, %p125
    %p128 = scmp.ne.s32.totalorder %s113, %s127
    %p129 = scmp.eq.s32.totalorder %s19, 0
    %p130 = por %p128, %p129
    %s132 = sadd.s32 %s131, 1
    %p135 = scmp.eq.s32.totalorder %s13, 1
    %p136 = scmp.ne.s32.totalorder %s131, %s133
    %p137 = scmp.eq.s32.totalorder %s13, 0
    %p138 = por %p136, %p137
    %p139 = scmp.ne.s32.totalorder %s131, %s133
    %p140 = scmp.eq.s32.totalorder %s18, 1
    %p141 = por %p139, %p140
    %p142 = scmp.ne.s32.totalorder %s133, %s134
    %p143 = scmp.eq.s32.totalorder %s18, 0
    %p144 = por %p142, %p143
    %p145 = scmp.ne.s32.totalorder %s133, %s134
    %p146 = scmp.eq.s32.totalorder %s19, 1
    %p147 = por %p145, %p146
    %p149 = scmp.ne.s32.totalorder %s134, %s148
    %p150 = scmp.eq.s32.totalorder %s19, 0
    %p151 = por %p149, %p150
    %s153 = sadd.s32 %s152, 1
    %p156 = scmp.eq.s32.totalorder %s13, 1
    %p157 = scmp.ne.s32.totalorder %s152, %s154
    %p158 = scmp.eq.s32.totalorder %s13, 0
    %p159 = por %p157, %p158
    %p160 = scmp.ne.s32.totalorder %s152, %s154
    %p161 = scmp.eq.s32.totalorder %s18, 1
    %p162 = por %p160, %p161
    %p163 = scmp.ne.s32.totalorder %s154, %s155
    %p164 = scmp.eq.s32.totalorder %s18, 0
    %p165 = por %p163, %p164
    %p166 = scmp.ne.s32.totalorder %s154, %s155
    %p167 = scmp.eq.s32.totalorder %s19, 1
    %p168 = por %p166, %p167
    %p170 = scmp.ne.s32.totalorder %s155, %s169
    %p171 = scmp.eq.s32.totalorder %s19, 0
    %p172 = por %p170, %p171
    %s173 = ssub.s32 %s13, %s20
    %p174 = scmp.eq.s32.totalorder %s173, 0
    %s176 = sadd.s32 %s175, 1
    %s177 = scalar_select %p174, %s175, %s176
    %p180 = pneg %p174
    %p181 = scmp.eq.s32.totalorder %s13, 1
    %p182 = por %p180, %p181
    %p183 = scmp.ne.s32.totalorder %s175, %s178
    %p184 = scmp.eq.s32.totalorder %s13, 0
    %p185 = por %p183, %p184
    %p186 = scmp.ne.s32.totalorder %s175, %s178
    %p187 = scmp.eq.s32.totalorder %s18, 1
    %p188 = por %p186, %p187
    %p189 = scmp.ne.s32.totalorder %s178, %s179
    %p190 = scmp.eq.s32.totalorder %s18, 0
    %p191 = por %p189, %p190
    %p192 = scmp.ne.s32.totalorder %s178, %s179
    %p193 = scmp.eq.s32.totalorder %s19, 1
    %p194 = por %p192, %p193
    %p196 = scmp.ne.s32.totalorder %s179, %s195
    %p197 = scmp.eq.s32.totalorder %s19, 0
    %p198 = por %p196, %p197
    %p199 = scmp.le.s32.totalorder 1, %s13
    %p200 = scmp.lt.s32.totalorder %s13, 3
    %p201 = pnand %p199, %p200
    %p202 = pneg %p201
    // Predicated region
    $region9: #{simple_llm_forward.8} parent=5 // pred_check
      _
    $region10: #{simple_llm_forward.8} parent=5 // pred_check_branch
      %204 = sbr.rel (%p201) target = $region12
    $region11: #{simple_llm_forward.8} parent=5 // pred_region
      %s205 = ssub.s32 %s13, 1
      // Predicated region
      $region13: #{simple_llm_forward.8} parent=11 // pred_check
        %p206 = pneg %p60
      $region14: #{simple_llm_forward.8} parent=11 // pred_check_branch
        %208 = sbr.rel (%p206) target = $region16
      $region15: #{simple_llm_forward.8} parent=11 // pred_region
        _
      $region16: #{simple_llm_forward.8} parent=11 // pred_fallthru
        _
      // Predicated region
      $region17: #{simple_llm_forward.8} parent=11 // pred_check
        %p209 = pneg %p81
      $region18: #{simple_llm_forward.8} parent=11 // pred_check_branch
        %211 = sbr.rel (%p209) target = $region20
      $region19: #{simple_llm_forward.8} parent=11 // pred_region
        _
      $region20: #{simple_llm_forward.8} parent=11 // pred_fallthru
        _
      // Predicated region
      $region21: #{simple_llm_forward.8} parent=11 // pred_check
        %p212 = pneg %p102
      $region22: #{simple_llm_forward.8} parent=11 // pred_check_branch
        %214 = sbr.rel (%p212) target = $region24
      $region23: #{simple_llm_forward.8} parent=11 // pred_region
        _
      $region24: #{simple_llm_forward.8} parent=11 // pred_fallthru
        _
      // Predicated region
      $region25: #{simple_llm_forward.8} parent=11 // pred_check
        %p215 = pneg %p123
      $region26: #{simple_llm_forward.8} parent=11 // pred_check_branch
        %217 = sbr.rel (%p215) target = $region28
      $region27: #{simple_llm_forward.8} parent=11 // pred_region
        _
      $region28: #{simple_llm_forward.8} parent=11 // pred_fallthru
        _
      // Predicated region
      $region29: #{simple_llm_forward.8} parent=11 // pred_check
        %p218 = pneg %p144
      $region30: #{simple_llm_forward.8} parent=11 // pred_check_branch
        %220 = sbr.rel (%p218) target = $region32
      $region31: #{simple_llm_forward.8} parent=11 // pred_region
        _
      $region32: #{simple_llm_forward.8} parent=11 // pred_fallthru
        _
      // Predicated region
      $region33: #{simple_llm_forward.8} parent=11 // pred_check
        %p221 = pneg %p165
      $region34: #{simple_llm_forward.8} parent=11 // pred_check_branch
        %223 = sbr.rel (%p221) target = $region36
      $region35: #{simple_llm_forward.8} parent=11 // pred_region
        _
      $region36: #{simple_llm_forward.8} parent=11 // pred_fallthru
        _
    $region12: #{simple_llm_forward.8} parent=5 // pred_fallthru
      _
    %p224 = scmp.lt.s32.totalorder %s13, 2
    // Predicated region
    $region37: #{simple_llm_forward.8} parent=5 // pred_check
      %p225 = pneg %p224
    $region38: #{simple_llm_forward.8} parent=5 // pred_check_branch
      %227 = sbr.rel (%p225) target = $region40
    $region39: #{simple_llm_forward.8} parent=5 // pred_region
      // Predicated region
      $region41: #{simple_llm_forward.8} parent=39 // pred_check
        %p228 = pneg %p33
      $region42: #{simple_llm_forward.8} parent=39 // pred_check_branch
        %230 = sbr.rel (%p228) target = $region44
      $region43: #{simple_llm_forward.8} parent=39 // pred_region
        %p231 = scmp.lt.s32.totalorder %s13, 1
        %s232 = scalar_select %p231, %s13, 1
        %s233 = smul.addr %s232, 8
        %s234 = scalar_lea.vmem %s0, %s233
      $region44: #{simple_llm_forward.8} parent=39 // pred_fallthru
        _
    $region40: #{simple_llm_forward.8} parent=5 // pred_fallthru
      _
    %p235 = scmp.le.s32.totalorder 1, %s13
    %p236 = scmp.lt.s32.totalorder %s13, 3
    %p237 = pnand %p235, %p236
    %p238 = pneg %p237
    // Predicated region
    $region45: #{simple_llm_forward.8} parent=5 // pred_check
      _
    $region46: #{simple_llm_forward.8} parent=5 // pred_check_branch
      %240 = sbr.rel (%p237) target = $region48
    $region47: #{simple_llm_forward.8} parent=5 // pred_region
      %s241 = ssub.s32 %s13, 1
      %p242 = scmp.lt.s32.totalorder %s18, 1
      %s243 = scalar_select %p242, %s18, 1
      %s244 = smul.addr %s243, 8
      %s245 = scalar_lea.vmem %s0, %s244
      %p246 = pneg %p39
      %p247 = pneg %p36
      %p248 = pneg %p60
      %p249 = pneg %p57
      %p250 = pneg %p81
      %p251 = pneg %p78
      %p252 = pneg %p102
      %p253 = pneg %p99
      %p254 = pneg %p123
      %p255 = pneg %p120
      %p256 = pneg %p144
      %p257 = pneg %p141
      %p258 = pneg %p165
      %p259 = pneg %p162
      %p260 = pneg %p191
      %p261 = pneg %p188
      %p262 = scmp.lt.s32.totalorder %s18, 1
      %s263 = scalar_select %p262, %s18, 1
      %s264 = smul.addr %s263, 8
      %s265 = scalar_lea.vmem %s7, %s264
      %p266 = scmp.lt.s32.totalorder %s18, 1
      %s267 = scalar_select %p266, %s18, 1
      %s268 = smul.addr %s267, 8
      %s269 = scalar_lea.vmem %s0, %s268
      %p270 = scmp.lt.s32.totalorder %s18, 1
      %s271 = scalar_select %p270, %s18, 1
      %s272 = smul.addr %s271, 8
      %s273 = scalar_lea.vmem %s7, %s272
      %v275 = vld [vmem:[%s269] sm:$0xff]
      %v276 = vpack.c.bf16 %v275, %v275
      %v277 = vld [vmem:[%s1] sm:$0xff]
      %v278 = vld [vmem:[%s1 + $0x8] sm:$0xff]
      %v279 = vld [vmem:[%s1 + $0x10] sm:$0xff]
      %v280 = vld [vmem:[%s1 + $0x18] sm:$0xff]
      %v281 = vld [vmem:[%s1 + $0x20] sm:$0xff]
      %v282 = vld [vmem:[%s1 + $0x28] sm:$0xff]
      %v283 = vld [vmem:[%s1 + $0x30] sm:$0xff]
      %v284 = vld [vmem:[%s1 + $0x38] sm:$0xff]
      %v285 = vld [vmem:[%s1 + $0x40] sm:$0xff]
      %v286 = vld [vmem:[%s1 + $0x48] sm:$0xff]
      %v287 = vld [vmem:[%s1 + $0x50] sm:$0xff]
      %v288 = vld [vmem:[%s1 + $0x58] sm:$0xff]
      %v289 = vld [vmem:[%s1 + $0x60] sm:$0xff]
      %v290 = vld [vmem:[%s1 + $0x68] sm:$0xff]
      %v291 = vld [vmem:[%s1 + $0x70] sm:$0xff]
      %v292 = vld [vmem:[%s1 + $0x78] sm:$0xff]
      %v293 = vld [vmem:[%s1 + $0x80] sm:$0xff]
      %v294 = vld [vmem:[%s1 + $0x88] sm:$0xff]
      %v295 = vld [vmem:[%s1 + $0x90] sm:$0xff]
      %v296 = vld [vmem:[%s1 + $0x98] sm:$0xff]
      %v297 = vld [vmem:[%s1 + $0xa0] sm:$0xff]
      %v298 = vld [vmem:[%s1 + $0xa8] sm:$0xff]
      %v299 = vld [vmem:[%s1 + $0xb0] sm:$0xff]
      %v300 = vld [vmem:[%s1 + $0xb8] sm:$0xff]
      %v301 = vld [vmem:[%s1 + $0xc0] sm:$0xff]
      %v302 = vld [vmem:[%s1 + $0xc8] sm:$0xff]
      %v303 = vld [vmem:[%s1 + $0xd0] sm:$0xff]
      %v304 = vld [vmem:[%s1 + $0xd8] sm:$0xff]
      %v305 = vld [vmem:[%s1 + $0xe0] sm:$0xff]
      %v306 = vld [vmem:[%s1 + $0xe8] sm:$0xff]
      %v307 = vld [vmem:[%s1 + $0xf0] sm:$0xff]
      %v308 = vld [vmem:[%s1 + $0xf8] sm:$0xff]
      %v309 = vld [vmem:[%s2] sm:$0xf]
      %v311 = vlaneseq
      %v312 = vshrl.u32 %v311, 7
      %v313 = vsub.s32 0, %v312
      %v314 = vrot.slane %v309, %v313
      %v315 = vlaneseq
      %v316 = vshrl.u32 %v315, 7
      %v317 = vsub.s32 1, %v316
      %v318 = vrot.slane %v309, %v317
      %v319 = vlaneseq
      %v320 = vshrl.u32 %v319, 7
      %v321 = vsub.s32 2, %v320
      %v322 = vrot.slane %v309, %v321
      %v323 = vlaneseq
      %v324 = vshrl.u32 %v323, 7
      %v325 = vsub.s32 3, %v324
      %v326 = vrot.slane %v309, %v325
      %v363 = vunpack.c.l.b16 %v277
      %v364 = vunpack.c.h.b16 %v277
      %v365 = vunpack.c.l.b16 %v278
      %v366 = vunpack.c.h.b16 %v278
      %v367 = vunpack.c.l.b16 %v279
      %v368 = vunpack.c.h.b16 %v279
      %v369 = vunpack.c.l.b16 %v280
      %v370 = vunpack.c.h.b16 %v280
      %v371 = vunpack.c.l.b16 %v281
      %v372 = vunpack.c.h.b16 %v281
      %v373 = vunpack.c.l.b16 %v282
      %v374 = vunpack.c.h.b16 %v282
      %v375 = vunpack.c.l.b16 %v283
      %v376 = vunpack.c.h.b16 %v283
      %v377 = vunpack.c.l.b16 %v284
      %v378 = vunpack.c.h.b16 %v284
      %v379 = vunpack.c.l.b16 %v285
      %v380 = vunpack.c.h.b16 %v285
      %v381 = vunpack.c.l.b16 %v286
      %v382 = vunpack.c.h.b16 %v286
      %v383 = vunpack.c.l.b16 %v287
      %v384 = vunpack.c.h.b16 %v287
      %v385 = vunpack.c.l.b16 %v288
      %v386 = vunpack.c.h.b16 %v288
      %v387 = vunpack.c.l.b16 %v289
      %v388 = vunpack.c.h.b16 %v289
      %v389 = vunpack.c.l.b16 %v290
      %v390 = vunpack.c.h.b16 %v290
      %v391 = vunpack.c.l.b16 %v291
      %v392 = vunpack.c.h.b16 %v291
      %v393 = vunpack.c.l.b16 %v292
      %v394 = vunpack.c.h.b16 %v292
      %v395 = vunpack.c.l.b16 %v293
      %v396 = vunpack.c.h.b16 %v293
      %v397 = vunpack.c.l.b16 %v294
      %v398 = vunpack.c.h.b16 %v294
      %v399 = vunpack.c.l.b16 %v295
      %v400 = vunpack.c.h.b16 %v295
      %v401 = vunpack.c.l.b16 %v296
      %v402 = vunpack.c.h.b16 %v296
      %v403 = vunpack.c.l.b16 %v297
      %v404 = vunpack.c.h.b16 %v297
      %v405 = vunpack.c.l.b16 %v298
      %v406 = vunpack.c.h.b16 %v298
      %v407 = vunpack.c.l.b16 %v299
      %v408 = vunpack.c.h.b16 %v299
      %v409 = vunpack.c.l.b16 %v300
      %v410 = vunpack.c.h.b16 %v300
      %v411 = vunpack.c.l.b16 %v301
      %v412 = vunpack.c.h.b16 %v301
      %v413 = vunpack.c.l.b16 %v302
      %v414 = vunpack.c.h.b16 %v302
      %v415 = vunpack.c.l.b16 %v303
      %v416 = vunpack.c.h.b16 %v303
      %v417 = vunpack.c.l.b16 %v304
      %v418 = vunpack.c.h.b16 %v304
      %v419 = vunpack.c.l.b16 %v305
      %v420 = vunpack.c.h.b16 %v305
      %v421 = vunpack.c.l.b16 %v306
      %v422 = vunpack.c.h.b16 %v306
      %v423 = vunpack.c.l.b16 %v307
      %v424 = vunpack.c.h.b16 %v307
      %v425 = vunpack.c.l.b16 %v308
      %v426 = vunpack.c.h.b16 %v308
      %v427 = vpack.c.b16 %v367, %v363
      %v428 = vpack.c.b16 %v368, %v364
      %v429 = vpack.c.b16 %v369, %v365
      %v430 = vpack.c.b16 %v370, %v366
      %v431 = vpack.c.b16 %v375, %v371
      %v432 = vpack.c.b16 %v376, %v372
      %v433 = vpack.c.b16 %v377, %v373
      %v434 = vpack.c.b16 %v378, %v374
      %v435 = vpack.c.b16 %v383, %v379
      %v436 = vpack.c.b16 %v384, %v380
      %v437 = vpack.c.b16 %v385, %v381
      %v438 = vpack.c.b16 %v386, %v382
      %v439 = vpack.c.b16 %v391, %v387
      %v440 = vpack.c.b16 %v392, %v388
      %v441 = vpack.c.b16 %v393, %v389
      %v442 = vpack.c.b16 %v394, %v390
      %v443 = vpack.c.b16 %v399, %v395
      %v444 = vpack.c.b16 %v400, %v396
      %v445 = vpack.c.b16 %v401, %v397
      %v446 = vpack.c.b16 %v402, %v398
      %v447 = vpack.c.b16 %v407, %v403
      %v448 = vpack.c.b16 %v408, %v404
      %v449 = vpack.c.b16 %v409, %v405
      %v450 = vpack.c.b16 %v410, %v406
      %v451 = vpack.c.b16 %v415, %v411
      %v452 = vpack.c.b16 %v416, %v412
      %v453 = vpack.c.b16 %v417, %v413
      %v454 = vpack.c.b16 %v418, %v414
      %v455 = vpack.c.b16 %v423, %v419
      %v456 = vpack.c.b16 %v424, %v420
      %v457 = vpack.c.b16 %v425, %v421
      %v458 = vpack.c.b16 %v426, %v422
      %491 = vmatprep.subr.bf16.mxu0 %v428
      %492 = vmatpush1.bf16.msra.mxu0 %v427
      %493 = vmatprep.subr.bf16.mxu0 %v432
      %494 = vmatpush1.bf16.msra.mxu0 %v431
      %495 = vmatprep.subr.bf16.mxu0 %v436
      %496 = vmatpush1.bf16.msra.mxu0 %v435
      %497 = vmatprep.subr.bf16.mxu0 %v440
      %498 = vmatpush1.bf16.msra.mxu0 %v439
      %499 = vmatprep.subr.bf16.mxu0 %v444
      %500 = vmatpush1.bf16.msra.mxu0 %v443
      %501 = vmatprep.subr.bf16.mxu0 %v448
      %502 = vmatpush1.bf16.msra.mxu0 %v447
      %503 = vmatprep.subr.bf16.mxu0 %v452
      %504 = vmatpush1.bf16.msra.mxu0 %v451
      %505 = vmatprep.subr.bf16.mxu0 %v456
      %506 = vmatpush1.bf16.msra.mxu0 %v455
      %507 = vmatprep.subr.bf16.mxu0 0
      %508 = vmatpush1.bf16.msra.mxu0 0
      %509 = vmatprep.subr.bf16.mxu0 0
      %510 = vmatpush1.bf16.msra.mxu0 0
      %511 = vmatprep.subr.bf16.mxu0 0
      %512 = vmatpush1.bf16.msra.mxu0 0
      %513 = vmatprep.subr.bf16.mxu0 0
      %514 = vmatpush1.bf16.msra.mxu0 0
      %515 = vmatprep.subr.bf16.mxu0 0
      %516 = vmatpush1.bf16.msra.mxu0 0
      %517 = vmatprep.subr.bf16.mxu0 0
      %518 = vmatpush1.bf16.msra.mxu0 0
      %519 = vmatprep.subr.bf16.mxu0 0
      %520 = vmatpush1.bf16.msra.mxu0 0
      %521 = vmatprep.subr.bf16.mxu0 0
      %522 = vmatpush1.bf16.msra.mxu0 0
      %523 = vmatprep.mubr.bf16.mxu0 0
      %524 = vmatmul.mubr.bf16.gmra.mrb[0].mxu0 %v276
      %v525 = vpop.f32.mrb[0].mxu0
      %v526 = vadd.f32 %v314, %v525
      %v527 = vpop.f32.mrb[0].mxu0
      %v528 = vadd.f32 %v318, %v527
      %v529 = vpop.f32.mrb[0].mxu0
      %v530 = vpop.f32.mrb[0].mxu0
      %531 = vdwg.mxu0
      %532 = vmatprep.subr.bf16.mxu0 %v430
      %533 = vmatpush1.bf16.msra.mxu0 %v429
      %534 = vmatprep.subr.bf16.mxu0 %v434
      %535 = vmatpush1.bf16.msra.mxu0 %v433
      %536 = vmatprep.subr.bf16.mxu0 %v438
      %537 = vmatpush1.bf16.msra.mxu0 %v437
      %538 = vmatprep.subr.bf16.mxu0 %v442
      %539 = vmatpush1.bf16.msra.mxu0 %v441
      %540 = vmatprep.subr.bf16.mxu0 %v446
      %541 = vmatpush1.bf16.msra.mxu0 %v445
      %542 = vmatprep.subr.bf16.mxu0 %v450
      %543 = vmatpush1.bf16.msra.mxu0 %v449
      %544 = vmatprep.subr.bf16.mxu0 %v454
      %545 = vmatpush1.bf16.msra.mxu0 %v453
      %546 = vmatprep.subr.bf16.mxu0 %v458
      %547 = vmatpush1.bf16.msra.mxu0 %v457
      %548 = vmatprep.subr.bf16.mxu0 0
      %549 = vmatpush1.bf16.msra.mxu0 0
      %550 = vmatprep.subr.bf16.mxu0 0
      %551 = vmatpush1.bf16.msra.mxu0 0
      %552 = vmatprep.subr.bf16.mxu0 0
      %553 = vmatpush1.bf16.msra.mxu0 0
      %554 = vmatprep.subr.bf16.mxu0 0
      %555 = vmatpush1.bf16.msra.mxu0 0
      %556 = vmatprep.subr.bf16.mxu0 0
      %557 = vmatpush1.bf16.msra.mxu0 0
      %558 = vmatprep.subr.bf16.mxu0 0
      %559 = vmatpush1.bf16.msra.mxu0 0
      %560 = vmatprep.subr.bf16.mxu0 0
      %561 = vmatpush1.bf16.msra.mxu0 0
      %562 = vmatprep.subr.bf16.mxu0 0
      %563 = vmatpush1.bf16.msra.mxu0 0
      %564 = vmatprep.mubr.bf16.mxu0 0
      %565 = vmatmul.mubr.bf16.gmra.mrb[0].mxu0 %v276
      %v566 = vpop.f32.mrb[0].mxu0
      %v567 = vadd.f32 %v322, %v566
      %v568 = vpop.f32.mrb[0].mxu0
      %v569 = vadd.f32 %v326, %v568
      %v570 = vpop.f32.mrb[0].mxu0
      %v571 = vpop.f32.mrb[0].mxu0
      %572 = vdwg.mxu0
      %v573 = vmax.f32 %v526, 0.0
      %v574 = vmax.f32 %v528, 0.0
      %v575 = vmax.f32 %v567, 0.0
      %v576 = vmax.f32 %v569, 0.0
      %v577 = vpack.c.bf16 %v573, %v573
      %v578 = vpack.c.bf16 %v574, %v574
      %v579 = vpack.c.bf16 %v575, %v575
      %v580 = vpack.c.bf16 %v576, %v576
      %v581 = vld [vmem:[%s3] sm:$0xf]
      %v582 = vld [vmem:[%s3 + $0x4] sm:$0xf]
      %v583 = vld [vmem:[%s3 + $0x8] sm:$0xf]
      %v584 = vld [vmem:[%s3 + $0xc] sm:$0xf]
      %v585 = vld [vmem:[%s3 + $0x10] sm:$0xf]
      %v586 = vld [vmem:[%s3 + $0x14] sm:$0xf]
      %v587 = vld [vmem:[%s3 + $0x18] sm:$0xf]
      %v588 = vld [vmem:[%s3 + $0x1c] sm:$0xf]
      %v589 = vld [vmem:[%s3 + $0x20] sm:$0xf]
      %v590 = vld [vmem:[%s3 + $0x24] sm:$0xf]
      %v591 = vld [vmem:[%s3 + $0x28] sm:$0xf]
      %v592 = vld [vmem:[%s3 + $0x2c] sm:$0xf]
      %v593 = vld [vmem:[%s3 + $0x30] sm:$0xf]
      %v594 = vld [vmem:[%s3 + $0x34] sm:$0xf]
      %v595 = vld [vmem:[%s3 + $0x38] sm:$0xf]
      %v596 = vld [vmem:[%s3 + $0x3c] sm:$0xf]
      %v597 = vld [vmem:[%s3 + $0x40] sm:$0xf]
      %v598 = vld [vmem:[%s3 + $0x44] sm:$0xf]
      %v599 = vld [vmem:[%s3 + $0x48] sm:$0xf]
      %v600 = vld [vmem:[%s3 + $0x4c] sm:$0xf]
      %v601 = vld [vmem:[%s3 + $0x50] sm:$0xf]
      %v602 = vld [vmem:[%s3 + $0x54] sm:$0xf]
      %v603 = vld [vmem:[%s3 + $0x58] sm:$0xf]
      %v604 = vld [vmem:[%s3 + $0x5c] sm:$0xf]
      %v605 = vld [vmem:[%s3 + $0x60] sm:$0xf]
      %v606 = vld [vmem:[%s3 + $0x64] sm:$0xf]
      %v607 = vld [vmem:[%s3 + $0x68] sm:$0xf]
      %v608 = vld [vmem:[%s3 + $0x6c] sm:$0xf]
      %v609 = vld [vmem:[%s3 + $0x70] sm:$0xf]
      %v610 = vld [vmem:[%s3 + $0x74] sm:$0xf]
      %v611 = vld [vmem:[%s3 + $0x78] sm:$0xf]
      %v612 = vld [vmem:[%s3 + $0x7c] sm:$0xf]
      %v613 = vld [vmem:[%s3 + $0x80] sm:$0xf]
      %v614 = vld [vmem:[%s3 + $0x84] sm:$0xf]
      %v615 = vld [vmem:[%s3 + $0x88] sm:$0xf]
      %v616 = vld [vmem:[%s3 + $0x8c] sm:$0xf]
      %v617 = vld [vmem:[%s3 + $0x90] sm:$0xf]
      %v618 = vld [vmem:[%s3 + $0x94] sm:$0xf]
      %v619 = vld [vmem:[%s3 + $0x98] sm:$0xf]
      %v620 = vld [vmem:[%s3 + $0x9c] sm:$0xf]
      %v621 = vld [vmem:[%s3 + $0xa0] sm:$0xf]
      %v622 = vld [vmem:[%s3 + $0xa4] sm:$0xf]
      %v623 = vld [vmem:[%s3 + $0xa8] sm:$0xf]
      %v624 = vld [vmem:[%s3 + $0xac] sm:$0xf]
      %v625 = vld [vmem:[%s3 + $0xb0] sm:$0xf]
      %v626 = vld [vmem:[%s3 + $0xb4] sm:$0xf]
      %v627 = vld [vmem:[%s3 + $0xb8] sm:$0xf]
      %v628 = vld [vmem:[%s3 + $0xbc] sm:$0xf]
      %v629 = vld [vmem:[%s3 + $0xc0] sm:$0xf]
      %v630 = vld [vmem:[%s3 + $0xc4] sm:$0xf]
      %v631 = vld [vmem:[%s3 + $0xc8] sm:$0xf]
      %v632 = vld [vmem:[%s3 + $0xcc] sm:$0xf]
      %v633 = vld [vmem:[%s3 + $0xd0] sm:$0xf]
      %v634 = vld [vmem:[%s3 + $0xd4] sm:$0xf]
      %v635 = vld [vmem:[%s3 + $0xd8] sm:$0xf]
      %v636 = vld [vmem:[%s3 + $0xdc] sm:$0xf]
      %v637 = vld [vmem:[%s3 + $0xe0] sm:$0xf]
      %v638 = vld [vmem:[%s3 + $0xe4] sm:$0xf]
      %v639 = vld [vmem:[%s3 + $0xe8] sm:$0xf]
      %v640 = vld [vmem:[%s3 + $0xec] sm:$0xf]
      %v641 = vld [vmem:[%s3 + $0xf0] sm:$0xf]
      %v642 = vld [vmem:[%s3 + $0xf4] sm:$0xf]
      %v643 = vld [vmem:[%s3 + $0xf8] sm:$0xf]
      %v644 = vld [vmem:[%s3 + $0xfc] sm:$0xf]
      %v645 = vld [vmem:[%s4] sm:$0x1]
      %v647 = vlaneseq
      %v648 = vshrl.u32 %v647, 7
      %v649 = vsub.s32 0, %v648
      %v650 = vrot.slane %v645, %v649
      %v716 = vunpack.c.l.b16 %v581
      %v717 = vunpack.c.l.b16 %v582
      %v718 = vunpack.c.l.b16 %v583
      %v719 = vunpack.c.l.b16 %v584
      %v720 = vunpack.c.l.b16 %v585
      %v721 = vunpack.c.l.b16 %v586
      %v722 = vunpack.c.l.b16 %v587
      %v723 = vunpack.c.l.b16 %v588
      %v724 = vunpack.c.l.b16 %v589
      %v725 = vunpack.c.l.b16 %v590
      %v726 = vunpack.c.l.b16 %v591
      %v727 = vunpack.c.l.b16 %v592
      %v728 = vunpack.c.l.b16 %v593
      %v729 = vunpack.c.l.b16 %v594
      %v730 = vunpack.c.l.b16 %v595
      %v731 = vunpack.c.l.b16 %v596
      %v732 = vunpack.c.l.b16 %v597
      %v733 = vunpack.c.l.b16 %v598
      %v734 = vunpack.c.l.b16 %v599
      %v735 = vunpack.c.l.b16 %v600
      %v736 = vunpack.c.l.b16 %v601
      %v737 = vunpack.c.l.b16 %v602
      %v738 = vunpack.c.l.b16 %v603
      %v739 = vunpack.c.l.b16 %v604
      %v740 = vunpack.c.l.b16 %v605
      %v741 = vunpack.c.l.b16 %v606
      %v742 = vunpack.c.l.b16 %v607
      %v743 = vunpack.c.l.b16 %v608
      %v744 = vunpack.c.l.b16 %v609
      %v745 = vunpack.c.l.b16 %v610
      %v746 = vunpack.c.l.b16 %v611
      %v747 = vunpack.c.l.b16 %v612
      %v748 = vunpack.c.l.b16 %v613
      %v749 = vunpack.c.l.b16 %v614
      %v750 = vunpack.c.l.b16 %v615
      %v751 = vunpack.c.l.b16 %v616
      %v752 = vunpack.c.l.b16 %v617
      %v753 = vunpack.c.l.b16 %v618
      %v754 = vunpack.c.l.b16 %v619
      %v755 = vunpack.c.l.b16 %v620
      %v756 = vunpack.c.l.b16 %v621
      %v757 = vunpack.c.l.b16 %v622
      %v758 = vunpack.c.l.b16 %v623
      %v759 = vunpack.c.l.b16 %v624
      %v760 = vunpack.c.l.b16 %v625
      %v761 = vunpack.c.l.b16 %v626
      %v762 = vunpack.c.l.b16 %v627
      %v763 = vunpack.c.l.b16 %v628
      %v764 = vunpack.c.l.b16 %v629
      %v765 = vunpack.c.l.b16 %v630
      %v766 = vunpack.c.l.b16 %v631
      %v767 = vunpack.c.l.b16 %v632
      %v768 = vunpack.c.l.b16 %v633
      %v769 = vunpack.c.l.b16 %v634
      %v770 = vunpack.c.l.b16 %v635
      %v771 = vunpack.c.l.b16 %v636
      %v772 = vunpack.c.l.b16 %v637
      %v773 = vunpack.c.l.b16 %v638
      %v774 = vunpack.c.l.b16 %v639
      %v775 = vunpack.c.l.b16 %v640
      %v776 = vunpack.c.l.b16 %v641
      %v777 = vunpack.c.l.b16 %v642
      %v778 = vunpack.c.l.b16 %v643
      %v779 = vunpack.c.l.b16 %v644
      %v780 = vpack.c.b16 %v717, %v716
      %v781 = vpack.c.b16 %v719, %v718
      %v782 = vpack.c.b16 %v721, %v720
      %v783 = vpack.c.b16 %v723, %v722
      %v784 = vpack.c.b16 %v725, %v724
      %v785 = vpack.c.b16 %v727, %v726
      %v786 = vpack.c.b16 %v729, %v728
      %v787 = vpack.c.b16 %v731, %v730
      %v788 = vpack.c.b16 %v733, %v732
      %v789 = vpack.c.b16 %v735, %v734
      %v790 = vpack.c.b16 %v737, %v736
      %v791 = vpack.c.b16 %v739, %v738
      %v792 = vpack.c.b16 %v741, %v740
      %v793 = vpack.c.b16 %v743, %v742
      %v794 = vpack.c.b16 %v745, %v744
      %v795 = vpack.c.b16 %v747, %v746
      %v796 = vpack.c.b16 %v749, %v748
      %v797 = vpack.c.b16 %v751, %v750
      %v798 = vpack.c.b16 %v753, %v752
      %v799 = vpack.c.b16 %v755, %v754
      %v800 = vpack.c.b16 %v757, %v756
      %v801 = vpack.c.b16 %v759, %v758
      %v802 = vpack.c.b16 %v761, %v760
      %v803 = vpack.c.b16 %v763, %v762
      %v804 = vpack.c.b16 %v765, %v764
      %v805 = vpack.c.b16 %v767, %v766
      %v806 = vpack.c.b16 %v769, %v768
      %v807 = vpack.c.b16 %v771, %v770
      %v808 = vpack.c.b16 %v773, %v772
      %v809 = vpack.c.b16 %v775, %v774
      %v810 = vpack.c.b16 %v777, %v776
      %v811 = vpack.c.b16 %v779, %v778
      %844 = vmatprep.subr.bf16.mxu0 0
      %845 = vmatpush1.bf16.msra.mxu0 %v780
      %846 = vmatprep.subr.bf16.mxu0 0
      %847 = vmatpush1.bf16.msra.mxu0 %v781
      %848 = vmatprep.subr.bf16.mxu0 0
      %849 = vmatpush1.bf16.msra.mxu0 %v782
      %850 = vmatprep.subr.bf16.mxu0 0
      %851 = vmatpush1.bf16.msra.mxu0 %v783
      %852 = vmatprep.subr.bf16.mxu0 0
      %853 = vmatpush1.bf16.msra.mxu0 %v784
      %854 = vmatprep.subr.bf16.mxu0 0
      %855 = vmatpush1.bf16.msra.mxu0 %v785
      %856 = vmatprep.subr.bf16.mxu0 0
      %857 = vmatpush1.bf16.msra.mxu0 %v786
      %858 = vmatprep.subr.bf16.mxu0 0
      %859 = vmatpush1.bf16.msra.mxu0 %v787
      %860 = vmatprep.subr.bf16.mxu0 0
      %861 = vmatpush1.bf16.msra.mxu0 %v788
      %862 = vmatprep.subr.bf16.mxu0 0
      %863 = vmatpush1.bf16.msra.mxu0 %v789
      %864 = vmatprep.subr.bf16.mxu0 0
      %865 = vmatpush1.bf16.msra.mxu0 %v790
      %866 = vmatprep.subr.bf16.mxu0 0
      %867 = vmatpush1.bf16.msra.mxu0 %v791
      %868 = vmatprep.subr.bf16.mxu0 0
      %869 = vmatpush1.bf16.msra.mxu0 %v792
      %870 = vmatprep.subr.bf16.mxu0 0
      %871 = vmatpush1.bf16.msra.mxu0 %v793
      %872 = vmatprep.subr.bf16.mxu0 0
      %873 = vmatpush1.bf16.msra.mxu0 %v794
      %874 = vmatprep.subr.bf16.mxu0 0
      %875 = vmatpush1.bf16.msra.mxu0 %v795
      %876 = vmatprep.mubr.bf16.mxu0 %v578
      %877 = vmatmul.mubr.bf16.gmra.mrb[0].mxu0 %v577
      %v878 = vpop.f32.mrb[0].mxu0
      %v879 = vadd.f32 %v650, %v878
      %v880 = vpop.f32.mrb[0].mxu0
      %v881 = vpop.f32.mrb[0].mxu0
      %v882 = vpop.f32.mrb[0].mxu0
      %883 = vdwg.mxu0
      %884 = vmatprep.subr.bf16.mxu0 0
      %885 = vmatpush1.bf16.msra.mxu0 %v796
      %886 = vmatprep.subr.bf16.mxu0 0
      %887 = vmatpush1.bf16.msra.mxu0 %v797
      %888 = vmatprep.subr.bf16.mxu0 0
      %889 = vmatpush1.bf16.msra.mxu0 %v798
      %890 = vmatprep.subr.bf16.mxu0 0
      %891 = vmatpush1.bf16.msra.mxu0 %v799
      %892 = vmatprep.subr.bf16.mxu0 0
      %893 = vmatpush1.bf16.msra.mxu0 %v800
      %894 = vmatprep.subr.bf16.mxu0 0
      %895 = vmatpush1.bf16.msra.mxu0 %v801
      %896 = vmatprep.subr.bf16.mxu0 0
      %897 = vmatpush1.bf16.msra.mxu0 %v802
      %898 = vmatprep.subr.bf16.mxu0 0
      %899 = vmatpush1.bf16.msra.mxu0 %v803
      %900 = vmatprep.subr.bf16.mxu0 0
      %901 = vmatpush1.bf16.msra.mxu0 %v804
      %902 = vmatprep.subr.bf16.mxu0 0
      %903 = vmatpush1.bf16.msra.mxu0 %v805
      %904 = vmatprep.subr.bf16.mxu0 0
      %905 = vmatpush1.bf16.msra.mxu0 %v806
      %906 = vmatprep.subr.bf16.mxu0 0
      %907 = vmatpush1.bf16.msra.mxu0 %v807
      %908 = vmatprep.subr.bf16.mxu0 0
      %909 = vmatpush1.bf16.msra.mxu0 %v808
      %910 = vmatprep.subr.bf16.mxu0 0
      %911 = vmatpush1.bf16.msra.mxu0 %v809
      %912 = vmatprep.subr.bf16.mxu0 0
      %913 = vmatpush1.bf16.msra.mxu0 %v810
      %914 = vmatprep.subr.bf16.mxu0 0
      %915 = vmatpush1.bf16.msra.mxu0 %v811
      %916 = vmatprep.mubr.bf16.mxu0 %v580
      %917 = vmatmul.mubr.bf16.gmra.mrb[0].mxu0 %v579
      %v918 = vpop.f32.mrb[0].mxu0
      %v919 = vadd.f32 %v879, %v918
      %v920 = vpop.f32.mrb[0].mxu0
      %v921 = vpop.f32.mrb[0].mxu0
      %v922 = vpop.f32.mrb[0].mxu0
      %923 = vdwg.mxu0
      %v924 = vadd.f32 %v275, %v919
      %925 = vadd.xlane.f32.xlu0 %v924
      %v926 = vpop.xlane.xlu0 %925
      %v927 = vrcp.pop 128.0
      %v928 = vmul.f32 %v926, %v927
      %v929 = vsub.f32 %v924, %v928
      %v930 = vmul.f32 %v929, %v929
      %931 = vadd.xlane.f32.xlu0 %v930
      %v932 = vpop.xlane.xlu0 %931
      %v933 = vmul.f32 %v932, %v927
      %v934 = vadd.f32 %v933, 1e-05
      %v935 = vrsqrt.pop %v934
      %v936 = vmul.f32 %v929, %v935
      %v937 = vld [vmem:[%s5] sm:$0x1]
      %v939 = vlaneseq
      %v940 = vshrl.u32 %v939, 7
      %v941 = vsub.s32 0, %v940
      %v942 = vrot.slane %v937, %v941
      %v944 = vmul.f32 %v936, %v942
      %v945 = vld [vmem:[%s6] sm:$0x1]
      %v947 = vlaneseq
      %v948 = vshrl.u32 %v947, 7
      %v949 = vsub.s32 0, %v948
      %v950 = vrot.slane %v945, %v949
      %v952 = vadd.f32 %v944, %v950
      %953 = vst [vmem:[%s273] sm:$0xff] %v952
      %p954 = scmp.lt.s32.totalorder %s18, 1
      %s955 = scalar_select %p954, %s18, 1
      %s956 = smul.addr %s955, 8
      %s957 = scalar_lea.vmem %s7, %s956
      // Predicated region
      $region49: #{simple_llm_forward.8} parent=47 // pred_check
        %p958 = pneg %p188
      $region50: #{simple_llm_forward.8} parent=47 // pred_check_branch
        %960 = sbr.rel (%p958) target = $region52
      $region51: #{simple_llm_forward.8} parent=47 // pred_region
        _
      $region52: #{simple_llm_forward.8} parent=47 // pred_fallthru
        _
    $region48: #{simple_llm_forward.8} parent=5 // pred_fallthru
      _
    %p961 = scmp.le.s32.totalorder 2, %s13
    // Predicated region
    $region53: #{simple_llm_forward.8} parent=5 // pred_check
      %p962 = pneg %p961
    $region54: #{simple_llm_forward.8} parent=5 // pred_check_branch
      %964 = sbr.rel (%p962) target = $region56
    $region55: #{simple_llm_forward.8} parent=5 // pred_region
      %s965 = ssub.s32 %s13, 2
      // Predicated region
      $region57: #{simple_llm_forward.8} parent=55 // pred_check
        %p966 = pneg %p194
      $region58: #{simple_llm_forward.8} parent=55 // pred_check_branch
        %968 = sbr.rel (%p966) target = $region60
      $region59: #{simple_llm_forward.8} parent=55 // pred_region
        %p969 = scmp.lt.s32.totalorder %s19, 1
        %s970 = scalar_select %p969, %s19, 1
        %s971 = smul.addr %s970, 8
        %s972 = scalar_lea.vmem %s7, %s971
      $region60: #{simple_llm_forward.8} parent=55 // pred_fallthru
        _
    $region56: #{simple_llm_forward.8} parent=5 // pred_fallthru
      _
  $region6: #{simple_llm_forward.8} parent=0 // loop_footer
    %s17 = sadd.s32 1, %s13
  $region7: #{simple_llm_forward.8} parent=0 // loop_footer_branch
    %12 = sbr.rel target = $region3
  $region8: #{simple_llm_forward.8} parent=0 // loop_exit
    _

// kernel: simple_llm_forward.7
$region0: #{simple_llm_forward.7}
  #allocation0 [shape = 'u32[]', space=smem, size = 0x4, offset = 0x4, fixed_abs, tag = 'smem constant byte address 0x4 - core index']
  #allocation1 [shape = 'u32[144,128]{1,0:T(1,128)}', space=vmem, size = 0x12000, scoped, tag = 'internal scratch']
  %s0 = inlined_call_operand.vmem [shape: f32[16,128], index: 0, kind: input, shape index: {}]
  %s1 = inlined_call_operand.vmem [shape: bf16[128,384], index: 1, kind: input, shape index: {}]
  %s2 = inlined_call_operand.vmem [shape: f32[1,384], index: 2, kind: input, shape index: {}]
  %s3 = inlined_call_operand.vmem [shape: bf16[128,128], index: 3, kind: input, shape index: {}]
  %s4 = inlined_call_operand.vmem [shape: f32[1,128], index: 4, kind: input, shape index: {}]
  %s5 = inlined_call_operand.vmem [shape: f32[1,128], index: 5, kind: input, shape index: {}]
  %s6 = inlined_call_operand.vmem [shape: f32[1,128], index: 6, kind: input, shape index: {}]
  %s7 = inlined_call_operand.vmem [shape: f32[16,128], index: 7, kind: output, shape index: {}]
  %s8 = sld [smem:[#allocation0]]
  $region61: #{simple_llm_forward.7} parent=0
    _
  %s10 = ssub.s32 1, %s8
  %s11 = scalar_select 0, %s10, %s8
  loop: start=0, step=1, limit=4
  $region2: #{simple_llm_forward.7} parent=0 // loop_pre_header
    _
  $region3: #{simple_llm_forward.7} parent=0 // loop_header
    %s13 = sphi 0, %s17
    %p14 = scmp.ge.s32.totalorder %s13, 4
    %s23 = sphi 0, %s25
    %s26 = sphi 0, %s23
    %s27 = sphi 0, %s26
    %s43 = sphi 0, %s27
    %s47 = sphi 0, %s47
    %s49 = sphi 0, %s47
    %s50 = sphi 0, %s49
    %s64 = sphi 0, %s50
    %s68 = sphi 0, %s68
    %s70 = sphi 0, %s68
    %s71 = sphi 0, %s70
    %s85 = sphi 0, %s71
    %s89 = sphi 0, %s89
    %s91 = sphi 0, %s89
    %s92 = sphi 0, %s91
    %s106 = sphi 0, %s92
    %s110 = sphi 0, %s110
    %s112 = sphi 0, %s110
    %s113 = sphi 0, %s112
    %s127 = sphi 0, %s113
    %s131 = sphi 0, %s131
    %s133 = sphi 0, %s131
    %s134 = sphi 0, %s133
    %s148 = sphi 0, %s134
    %s152 = sphi 0, %s152
    %s154 = sphi 0, %s152
    %s155 = sphi 0, %s154
    %s169 = sphi 0, %s155
    %s175 = sphi 0, %s177
    %s178 = sphi 0, %s175
    %s179 = sphi 0, %s178
    %s195 = sphi 0, %s179
  $region4: #{simple_llm_forward.7} parent=0 // loop_header_branch
    %16 = sbr.rel (%p14) target = $region8
  $region5: #{simple_llm_forward.7} parent=0 // loop_body
    %s18 = ssub.s32 %s13, 1
    %s19 = ssub.s32 %s13, 2
    %s20 = sadd.s32 %s13, 1
    %s21 = ssub.s32 %s13, %s20
    %p22 = scmp.eq.s32.totalorder %s21, 0
    %s24 = sadd.s32 %s23, 1
    %s25 = scalar_select %p22, %s23, %s24
    %p28 = pneg %p22
    %p29 = scmp.eq.s32.totalorder %s13, 1
    %p30 = por %p28, %p29
    %p31 = scmp.ne.s32.totalorder %s23, %s26
    %p32 = scmp.eq.s32.totalorder %s13, 0
    %p33 = por %p31, %p32
    %p34 = scmp.ne.s32.totalorder %s23, %s26
    %p35 = scmp.eq.s32.totalorder %s18, 1
    %p36 = por %p34, %p35
    %p37 = scmp.ne.s32.totalorder %s26, %s27
    %p38 = scmp.eq.s32.totalorder %s18, 0
    %p39 = por %p37, %p38
    %p40 = scmp.ne.s32.totalorder %s26, %s27
    %p41 = scmp.eq.s32.totalorder %s19, 1
    %p42 = por %p40, %p41
    %p44 = scmp.ne.s32.totalorder %s27, %s43
    %p45 = scmp.eq.s32.totalorder %s19, 0
    %p46 = por %p44, %p45
    %s48 = sadd.s32 %s47, 1
    %p51 = scmp.eq.s32.totalorder %s13, 1
    %p52 = scmp.ne.s32.totalorder %s47, %s49
    %p53 = scmp.eq.s32.totalorder %s13, 0
    %p54 = por %p52, %p53
    %p55 = scmp.ne.s32.totalorder %s47, %s49
    %p56 = scmp.eq.s32.totalorder %s18, 1
    %p57 = por %p55, %p56
    %p58 = scmp.ne.s32.totalorder %s49, %s50
    %p59 = scmp.eq.s32.totalorder %s18, 0
    %p60 = por %p58, %p59
    %p61 = scmp.ne.s32.totalorder %s49, %s50
    %p62 = scmp.eq.s32.totalorder %s19, 1
    %p63 = por %p61, %p62
    %p65 = scmp.ne.s32.totalorder %s50, %s64
    %p66 = scmp.eq.s32.totalorder %s19, 0
    %p67 = por %p65, %p66
    %s69 = sadd.s32 %s68, 1
    %p72 = scmp.eq.s32.totalorder %s13, 1
    %p73 = scmp.ne.s32.totalorder %s68, %s70
    %p74 = scmp.eq.s32.totalorder %s13, 0
    %p75 = por %p73, %p74
    %p76 = scmp.ne.s32.totalorder %s68, %s70
    %p77 = scmp.eq.s32.totalorder %s18, 1
    %p78 = por %p76, %p77
    %p79 = scmp.ne.s32.totalorder %s70, %s71
    %p80 = scmp.eq.s32.totalorder %s18, 0
    %p81 = por %p79, %p80
    %p82 = scmp.ne.s32.totalorder %s70, %s71
    %p83 = scmp.eq.s32.totalorder %s19, 1
    %p84 = por %p82, %p83
    %p86 = scmp.ne.s32.totalorder %s71, %s85
    %p87 = scmp.eq.s32.totalorder %s19, 0
    %p88 = por %p86, %p87
    %s90 = sadd.s32 %s89, 1
    %p93 = scmp.eq.s32.totalorder %s13, 1
    %p94 = scmp.ne.s32.totalorder %s89, %s91
    %p95 = scmp.eq.s32.totalorder %s13, 0
    %p96 = por %p94, %p95
    %p97 = scmp.ne.s32.totalorder %s89, %s91
    %p98 = scmp.eq.s32.totalorder %s18, 1
    %p99 = por %p97, %p98
    %p100 = scmp.ne.s32.totalorder %s91, %s92
    %p101 = scmp.eq.s32.totalorder %s18, 0
    %p102 = por %p100, %p101
    %p103 = scmp.ne.s32.totalorder %s91, %s92
    %p104 = scmp.eq.s32.totalorder %s19, 1
    %p105 = por %p103, %p104
    %p107 = scmp.ne.s32.totalorder %s92, %s106
    %p108 = scmp.eq.s32.totalorder %s19, 0
    %p109 = por %p107, %p108
    %s111 = sadd.s32 %s110, 1
    %p114 = scmp.eq.s32.totalorder %s13, 1
    %p115 = scmp.ne.s32.totalorder %s110, %s112
    %p116 = scmp.eq.s32.totalorder %s13, 0
    %p117 = por %p115, %p116
    %p118 = scmp.ne.s32.totalorder %s110, %s112
    %p119 = scmp.eq.s32.totalorder %s18, 1
    %p120 = por %p118, %p119
    %p121 = scmp.ne.s32.totalorder %s112, %s113
    %p122 = scmp.eq.s32.totalorder %s18, 0
    %p123 = por %p121, %p122
    %p124 = scmp.ne.s32.totalorder %s112, %s113
    %p125 = scmp.eq.s32.totalorder %s19, 1
    %p126 = por %p124, %p125
    %p128 = scmp.ne.s32.totalorder %s113, %s127
    %p129 = scmp.eq.s32.totalorder %s19, 0
    %p130 = por %p128, %p129
    %s132 = sadd.s32 %s131, 1
    %p135 = scmp.eq.s32.totalorder %s13, 1
    %p136 = scmp.ne.s32.totalorder %s131, %s133
    %p137 = scmp.eq.s32.totalorder %s13, 0
    %p138 = por %p136, %p137
    %p139 = scmp.ne.s32.totalorder %s131, %s133
    %p140 = scmp.eq.s32.totalorder %s18, 1
    %p141 = por %p139, %p140
    %p142 = scmp.ne.s32.totalorder %s133, %s134
    %p143 = scmp.eq.s32.totalorder %s18, 0
    %p144 = por %p142, %p143
    %p145 = scmp.ne.s32.totalorder %s133, %s134
    %p146 = scmp.eq.s32.totalorder %s19, 1
    %p147 = por %p145, %p146
    %p149 = scmp.ne.s32.totalorder %s134, %s148
    %p150 = scmp.eq.s32.totalorder %s19, 0
    %p151 = por %p149, %p150
    %s153 = sadd.s32 %s152, 1
    %p156 = scmp.eq.s32.totalorder %s13, 1
    %p157 = scmp.ne.s32.totalorder %s152, %s154
    %p158 = scmp.eq.s32.totalorder %s13, 0
    %p159 = por %p157, %p158
    %p160 = scmp.ne.s32.totalorder %s152, %s154
    %p161 = scmp.eq.s32.totalorder %s18, 1
    %p162 = por %p160, %p161
    %p163 = scmp.ne.s32.totalorder %s154, %s155
    %p164 = scmp.eq.s32.totalorder %s18, 0
    %p165 = por %p163, %p164
    %p166 = scmp.ne.s32.totalorder %s154, %s155
    %p167 = scmp.eq.s32.totalorder %s19, 1
    %p168 = por %p166, %p167
    %p170 = scmp.ne.s32.totalorder %s155, %s169
    %p171 = scmp.eq.s32.totalorder %s19, 0
    %p172 = por %p170, %p171
    %s173 = ssub.s32 %s13, %s20
    %p174 = scmp.eq.s32.totalorder %s173, 0
    %s176 = sadd.s32 %s175, 1
    %s177 = scalar_select %p174, %s175, %s176
    %p180 = pneg %p174
    %p181 = scmp.eq.s32.totalorder %s13, 1
    %p182 = por %p180, %p181
    %p183 = scmp.ne.s32.totalorder %s175, %s178
    %p184 = scmp.eq.s32.totalorder %s13, 0
    %p185 = por %p183, %p184
    %p186 = scmp.ne.s32.totalorder %s175, %s178
    %p187 = scmp.eq.s32.totalorder %s18, 1
    %p188 = por %p186, %p187
    %p189 = scmp.ne.s32.totalorder %s178, %s179
    %p190 = scmp.eq.s32.totalorder %s18, 0
    %p191 = por %p189, %p190
    %p192 = scmp.ne.s32.totalorder %s178, %s179
    %p193 = scmp.eq.s32.totalorder %s19, 1
    %p194 = por %p192, %p193
    %p196 = scmp.ne.s32.totalorder %s179, %s195
    %p197 = scmp.eq.s32.totalorder %s19, 0
    %p198 = por %p196, %p197
    %p199 = scmp.le.s32.totalorder 1, %s13
    %p200 = scmp.lt.s32.totalorder %s13, 3
    %p201 = pnand %p199, %p200
    %p202 = pneg %p201
    // Predicated region
    $region9: #{simple_llm_forward.7} parent=5 // pred_check
      _
    $region10: #{simple_llm_forward.7} parent=5 // pred_check_branch
      %204 = sbr.rel (%p201) target = $region12
    $region11: #{simple_llm_forward.7} parent=5 // pred_region
      %s205 = ssub.s32 %s13, 1
      // Predicated region
      $region13: #{simple_llm_forward.7} parent=11 // pred_check
        %p206 = pneg %p60
      $region14: #{simple_llm_forward.7} parent=11 // pred_check_branch
        %208 = sbr.rel (%p206) target = $region16
      $region15: #{simple_llm_forward.7} parent=11 // pred_region
        _
      $region16: #{simple_llm_forward.7} parent=11 // pred_fallthru
        _
      // Predicated region
      $region17: #{simple_llm_forward.7} parent=11 // pred_check
        %p209 = pneg %p81
      $region18: #{simple_llm_forward.7} parent=11 // pred_check_branch
        %211 = sbr.rel (%p209) target = $region20
      $region19: #{simple_llm_forward.7} parent=11 // pred_region
        _
      $region20: #{simple_llm_forward.7} parent=11 // pred_fallthru
        _
      // Predicated region
      $region21: #{simple_llm_forward.7} parent=11 // pred_check
        %p212 = pneg %p102
      $region22: #{simple_llm_forward.7} parent=11 // pred_check_branch
        %214 = sbr.rel (%p212) target = $region24
      $region23: #{simple_llm_forward.7} parent=11 // pred_region
        _
      $region24: #{simple_llm_forward.7} parent=11 // pred_fallthru
        _
      // Predicated region
      $region25: #{simple_llm_forward.7} parent=11 // pred_check
        %p215 = pneg %p123
      $region26: #{simple_llm_forward.7} parent=11 // pred_check_branch
        %217 = sbr.rel (%p215) target = $region28
      $region27: #{simple_llm_forward.7} parent=11 // pred_region
        _
      $region28: #{simple_llm_forward.7} parent=11 // pred_fallthru
        _
      // Predicated region
      $region29: #{simple_llm_forward.7} parent=11 // pred_check
        %p218 = pneg %p144
      $region30: #{simple_llm_forward.7} parent=11 // pred_check_branch
        %220 = sbr.rel (%p218) target = $region32
      $region31: #{simple_llm_forward.7} parent=11 // pred_region
        _
      $region32: #{simple_llm_forward.7} parent=11 // pred_fallthru
        _
      // Predicated region
      $region33: #{simple_llm_forward.7} parent=11 // pred_check
        %p221 = pneg %p165
      $region34: #{simple_llm_forward.7} parent=11 // pred_check_branch
        %223 = sbr.rel (%p221) target = $region36
      $region35: #{simple_llm_forward.7} parent=11 // pred_region
        _
      $region36: #{simple_llm_forward.7} parent=11 // pred_fallthru
        _
    $region12: #{simple_llm_forward.7} parent=5 // pred_fallthru
      _
    %p224 = scmp.lt.s32.totalorder %s13, 2
    // Predicated region
    $region37: #{simple_llm_forward.7} parent=5 // pred_check
      %p225 = pneg %p224
    $region38: #{simple_llm_forward.7} parent=5 // pred_check_branch
      %227 = sbr.rel (%p225) target = $region40
    $region39: #{simple_llm_forward.7} parent=5 // pred_region
      // Predicated region
      $region41: #{simple_llm_forward.7} parent=39 // pred_check
        %p228 = pneg %p33
      $region42: #{simple_llm_forward.7} parent=39 // pred_check_branch
        %230 = sbr.rel (%p228) target = $region44
      $region43: #{simple_llm_forward.7} parent=39 // pred_region
        %p231 = scmp.lt.s32.totalorder %s13, 1
        %s232 = scalar_select %p231, %s13, 1
        %s233 = smul.addr %s232, 8
        %s234 = scalar_lea.vmem %s0, %s233
      $region44: #{simple_llm_forward.7} parent=39 // pred_fallthru
        _
    $region40: #{simple_llm_forward.7} parent=5 // pred_fallthru
      _
    %p235 = scmp.le.s32.totalorder 1, %s13
    %p236 = scmp.lt.s32.totalorder %s13, 3
    %p237 = pnand %p235, %p236
    %p238 = pneg %p237
    // Predicated region
    $region45: #{simple_llm_forward.7} parent=5 // pred_check
      _
    $region46: #{simple_llm_forward.7} parent=5 // pred_check_branch
      %240 = sbr.rel (%p237) target = $region48
    $region47: #{simple_llm_forward.7} parent=5 // pred_region
      %s241 = ssub.s32 %s13, 1
      %p242 = scmp.lt.s32.totalorder %s18, 1
      %s243 = scalar_select %p242, %s18, 1
      %s244 = smul.addr %s243, 8
      %s245 = scalar_lea.vmem %s0, %s244
      %p246 = pneg %p39
      %p247 = pneg %p36
      %p248 = pneg %p60
      %p249 = pneg %p57
      %p250 = pneg %p81
      %p251 = pneg %p78
      %p252 = pneg %p102
      %p253 = pneg %p99
      %p254 = pneg %p123
      %p255 = pneg %p120
      %p256 = pneg %p144
      %p257 = pneg %p141
      %p258 = pneg %p165
      %p259 = pneg %p162
      %p260 = pneg %p191
      %p261 = pneg %p188
      %p262 = scmp.lt.s32.totalorder %s18, 1
      %s263 = scalar_select %p262, %s18, 1
      %s264 = smul.addr %s263, 8
      %s265 = scalar_lea.vmem %s7, %s264
      %p266 = scmp.lt.s32.totalorder %s18, 1
      %s267 = scalar_select %p266, %s18, 1
      %s268 = smul.addr %s267, 8
      %s269 = scalar_lea.vmem %s0, %s268
      %p270 = scmp.lt.s32.totalorder %s18, 1
      %s271 = scalar_select %p270, %s18, 1
      %s272 = smul.addr %s271, 8
      %s273 = scalar_lea.vmem %s7, %s272
      %v275 = vld [vmem:[%s269] sm:$0xff]
      %v276 = vpack.c.bf16 %v275, %v275
      %v277 = vld [vmem:[%s1] sm:$0xff]
      %v278 = vld [vmem:[%s1 + $0x8] sm:$0xf]
      %v279 = vld [vmem:[%s1 + $0xc] sm:$0xff]
      %v280 = vld [vmem:[%s1 + $0x14] sm:$0xf]
      %v281 = vld [vmem:[%s1 + $0x18] sm:$0xff]
      %v282 = vld [vmem:[%s1 + $0x20] sm:$0xf]
      %v283 = vld [vmem:[%s1 + $0x24] sm:$0xff]
      %v284 = vld [vmem:[%s1 + $0x2c] sm:$0xf]
      %v285 = vld [vmem:[%s1 + $0x30] sm:$0xff]
      %v286 = vld [vmem:[%s1 + $0x38] sm:$0xf]
      %v287 = vld [vmem:[%s1 + $0x3c] sm:$0xff]
      %v288 = vld [vmem:[%s1 + $0x44] sm:$0xf]
      %v289 = vld [vmem:[%s1 + $0x48] sm:$0xff]
      %v290 = vld [vmem:[%s1 + $0x50] sm:$0xf]
      %v291 = vld [vmem:[%s1 + $0x54] sm:$0xff]
      %v292 = vld [vmem:[%s1 + $0x5c] sm:$0xf]
      %v293 = vld [vmem:[%s1 + $0x60] sm:$0xff]
      %v294 = vld [vmem:[%s1 + $0x68] sm:$0xf]
      %v295 = vld [vmem:[%s1 + $0x6c] sm:$0xff]
      %v296 = vld [vmem:[%s1 + $0x74] sm:$0xf]
      %v297 = vld [vmem:[%s1 + $0x78] sm:$0xff]
      %v298 = vld [vmem:[%s1 + $0x80] sm:$0xf]
      %v299 = vld [vmem:[%s1 + $0x84] sm:$0xff]
      %v300 = vld [vmem:[%s1 + $0x8c] sm:$0xf]
      %v301 = vld [vmem:[%s1 + $0x90] sm:$0xff]
      %v302 = vld [vmem:[%s1 + $0x98] sm:$0xf]
      %v303 = vld [vmem:[%s1 + $0x9c] sm:$0xff]
      %v304 = vld [vmem:[%s1 + $0xa4] sm:$0xf]
      %v305 = vld [vmem:[%s1 + $0xa8] sm:$0xff]
      %v306 = vld [vmem:[%s1 + $0xb0] sm:$0xf]
      %v307 = vld [vmem:[%s1 + $0xb4] sm:$0xff]
      %v308 = vld [vmem:[%s1 + $0xbc] sm:$0xf]
      %v309 = vld [vmem:[%s2] sm:$0x7]
      %v311 = vlaneseq
      %v312 = vshrl.u32 %v311, 7
      %v313 = vsub.s32 0, %v312
      %v314 = vrot.slane %v309, %v313
      %v315 = vlaneseq
      %v316 = vshrl.u32 %v315, 7
      %v317 = vsub.s32 1, %v316
      %v318 = vrot.slane %v309, %v317
      %v319 = vlaneseq
      %v320 = vshrl.u32 %v319, 7
      %v321 = vsub.s32 2, %v320
      %v322 = vrot.slane %v309, %v321
      %v358 = vunpack.c.l.b16 %v277
      %v359 = vunpack.c.h.b16 %v277
      %v360 = vunpack.c.l.b16 %v278
      %v361 = vunpack.c.l.b16 %v279
      %v362 = vunpack.c.h.b16 %v279
      %v363 = vunpack.c.l.b16 %v280
      %v364 = vunpack.c.l.b16 %v281
      %v365 = vunpack.c.h.b16 %v281
      %v366 = vunpack.c.l.b16 %v282
      %v367 = vunpack.c.l.b16 %v283
      %v368 = vunpack.c.h.b16 %v283
      %v369 = vunpack.c.l.b16 %v284
      %v370 = vunpack.c.l.b16 %v285
      %v371 = vunpack.c.h.b16 %v285
      %v372 = vunpack.c.l.b16 %v286
      %v373 = vunpack.c.l.b16 %v287
      %v374 = vunpack.c.h.b16 %v287
      %v375 = vunpack.c.l.b16 %v288
      %v376 = vunpack.c.l.b16 %v289
      %v377 = vunpack.c.h.b16 %v289
      %v378 = vunpack.c.l.b16 %v290
      %v379 = vunpack.c.l.b16 %v291
      %v380 = vunpack.c.h.b16 %v291
      %v381 = vunpack.c.l.b16 %v292
      %v382 = vunpack.c.l.b16 %v293
      %v383 = vunpack.c.h.b16 %v293
      %v384 = vunpack.c.l.b16 %v294
      %v385 = vunpack.c.l.b16 %v295
      %v386 = vunpack.c.h.b16 %v295
      %v387 = vunpack.c.l.b16 %v296
      %v388 = vunpack.c.l.b16 %v297
      %v389 = vunpack.c.h.b16 %v297
      %v390 = vunpack.c.l.b16 %v298
      %v391 = vunpack.c.l.b16 %v299
      %v392 = vunpack.c.h.b16 %v299
      %v393 = vunpack.c.l.b16 %v300
      %v394 = vunpack.c.l.b16 %v301
      %v395 = vunpack.c.h.b16 %v301
      %v396 = vunpack.c.l.b16 %v302
      %v397 = vunpack.c.l.b16 %v303
      %v398 = vunpack.c.h.b16 %v303
      %v399 = vunpack.c.l.b16 %v304
      %v400 = vunpack.c.l.b16 %v305
      %v401 = vunpack.c.h.b16 %v305
      %v402 = vunpack.c.l.b16 %v306
      %v403 = vunpack.c.l.b16 %v307
      %v404 = vunpack.c.h.b16 %v307
      %v405 = vunpack.c.l.b16 %v308
      %v406 = vpack.c.b16 %v361, %v358
      %v407 = vpack.c.b16 %v362, %v359
      %v408 = vpack.c.b16 %v363, %v360
      %v409 = vpack.c.b16 %v367, %v364
      %v410 = vpack.c.b16 %v368, %v365
      %v411 = vpack.c.b16 %v369, %v366
      %v412 = vpack.c.b16 %v373, %v370
      %v413 = vpack.c.b16 %v374, %v371
      %v414 = vpack.c.b16 %v375, %v372
      %v415 = vpack.c.b16 %v379, %v376
      %v416 = vpack.c.b16 %v380, %v377
      %v417 = vpack.c.b16 %v381, %v378
      %v418 = vpack.c.b16 %v385, %v382
      %v419 = vpack.c.b16 %v386, %v383
      %v420 = vpack.c.b16 %v387, %v384
      %v421 = vpack.c.b16 %v391, %v388
      %v422 = vpack.c.b16 %v392, %v389
      %v423 = vpack.c.b16 %v393, %v390
      %v424 = vpack.c.b16 %v397, %v394
      %v425 = vpack.c.b16 %v398, %v395
      %v426 = vpack.c.b16 %v399, %v396
      %v427 = vpack.c.b16 %v403, %v400
      %v428 = vpack.c.b16 %v404, %v401
      %v429 = vpack.c.b16 %v405, %v402
      %454 = vmatprep.subr.bf16.mxu0 %v407
      %455 = vmatpush1.bf16.msra.mxu0 %v406
      %456 = vmatprep.subr.bf16.mxu0 %v410
      %457 = vmatpush1.bf16.msra.mxu0 %v409
      %458 = vmatprep.subr.bf16.mxu0 %v413
      %459 = vmatpush1.bf16.msra.mxu0 %v412
      %460 = vmatprep.subr.bf16.mxu0 %v416
      %461 = vmatpush1.bf16.msra.mxu0 %v415
      %462 = vmatprep.subr.bf16.mxu0 %v419
      %463 = vmatpush1.bf16.msra.mxu0 %v418
      %464 = vmatprep.subr.bf16.mxu0 %v422
      %465 = vmatpush1.bf16.msra.mxu0 %v421
      %466 = vmatprep.subr.bf16.mxu0 %v425
      %467 = vmatpush1.bf16.msra.mxu0 %v424
      %468 = vmatprep.subr.bf16.mxu0 %v428
      %469 = vmatpush1.bf16.msra.mxu0 %v427
      %470 = vmatprep.subr.bf16.mxu0 0
      %471 = vmatpush1.bf16.msra.mxu0 0
      %472 = vmatprep.subr.bf16.mxu0 0
      %473 = vmatpush1.bf16.msra.mxu0 0
      %474 = vmatprep.subr.bf16.mxu0 0
      %475 = vmatpush1.bf16.msra.mxu0 0
      %476 = vmatprep.subr.bf16.mxu0 0
      %477 = vmatpush1.bf16.msra.mxu0 0
      %478 = vmatprep.subr.bf16.mxu0 0
      %479 = vmatpush1.bf16.msra.mxu0 0
      %480 = vmatprep.subr.bf16.mxu0 0
      %481 = vmatpush1.bf16.msra.mxu0 0
      %482 = vmatprep.subr.bf16.mxu0 0
      %483 = vmatpush1.bf16.msra.mxu0 0
      %484 = vmatprep.subr.bf16.mxu0 0
      %485 = vmatpush1.bf16.msra.mxu0 0
      %486 = vmatprep.mubr.bf16.mxu0 0
      %487 = vmatmul.mubr.bf16.gmra.mrb[0].mxu0 %v276
      %v488 = vpop.f32.mrb[0].mxu0
      %v489 = vadd.f32 %v314, %v488
      %v490 = vpop.f32.mrb[0].mxu0
      %v491 = vadd.f32 %v318, %v490
      %v492 = vpop.f32.mrb[0].mxu0
      %v493 = vpop.f32.mrb[0].mxu0
      %494 = vdwg.mxu0
      %495 = vmatprep.subr.bf16.mxu0 0
      %496 = vmatpush1.bf16.msra.mxu0 %v408
      %497 = vmatprep.subr.bf16.mxu0 0
      %498 = vmatpush1.bf16.msra.mxu0 %v411
      %499 = vmatprep.subr.bf16.mxu0 0
      %500 = vmatpush1.bf16.msra.mxu0 %v414
      %501 = vmatprep.subr.bf16.mxu0 0
      %502 = vmatpush1.bf16.msra.mxu0 %v417
      %503 = vmatprep.subr.bf16.mxu0 0
      %504 = vmatpush1.bf16.msra.mxu0 %v420
      %505 = vmatprep.subr.bf16.mxu0 0
      %506 = vmatpush1.bf16.msra.mxu0 %v423
      %507 = vmatprep.subr.bf16.mxu0 0
      %508 = vmatpush1.bf16.msra.mxu0 %v426
      %509 = vmatprep.subr.bf16.mxu0 0
      %510 = vmatpush1.bf16.msra.mxu0 %v429
      %511 = vmatprep.subr.bf16.mxu0 0
      %512 = vmatpush1.bf16.msra.mxu0 0
      %513 = vmatprep.subr.bf16.mxu0 0
      %514 = vmatpush1.bf16.msra.mxu0 0
      %515 = vmatprep.subr.bf16.mxu0 0
      %516 = vmatpush1.bf16.msra.mxu0 0
      %517 = vmatprep.subr.bf16.mxu0 0
      %518 = vmatpush1.bf16.msra.mxu0 0
      %519 = vmatprep.subr.bf16.mxu0 0
      %520 = vmatpush1.bf16.msra.mxu0 0
      %521 = vmatprep.subr.bf16.mxu0 0
      %522 = vmatpush1.bf16.msra.mxu0 0
      %523 = vmatprep.subr.bf16.mxu0 0
      %524 = vmatpush1.bf16.msra.mxu0 0
      %525 = vmatprep.subr.bf16.mxu0 0
      %526 = vmatpush1.bf16.msra.mxu0 0
      %527 = vmatprep.mubr.bf16.mxu0 0
      %528 = vmatmul.mubr.bf16.gmra.mrb[0].mxu0 %v276
      %v529 = vpop.f32.mrb[0].mxu0
      %v530 = vadd.f32 %v322, %v529
      %v531 = vpop.f32.mrb[0].mxu0
      %v532 = vpop.f32.mrb[0].mxu0
      %v533 = vpop.f32.mrb[0].mxu0
      %534 = vdwg.mxu0
      %v535 = vmul.f32 %v489, 0.125
      %v536 = vpack.c.bf16 %v535, %v535
      %v537 = vpack.c.bf16 %v491, %v491
      %v538 = vpack.c.bf16 %v530, %v530
      %vm539 = vcmask 523264
      %v541 = vsel %vm539, %v536, 0
      %v544 = vsel %vm539, %v537, 0
      %546 = vmatprep.subr.bf16.mxu0 0
      %547 = vmatpush1.bf16.xpose.msra.mxu0 %v544
      %548 = vmatprep.subr.bf16.mxu0 0
      %549 = vmatpush1.bf16.xpose.msra.mxu0 0
      %550 = vmatprep.subr.bf16.mxu0 0
      %551 = vmatpush1.bf16.xpose.msra.mxu0 0
      %552 = vmatprep.subr.bf16.mxu0 0
      %553 = vmatpush1.bf16.xpose.msra.mxu0 0
      %554 = vmatprep.subr.bf16.mxu0 0
      %555 = vmatpush1.bf16.xpose.msra.mxu0 0
      %556 = vmatprep.subr.bf16.mxu0 0
      %557 = vmatpush1.bf16.xpose.msra.mxu0 0
      %558 = vmatprep.subr.bf16.mxu0 0
      %559 = vmatpush1.bf16.xpose.msra.mxu0 0
      %560 = vmatprep.subr.bf16.mxu0 0
      %561 = vmatpush1.bf16.xpose.msra.mxu0 0
      %562 = vmatprep.subr.bf16.mxu0 0
      %563 = vmatpush1.bf16.xpose.msra.mxu0 0
      %564 = vmatprep.subr.bf16.mxu0 0
      %565 = vmatpush1.bf16.xpose.msra.mxu0 0
      %566 = vmatprep.subr.bf16.mxu0 0
      %567 = vmatpush1.bf16.xpose.msra.mxu0 0
      %568 = vmatprep.subr.bf16.mxu0 0
      %569 = vmatpush1.bf16.xpose.msra.mxu0 0
      %570 = vmatprep.subr.bf16.mxu0 0
      %571 = vmatpush1.bf16.xpose.msra.mxu0 0
      %572 = vmatprep.subr.bf16.mxu0 0
      %573 = vmatpush1.bf16.xpose.msra.mxu0 0
      %574 = vmatprep.subr.bf16.mxu0 0
      %575 = vmatpush1.bf16.xpose.msra.mxu0 0
      %576 = vmatprep.subr.bf16.mxu0 0
      %577 = vmatpush1.bf16.xpose.msra.mxu0 0
      %578 = vmatprep.mubr.bf16.mxu0 0
      %579 = vmatmul.mubr.bf16.gmra.mrb[0].mxu0 %v541
      %v580 = vpop.f32.mrb[0].mxu0
      %v581 = vadd.f32 0.0, %v580
      %v582 = vpop.f32.mrb[0].mxu0
      %v583 = vpop.f32.mrb[0].mxu0
      %v584 = vpop.f32.mrb[0].mxu0
      %585 = vdwg.mxu0
      %vm586 = vcmask 64512
      %v587 = vsel %vm586, %v581, -inf
      %588 = vmax.xlane.f32.xlu0 %v587
      %v589 = vpop.xlane.xlu0 %588
      %v590 = vsub.f32 %v581, %v589
      %v591 = vmul.f32 %v590, 1.442695
      %v592 = vpow.pop %v591
      %v593 = vsel %vm586, %v592, 0.0
      %594 = vadd.xlane.f32.xlu0 %v593
      %v595 = vpop.xlane.xlu0 %594
      %v596 = vrcp.pop %v595
      %v597 = vmul.f32 %v592, %v596
      %v598 = vpack.c.bf16 %v597, %v597
      %v600 = vsel %vm586, %v598, 0
      %vm602 = vcmask 1043456
      %v604 = vsel %vm602, %v538, 0
      %606 = vmatprep.subr.bf16.mxu0 0
      %607 = vmatpush1.bf16.msra.mxu0 %v604
      %608 = vmatprep.subr.bf16.mxu0 0
      %609 = vmatpush1.bf16.msra.mxu0 0
      %610 = vmatprep.subr.bf16.mxu0 0
      %611 = vmatpush1.bf16.msra.mxu0 0
      %612 = vmatprep.subr.bf16.mxu0 0
      %613 = vmatpush1.bf16.msra.mxu0 0
      %614 = vmatprep.subr.bf16.mxu0 0
      %615 = vmatpush1.bf16.msra.mxu0 0
      %616 = vmatprep.subr.bf16.mxu0 0
      %617 = vmatpush1.bf16.msra.mxu0 0
      %618 = vmatprep.subr.bf16.mxu0 0
      %619 = vmatpush1.bf16.msra.mxu0 0
      %620 = vmatprep.subr.bf16.mxu0 0
      %621 = vmatpush1.bf16.msra.mxu0 0
      %622 = vmatprep.subr.bf16.mxu0 0
      %623 = vmatpush1.bf16.msra.mxu0 0
      %624 = vmatprep.subr.bf16.mxu0 0
      %625 = vmatpush1.bf16.msra.mxu0 0
      %626 = vmatprep.subr.bf16.mxu0 0
      %627 = vmatpush1.bf16.msra.mxu0 0
      %628 = vmatprep.subr.bf16.mxu0 0
      %629 = vmatpush1.bf16.msra.mxu0 0
      %630 = vmatprep.subr.bf16.mxu0 0
      %631 = vmatpush1.bf16.msra.mxu0 0
      %632 = vmatprep.subr.bf16.mxu0 0
      %633 = vmatpush1.bf16.msra.mxu0 0
      %634 = vmatprep.subr.bf16.mxu0 0
      %635 = vmatpush1.bf16.msra.mxu0 0
      %636 = vmatprep.subr.bf16.mxu0 0
      %637 = vmatpush1.bf16.msra.mxu0 0
      %638 = vmatprep.mubr.bf16.mxu0 0
      %639 = vmatmul.mubr.bf16.gmra.mrb[0].mxu0 %v600
      %v640 = vpop.f32.mrb[0].mxu0
      %v641 = vadd.f32 0.0, %v640
      %v642 = vpop.f32.mrb[0].mxu0
      %v643 = vpop.f32.mrb[0].mxu0
      %v644 = vpop.f32.mrb[0].mxu0
      %645 = vdwg.mxu0
      %647 = vrot.lane.b32.xlu0 %v536, 64
      %v648 = vpop.permute.xlu0 %647
      %650 = vrot.lane.b32.xlu0 %v537, 64
      %v651 = vpop.permute.xlu0 %650
      %v653 = vsel %vm539, %v648, 0
      %v656 = vsel %vm539, %v651, 0
      %658 = vmatprep.subr.bf16.mxu0 0
      %659 = vmatpush1.bf16.xpose.msra.mxu0 %v656
      %660 = vmatprep.subr.bf16.mxu0 0
      %661 = vmatpush1.bf16.xpose.msra.mxu0 0
      %662 = vmatprep.subr.bf16.mxu0 0
      %663 = vmatpush1.bf16.xpose.msra.mxu0 0
      %664 = vmatprep.subr.bf16.mxu0 0
      %665 = vmatpush1.bf16.xpose.msra.mxu0 0
      %666 = vmatprep.subr.bf16.mxu0 0
      %667 = vmatpush1.bf16.xpose.msra.mxu0 0
      %668 = vmatprep.subr.bf16.mxu0 0
      %669 = vmatpush1.bf16.xpose.msra.mxu0 0
      %670 = vmatprep.subr.bf16.mxu0 0
      %671 = vmatpush1.bf16.xpose.msra.mxu0 0
      %672 = vmatprep.subr.bf16.mxu0 0
      %673 = vmatpush1.bf16.xpose.msra.mxu0 0
      %674 = vmatprep.subr.bf16.mxu0 0
      %675 = vmatpush1.bf16.xpose.msra.mxu0 0
      %676 = vmatprep.subr.bf16.mxu0 0
      %677 = vmatpush1.bf16.xpose.msra.mxu0 0
      %678 = vmatprep.subr.bf16.mxu0 0
      %679 = vmatpush1.bf16.xpose.msra.mxu0 0
      %680 = vmatprep.subr.bf16.mxu0 0
      %681 = vmatpush1.bf16.xpose.msra.mxu0 0
      %682 = vmatprep.subr.bf16.mxu0 0
      %683 = vmatpush1.bf16.xpose.msra.mxu0 0
      %684 = vmatprep.subr.bf16.mxu0 0
      %685 = vmatpush1.bf16.xpose.msra.mxu0 0
      %686 = vmatprep.subr.bf16.mxu0 0
      %687 = vmatpush1.bf16.xpose.msra.mxu0 0
      %688 = vmatprep.subr.bf16.mxu0 0
      %689 = vmatpush1.bf16.xpose.msra.mxu0 0
      %690 = vmatprep.mubr.bf16.mxu0 0
      %691 = vmatmul.mubr.bf16.gmra.mrb[0].mxu0 %v653
      %v692 = vpop.f32.mrb[0].mxu0
      %v693 = vadd.f32 0.0, %v692
      %v694 = vpop.f32.mrb[0].mxu0
      %v695 = vpop.f32.mrb[0].mxu0
      %v696 = vpop.f32.mrb[0].mxu0
      %697 = vdwg.mxu0
      %v698 = vsel %vm586, %v693, -inf
      %699 = vmax.xlane.f32.xlu0 %v698
      %v700 = vpop.xlane.xlu0 %699
      %v701 = vsub.f32 %v693, %v700
      %v702 = vmul.f32 %v701, 1.442695
      %v703 = vpow.pop %v702
      %v704 = vsel %vm586, %v703, 0.0
      %705 = vadd.xlane.f32.xlu0 %v704
      %v706 = vpop.xlane.xlu0 %705
      %v707 = vrcp.pop %v706
      %v708 = vmul.f32 %v703, %v707
      %v709 = vpack.c.bf16 %v708, %v708
      %711 = vrot.lane.b32.xlu0 %v538, 64
      %v712 = vpop.permute.xlu0 %711
      %v714 = vsel %vm586, %v709, 0
      %v717 = vsel %vm602, %v712, 0
      %719 = vmatprep.subr.bf16.mxu0 0
      %720 = vmatpush1.bf16.msra.mxu0 %v717
      %721 = vmatprep.subr.bf16.mxu0 0
      %722 = vmatpush1.bf16.msra.mxu0 0
      %723 = vmatprep.subr.bf16.mxu0 0
      %724 = vmatpush1.bf16.msra.mxu0 0
      %725 = vmatprep.subr.bf16.mxu0 0
      %726 = vmatpush1.bf16.msra.mxu0 0
      %727 = vmatprep.subr.bf16.mxu0 0
      %728 = vmatpush1.bf16.msra.mxu0 0
      %729 = vmatprep.subr.bf16.mxu0 0
      %730 = vmatpush1.bf16.msra.mxu0 0
      %731 = vmatprep.subr.bf16.mxu0 0
      %732 = vmatpush1.bf16.msra.mxu0 0
      %733 = vmatprep.subr.bf16.mxu0 0
      %734 = vmatpush1.bf16.msra.mxu0 0
      %735 = vmatprep.subr.bf16.mxu0 0
      %736 = vmatpush1.bf16.msra.mxu0 0
      %737 = vmatprep.subr.bf16.mxu0 0
      %738 = vmatpush1.bf16.msra.mxu0 0
      %739 = vmatprep.subr.bf16.mxu0 0
      %740 = vmatpush1.bf16.msra.mxu0 0
      %741 = vmatprep.subr.bf16.mxu0 0
      %742 = vmatpush1.bf16.msra.mxu0 0
      %743 = vmatprep.subr.bf16.mxu0 0
      %744 = vmatpush1.bf16.msra.mxu0 0
      %745 = vmatprep.subr.bf16.mxu0 0
      %746 = vmatpush1.bf16.msra.mxu0 0
      %747 = vmatprep.subr.bf16.mxu0 0
      %748 = vmatpush1.bf16.msra.mxu0 0
      %749 = vmatprep.subr.bf16.mxu0 0
      %750 = vmatpush1.bf16.msra.mxu0 0
      %751 = vmatprep.mubr.bf16.mxu0 0
      %752 = vmatmul.mubr.bf16.gmra.mrb[0].mxu0 %v714
      %v753 = vpop.f32.mrb[0].mxu0
      %v754 = vadd.f32 0.0, %v753
      %v755 = vpop.f32.mrb[0].mxu0
      %v756 = vpop.f32.mrb[0].mxu0
      %v757 = vpop.f32.mrb[0].mxu0
      %758 = vdwg.mxu0
      %760 = vrot.lane.b32.xlu0 %v754, 64
      %v761 = vpop.permute.xlu0 %760
      %v763 = vsel %vm539, %v641, %v761
      %v764 = vpack.c.bf16 %v763, %v763
      %v765 = vld [vmem:[%s3] sm:$0xf]
      %v766 = vld [vmem:[%s3 + $0x4] sm:$0xf]
      %v767 = vld [vmem:[%s3 + $0x8] sm:$0xf]
      %v768 = vld [vmem:[%s3 + $0xc] sm:$0xf]
      %v769 = vld [vmem:[%s3 + $0x10] sm:$0xf]
      %v770 = vld [vmem:[%s3 + $0x14] sm:$0xf]
      %v771 = vld [vmem:[%s3 + $0x18] sm:$0xf]
      %v772 = vld [vmem:[%s3 + $0x1c] sm:$0xf]
      %v773 = vld [vmem:[%s3 + $0x20] sm:$0xf]
      %v774 = vld [vmem:[%s3 + $0x24] sm:$0xf]
      %v775 = vld [vmem:[%s3 + $0x28] sm:$0xf]
      %v776 = vld [vmem:[%s3 + $0x2c] sm:$0xf]
      %v777 = vld [vmem:[%s3 + $0x30] sm:$0xf]
      %v778 = vld [vmem:[%s3 + $0x34] sm:$0xf]
      %v779 = vld [vmem:[%s3 + $0x38] sm:$0xf]
      %v780 = vld [vmem:[%s3 + $0x3c] sm:$0xf]
      %v781 = vld [vmem:[%s4] sm:$0x1]
      %v783 = vlaneseq
      %v784 = vshrl.u32 %v783, 7
      %v785 = vsub.s32 0, %v784
      %v786 = vrot.slane %v781, %v785
      %v804 = vunpack.c.l.b16 %v765
      %v805 = vunpack.c.l.b16 %v766
      %v806 = vunpack.c.l.b16 %v767
      %v807 = vunpack.c.l.b16 %v768
      %v808 = vunpack.c.l.b16 %v769
      %v809 = vunpack.c.l.b16 %v770
      %v810 = vunpack.c.l.b16 %v771
      %v811 = vunpack.c.l.b16 %v772
      %v812 = vunpack.c.l.b16 %v773
      %v813 = vunpack.c.l.b16 %v774
      %v814 = vunpack.c.l.b16 %v775
      %v815 = vunpack.c.l.b16 %v776
      %v816 = vunpack.c.l.b16 %v777
      %v817 = vunpack.c.l.b16 %v778
      %v818 = vunpack.c.l.b16 %v779
      %v819 = vunpack.c.l.b16 %v780
      %v820 = vpack.c.b16 %v805, %v804
      %v821 = vpack.c.b16 %v807, %v806
      %v822 = vpack.c.b16 %v809, %v808
      %v823 = vpack.c.b16 %v811, %v810
      %v824 = vpack.c.b16 %v813, %v812
      %v825 = vpack.c.b16 %v815, %v814
      %v826 = vpack.c.b16 %v817, %v816
      %v827 = vpack.c.b16 %v819, %v818
      %836 = vmatprep.subr.bf16.mxu0 0
      %837 = vmatpush1.bf16.msra.mxu0 %v820
      %838 = vmatprep.subr.bf16.mxu0 0
      %839 = vmatpush1.bf16.msra.mxu0 %v821
      %840 = vmatprep.subr.bf16.mxu0 0
      %841 = vmatpush1.bf16.msra.mxu0 %v822
      %842 = vmatprep.subr.bf16.mxu0 0
      %843 = vmatpush1.bf16.msra.mxu0 %v823
      %844 = vmatprep.subr.bf16.mxu0 0
      %845 = vmatpush1.bf16.msra.mxu0 %v824
      %846 = vmatprep.subr.bf16.mxu0 0
      %847 = vmatpush1.bf16.msra.mxu0 %v825
      %848 = vmatprep.subr.bf16.mxu0 0
      %849 = vmatpush1.bf16.msra.mxu0 %v826
      %850 = vmatprep.subr.bf16.mxu0 0
      %851 = vmatpush1.bf16.msra.mxu0 %v827
      %852 = vmatprep.subr.bf16.mxu0 0
      %853 = vmatpush1.bf16.msra.mxu0 0
      %854 = vmatprep.subr.bf16.mxu0 0
      %855 = vmatpush1.bf16.msra.mxu0 0
      %856 = vmatprep.subr.bf16.mxu0 0
      %857 = vmatpush1.bf16.msra.mxu0 0
      %858 = vmatprep.subr.bf16.mxu0 0
      %859 = vmatpush1.bf16.msra.mxu0 0
      %860 = vmatprep.subr.bf16.mxu0 0
      %861 = vmatpush1.bf16.msra.mxu0 0
      %862 = vmatprep.subr.bf16.mxu0 0
      %863 = vmatpush1.bf16.msra.mxu0 0
      %864 = vmatprep.subr.bf16.mxu0 0
      %865 = vmatpush1.bf16.msra.mxu0 0
      %866 = vmatprep.subr.bf16.mxu0 0
      %867 = vmatpush1.bf16.msra.mxu0 0
      %868 = vmatprep.mubr.bf16.mxu0 0
      %869 = vmatmul.mubr.bf16.gmra.mrb[0].mxu0 %v764
      %v870 = vpop.f32.mrb[0].mxu0
      %v871 = vadd.f32 %v786, %v870
      %v872 = vpop.f32.mrb[0].mxu0
      %v873 = vpop.f32.mrb[0].mxu0
      %v874 = vpop.f32.mrb[0].mxu0
      %875 = vdwg.mxu0
      %v876 = vadd.f32 %v275, %v871
      %877 = vadd.xlane.f32.xlu0 %v876
      %v878 = vpop.xlane.xlu0 %877
      %v879 = vrcp.pop 128.0
      %v880 = vmul.f32 %v878, %v879
      %v881 = vsub.f32 %v876, %v880
      %v882 = vmul.f32 %v881, %v881
      %883 = vadd.xlane.f32.xlu0 %v882
      %v884 = vpop.xlane.xlu0 %883
      %v885 = vmul.f32 %v884, %v879
      %v886 = vadd.f32 %v885, 1e-05
      %v887 = vrsqrt.pop %v886
      %v888 = vmul.f32 %v881, %v887
      %v889 = vld [vmem:[%s5] sm:$0x1]
      %v891 = vlaneseq
      %v892 = vshrl.u32 %v891, 7
      %v893 = vsub.s32 0, %v892
      %v894 = vrot.slane %v889, %v893
      %v896 = vmul.f32 %v888, %v894
      %v897 = vld [vmem:[%s6] sm:$0x1]
      %v899 = vlaneseq
      %v900 = vshrl.u32 %v899, 7
      %v901 = vsub.s32 0, %v900
      %v902 = vrot.slane %v897, %v901
      %v904 = vadd.f32 %v896, %v902
      %905 = vst [vmem:[%s273] sm:$0xff] %v904
      %p906 = scmp.lt.s32.totalorder %s18, 1
      %s907 = scalar_select %p906, %s18, 1
      %s908 = smul.addr %s907, 8
      %s909 = scalar_lea.vmem %s7, %s908
      // Predicated region
      $region49: #{simple_llm_forward.7} parent=47 // pred_check
        %p910 = pneg %p188
      $region50: #{simple_llm_forward.7} parent=47 // pred_check_branch
        %912 = sbr.rel (%p910) target = $region52
      $region51: #{simple_llm_forward.7} parent=47 // pred_region
        _
      $region52: #{simple_llm_forward.7} parent=47 // pred_fallthru
        _
    $region48: #{simple_llm_forward.7} parent=5 // pred_fallthru
      _
    %p913 = scmp.le.s32.totalorder 2, %s13
    // Predicated region
    $region53: #{simple_llm_forward.7} parent=5 // pred_check
      %p914 = pneg %p913
    $region54: #{simple_llm_forward.7} parent=5 // pred_check_branch
      %916 = sbr.rel (%p914) target = $region56
    $region55: #{simple_llm_forward.7} parent=5 // pred_region
      %s917 = ssub.s32 %s13, 2
      // Predicated region
      $region57: #{simple_llm_forward.7} parent=55 // pred_check
        %p918 = pneg %p194
      $region58: #{simple_llm_forward.7} parent=55 // pred_check_branch
        %920 = sbr.rel (%p918) target = $region60
      $region59: #{simple_llm_forward.7} parent=55 // pred_region
        %p921 = scmp.lt.s32.totalorder %s19, 1
        %s922 = scalar_select %p921, %s19, 1
        %s923 = smul.addr %s922, 8
        %s924 = scalar_lea.vmem %s7, %s923
      $region60: #{simple_llm_forward.7} parent=55 // pred_fallthru
        _
    $region56: #{simple_llm_forward.7} parent=5 // pred_fallthru
      _
  $region6: #{simple_llm_forward.7} parent=0 // loop_footer
    %s17 = sadd.s32 1, %s13
  $region7: #{simple_llm_forward.7} parent=0 // loop_footer_branch
    %12 = sbr.rel target = $region3
  $region8: #{simple_llm_forward.7} parent=0 // loop_exit
    _

</llo_original>
